<compile_context>
chip_gen: v7x
topology: tpu7x:2x2x1
jax: 0.10.0
libtpu: 0.0.40
codegen_flags: <defaults>
</compile_context>

<pallas_src>
import functools

import jax
import jax.numpy as jnp
from jax import lax
from jax.experimental import pallas as pl
from jax.experimental.pallas import tpu as pltpu

_VMEM_LIMIT = 48 * 1024 * 1024  # cap for Mosaic scoped VMEM; fits v5e/v6e (128 MiB) & v7x (64 MiB)


# ----------------------------------------------------------------------------
# Tiling helpers
# ----------------------------------------------------------------------------
def _m_tiling(m, tile_m, min_tiles=2):
    """Lane tile: multiple of 128, and >= min_tiles tiles when m is large (v7x megacore)."""
    tile_m = max(128, (tile_m // 128) * 128)
    if m > 128 * min_tiles:
        split = ((pl.cdiv(m, min_tiles) + 127) // 128) * 128
        tile_m = min(tile_m, split)
    if m <= tile_m:
        return m, m
    m_pad = pl.cdiv(m, tile_m) * tile_m
    return tile_m, m_pad


def _pick_tile_p(pn, ih, iw, tile_p):
    """Bound the per-view x-interp temporaries ([3ih,P]+[ih,P] f32, wx/wy) to ~12 MiB."""
    tile_p = max(128, (tile_p // 128) * 128)
    cap = ((12 * 1024 * 1024) // max(1, (20 * ih + 6 * iw))) // 128 * 128
    tile_p = min(tile_p, max(128, cap))
    return _m_tiling(pn, tile_p)


# ----------------------------------------------------------------------------
# get_diff_feats hot path: project points into every view, separable bilinear sample
# depth (f32) + rgb (bf16), accumulate masked mean / var over views.
# Images stay VMEM-resident (constant block index); view loop is a static unroll.
# ----------------------------------------------------------------------------
def _diff_feats_kernel(krt_ref, drange_ref, pts_ref, rgb_img_ref, dep_img_ref,
                       self_rgb_ref, out_ref, *, ih, iw, rfn):
    tile_p = pts_ref.shape[1]
    px = pts_ref[0:1, :]
    py = pts_ref[1:2, :]
    pz = pts_ref[2:3, :]

    acc = jnp.zeros((8, tile_p), jnp.float32)
    accw = jnp.zeros((1, tile_p), jnp.float32)

    for r in range(rfn):  # static unroll: images addressed with static offsets, no re-DMA
        # K @ [R|t] row-major, 12 scalars per view (SMEM).
        k = [krt_ref[r, j] for j in range(12)]
        x_cam = k[0] * px + k[1] * py + k[2] * pz + k[3]
        y_cam = k[4] * px + k[5] * py + k[6] * pz + k[7]
        z_cam = k[8] * px + k[9] * py + k[10] * pz + k[11]

        invalid_z = jnp.abs(z_cam) < 1e-4
        z_fix = jnp.where(invalid_z, 0.001, z_cam)
        inv_z = 1.0 / z_fix                    # exact divide (correctness feedback)
        x2d = x_cam * inv_z
        y2d = y_cam * inv_z

        valid = jnp.logical_not(invalid_z)
        valid = valid & (x2d >= -0.5) & (x2d < (iw - 0.5)) & (y2d >= -0.5) & (y2d < (ih - 0.5))

        # Separable bilinear sampling (border padding, align_corners=True).
        xs = jnp.clip(x2d, 0.0, iw - 1.0)
        ys = jnp.clip(y2d, 0.0, ih - 1.0)
        x0f = jnp.floor(xs)
        y0f = jnp.floor(ys)
        fx = xs - x0f
        fy = ys - y0f
        x0 = x0f.astype(jnp.int32)
        y0 = y0f.astype(jnp.int32)
        x1 = jnp.minimum(x0 + 1, iw - 1)
        y1 = jnp.minimum(y0 + 1, ih - 1)

        colx = lax.broadcasted_iota(jnp.int32, (iw, tile_p), 0)
        wx = jnp.where(colx == x0, 1.0 - fx, 0.0) + jnp.where(colx == x1, fx, 0.0)
        coly = lax.broadcasted_iota(jnp.int32, (ih, tile_p), 0)
        wy = jnp.where(coly == y0, 1.0 - fy, 0.0) + jnp.where(coly == y1, fy, 0.0)

        # RGB on the bf16 MXU path; depth kept f32.
        rgb2d = rgb_img_ref[r]                 # [3*ih, iw] bf16 (VMEM-resident stack)
        dep2d = dep_img_ref[r]                 # [ih, iw] f32
        tmp_rgb = jnp.dot(rgb2d, wx.astype(jnp.bfloat16),
                          preferred_element_type=jnp.float32)          # [3*ih, P]
        tmp_dep = jnp.dot(dep2d, wx, preferred_element_type=jnp.float32)  # [ih, P]

        r_int = jnp.sum(tmp_rgb[0 * ih:1 * ih, :] * wy, axis=0, keepdims=True)
        g_int = jnp.sum(tmp_rgb[1 * ih:2 * ih, :] * wy, axis=0, keepdims=True)
        b_int = jnp.sum(tmp_rgb[2 * ih:3 * ih, :] * wy, axis=0, keepdims=True)
        rgb_int = jnp.concatenate([r_int, g_int, b_int], axis=0)          # [3, P]
        dpt_int = jnp.sum(tmp_dep * wy, axis=0, keepdims=True)            # [1, P]

        dpt_int = jnp.maximum(dpt_int, 1e-5)
        dpt_prj = jnp.maximum(z_fix, 1e-5)

        near = drange_ref[r, 0]
        far = drange_ref[r, 1]
        inv_scale = 1.0 / ((-1.0 / far) - (-1.0 / near))
        dpt_diff = jnp.abs(1.0 / dpt_prj - 1.0 / dpt_int) * inv_scale      # exact divides
        dpt_diff = jnp.minimum(dpt_diff, 1.5)

        rgb_diff = jnp.abs(rgb_int - self_rgb_ref[...].astype(jnp.float32))

        m = valid.astype(jnp.float32)                                      # [1, P]
        contrib = jnp.concatenate(
            [rgb_diff, rgb_diff * rgb_diff, dpt_diff, dpt_diff * dpt_diff], axis=0) * m
        acc = acc + contrib                                                # one coalesced update
        accw = accw + m

    inv_w = 1.0 / jnp.maximum(accw, 1e-4)
    e = acc * inv_w
    rgb_mean = e[0:3, :]
    rgb_var = jnp.maximum(e[3:6, :] - rgb_mean * rgb_mean, 0.0)
    d_mean = e[6:7, :]
    d_var = jnp.maximum(e[7:8, :] - d_mean * d_mean, 0.0)
    out_ref[...] = jnp.concatenate([rgb_mean, rgb_var, d_mean, d_var],
                                   axis=0).astype(out_ref.dtype)           # single full-tile store


def diff_feats_pallas(krt, drange, pts, rgb_stack, dep_stack, self_rgb, *, ih, iw, tile_p=2048):
    rfn = rgb_stack.shape[0]
    pn = pts.shape[1]
    tp, pn_pad = _pick_tile_p(pn, ih, iw, tile_p)
    if pn_pad != pn:
        pts = jnp.pad(pts, ((0, 0), (0, pn_pad - pn)))
        self_rgb = jnp.pad(self_rgb, ((0, 0), (0, pn_pad - pn)))
    n_tiles = pn_pad // tp

    out = pl.pallas_call(
        functools.partial(_diff_feats_kernel, ih=ih, iw=iw, rfn=rfn),
        out_shape=jax.ShapeDtypeStruct((8, pn_pad), jnp.bfloat16),
        grid=(n_tiles,),
        in_specs=[
            pl.BlockSpec(memory_space=pltpu.MemorySpace.SMEM),             # KRt   [rfn, 12]
            pl.BlockSpec(memory_space=pltpu.MemorySpace.SMEM),             # near/far [rfn, 2]
            pl.BlockSpec((3, tp), lambda t: (0, t)),                       # world points
            pl.BlockSpec((rfn, 3 * ih, iw), lambda t: (0, 0, 0)),          # rgb stack (resident)
            pl.BlockSpec((rfn, ih, iw), lambda t: (0, 0, 0)),              # depth stack (resident)
            pl.BlockSpec((3, tp), lambda t: (0, t)),                       # colors at source pixels
        ],
        out_specs=pl.BlockSpec((8, tp), lambda t: (0, t)),
        compiler_params=pltpu.CompilerParams(
            dimension_semantics=("parallel",),
            vmem_limit_bytes=_VMEM_LIMIT),
        cost_estimate=pl.CostEstimate(
            flops=int(rfn * pn_pad * (8 * ih * iw + 10 * ih + 2 * iw + 64)),
            transcendentals=0,
            bytes_accessed=int(rfn * ih * iw * 10 + pn_pad * (3 * 4 + 3 * 2 + 8 * 2))),
    )(krt, drange, pts, rgb_stack, dep_stack, self_rgb)
    return out[:, :pn] if pn_pad != pn else out


# ----------------------------------------------------------------------------
# Fused conv pyramid: level-1 (fuse 12->16 relu + skip 1->8 relu), level-2 (fuse 16->32 relu
# + skip 8->16), residual 1x1 block and conv_out -- all on one VMEM-resident M2 tile.
# ----------------------------------------------------------------------------
def _pyramid_kernel(w1a_ref, w1b_ref, b1_ref, w2_ref, b2_ref,
                    w3_ref, b3_ref, wod_ref, wof_ref, bo_ref,
                    pa_ref, pb_ref, o_ref):
    tm = o_ref.shape[1]
    acc2 = jnp.zeros((48, tm), jnp.float32)
    for q in range(4):                     # level-2 taps == level-1 output positions (no halo)
        y1 = (jnp.dot(w1a_ref[...], pa_ref[q], preferred_element_type=jnp.float32)
              + jnp.dot(w1b_ref[...], pb_ref[q], preferred_element_type=jnp.float32)
              + b1_ref[...])
        y1 = jnp.maximum(y1, 0.0).astype(jnp.bfloat16)          # level-1 relu (both branches)
        acc2 = acc2 + jnp.dot(w2_ref[q], y1, preferred_element_type=jnp.float32)
    y2 = acc2 + b2_ref[...]
    f2 = jnp.maximum(y2[0:32, :], 0.0)                          # fuse conv2 relu
    d2 = y2[32:48, :].astype(jnp.bfloat16)                      # depth_skip conv2 (linear)
    inner = (jnp.dot(w3_ref[...], f2.astype(jnp.bfloat16), preferred_element_type=jnp.float32)
             + b3_ref[...] + f2)
    inner = jnp.maximum(inner, 0.0).astype(jnp.bfloat16)        # residual 1x1 block
    y = (jnp.dot(wod_ref[...], d2, preferred_element_type=jnp.float32)
         + jnp.dot(wof_ref[...], inner, preferred_element_type=jnp.float32)
         + bo_ref[...])
    o_ref[...] = y.astype(o_ref.dtype)


def fused_pyramid_cm(p_imd, p_dif, w1_imd, w1_dif, b1, w2t, b2, w3, b3, wod, wof, bo,
                     *, tile_m=1024, out_dtype=jnp.float32):
    m = p_imd.shape[2]
    tm, m_pad = _m_tiling(m, tile_m)
    if m_pad != m:
        pad = ((0, 0), (0, 0), (0, m_pad - m))
        p_imd = jnp.pad(p_imd, pad)
        p_dif = jnp.pad(p_dif, pad)
    grid = (m_pad // tm,)
    c2 = lambda i: (0, 0)
    c3 = lambda i: (0, 0, 0)
    bf = jnp.bfloat16

    out = pl.pallas_call(
        _pyramid_kernel,
        out_shape=jax.ShapeDtypeStruct((32, m_pad), out_dtype),
        grid=grid,
        in_specs=[
            pl.BlockSpec((24, 16), c2),
            pl.BlockSpec((24, 32), c2),
            pl.BlockSpec((24, 1), c2),
            pl.BlockSpec((4, 48, 24), c3),
            pl.BlockSpec((48, 1), c2),
            pl.BlockSpec((32, 32), c2),
            pl.BlockSpec((32, 1), c2),
            pl.BlockSpec((32, 16), c2),
            pl.BlockSpec((32, 32), c2),
            pl.BlockSpec((32, 1), c2),
            pl.BlockSpec((4, 16, tm), lambda i: (0, 0, i)),
            pl.BlockSpec((4, 32, tm), lambda i: (0, 0, i)),
        ],
        out_specs=pl.BlockSpec((32, tm), lambda i: (0, i)),
        compiler_params=pltpu.CompilerParams(
            dimension_semantics=("parallel",),
            vmem_limit_bytes=_VMEM_LIMIT),
        cost_estimate=pl.CostEstimate(
            flops=int(2 * m_pad * (4 * 24 * 48 + 4 * 48 * 24 + 32 * 32 + 32 * 16 + 32 * 32)),
            transcendentals=0,
            bytes_accessed=int(m_pad * (4 * 48 * 2 + 32 * 4) + 16 * 1024)),
    )(w1_imd.astype(bf), w1_dif.astype(bf), b1.astype(jnp.float32),
      w2t.astype(bf), b2.astype(jnp.float32),
      w3.astype(bf), b3.astype(jnp.float32),
      wod.astype(bf), wof.astype(bf), bo.astype(jnp.float32),
      p_imd, p_dif)
    return out[:, :m] if m_pad != m else out


# ----------------------------------------------------------------------------
# Plain-JAX glue (geometry setup, im2col layout, torch.inverse equivalents).
# ----------------------------------------------------------------------------
def extract_depth_for_init_impl(depth_range, depth):
    near = depth_range[:, 0][:, None, None, None]
    far = depth_range[:, 1][:, None, None, None]
    near_inv = -1.0 / near
    far_inv = -1.0 / far
    d = jnp.maximum(depth, 1e-5)
    d = -1.0 / d
    d = (d - near_inv) / (far_inv - near_inv)
    return jnp.clip(d, 0.0, 1.0)


def _im2col_2level(x_cm):
    """[C, V, H, W] -> [4 (level-2 tap q), 4C (c,ty,tx), V*(H/4)*(W/4)] (one bf16 pass)."""
    c, v, h, w = x_cm.shape
    x = x_cm.reshape(c, v, h // 4, 2, 2, w // 4, 2, 2)       # c, v, oy, qy, ty, ox, qx, tx
    x = x.transpose(3, 6, 0, 4, 7, 1, 2, 5)                  # qy, qx, c, ty, tx, v, oy, ox
    return x.reshape(4, c * 4, v * (h // 4) * (w // 4))


def depth_fusion_forward(params, imgs, feats, depths, Ks, poses, depth_range,
                         *, tile_p=2048, tile_m=1024):
    del feats  # unused by the reference forward as well
    rfn, _, h, w = imgs.shape
    pn = rfn * h * w

    poses_w2c = jnp.linalg.inv(poses)[:, :3]                                  # [rfn, 3, 4]
    depth_range_full = jnp.tile(depth_range.reshape(1, 2), (rfn, 1)).astype(jnp.float32)
    depth4 = depths[:, None, :, :].astype(jnp.float32)
    depth_norm = extract_depth_for_init_impl(depth_range_full, depth4)        # [rfn,1,h,w]

    near = depth_range_full[:, 0][:, None, None, None]
    far = depth_range_full[:, 1][:, None, None, None]
    near_inv = -1.0 / near
    far_inv = -1.0 / far
    depth_metric = -1.0 / (depth_norm * (far_inv - near_inv) + near_inv)      # [rfn,1,h,w]

    # Unproject to world points (per-view), project into all views in the kernel.
    ys_, xs_ = jnp.meshgrid(jnp.arange(h, dtype=jnp.float32),
                            jnp.arange(w, dtype=jnp.float32), indexing="ij")
    coords = jnp.stack([xs_, ys_, jnp.ones_like(xs_)], axis=-1)               # [h,w,3] (x,y,1)
    K_inv = jnp.linalg.inv(Ks)
    pts_cam = depth_metric[:, 0, :, :, None] * coords[None]
    pts_cam = jnp.einsum("vij,vhwj->vhwi", K_inv, pts_cam)
    R = poses_w2c[:, :3, :3]
    t = poses_w2c[:, :3, 3]
    Rt_ = jnp.swapaxes(R, 1, 2)
    cam_center = -jnp.einsum("vij,vj->vi", Rt_, t)
    pts_world = jnp.einsum("vij,vhwj->vhwi", Rt_, pts_cam) + cam_center[:, None, None, :]
    pts = pts_world.reshape(pn, 3).T.astype(jnp.float32)                      # [3, pn]

    krt = jnp.einsum("vij,vjk->vik", Ks, poses_w2c).reshape(rfn, 12).astype(jnp.float32)
    rgb_stack = imgs.astype(jnp.bfloat16).reshape(rfn, 3 * h, w)              # resident, bf16
    dep_stack = depth_metric.reshape(rfn, h, w).astype(jnp.float32)           # resident, f32
    self_rgb = imgs.transpose(1, 0, 2, 3).reshape(3, pn).astype(jnp.bfloat16)

    diff = diff_feats_pallas(krt, depth_range_full, pts, rgb_stack, dep_stack, self_rgb,
                             ih=h, iw=w, tile_p=tile_p)                       # [8, pn] bf16
    diff_cm = diff.reshape(8, rfn, h, w)

    imgs_cm = imgs.transpose(1, 0, 2, 3).astype(jnp.bfloat16)                 # [3, rfn, h, w]
    depth_cm = depth_norm.transpose(1, 0, 2, 3).astype(jnp.bfloat16)          # [1, rfn, h, w]
    imd_cm = jnp.concatenate([imgs_cm, depth_cm], axis=0)                     # [4, rfn, h, w]

    p_imd = _im2col_2level(imd_cm)                                            # [4, 16, M2] bf16
    p_dif = _im2col_2level(diff_cm)                                           # [4, 32, M2] bf16

    # --- weight packing (level-1 rows = [16 fuse, 8 skip]; level-2 rows = [32 fuse, 16 skip]) ---
    fw1r = params["fw1"].reshape(16, 12, 4)
    w1_imd = jnp.concatenate([
        fw1r[:, 0:4].reshape(16, 16),
        jnp.concatenate([jnp.zeros((8, 12), jnp.float32),
                         params["sw1"].reshape(8, 4)], axis=1)], axis=0)      # [24, 16]
    w1_dif = jnp.concatenate([fw1r[:, 4:12].reshape(16, 32),
                              jnp.zeros((8, 32), jnp.float32)], axis=0)       # [24, 32]
    b1c = jnp.concatenate([params["fb1"], params["sb1"]]).reshape(24, 1)

    fw2 = params["fw2"]
    sw2 = params["sw2"]
    w2t = jnp.zeros((4, 48, 24), jnp.float32)
    for qy in range(2):
        for qx in range(2):
            q = 2 * qy + qx
            w2t = w2t.at[q, 0:32, 0:16].set(fw2[:, :, qy, qx])
            w2t = w2t.at[q, 32:48, 16:24].set(sw2[:, :, qy, qx])
    b2c = jnp.concatenate([params["fb2"], params["sb2"]]).reshape(48, 1)

    w3 = params["fw3"].reshape(32, 32)
    b3 = params["fb3"].reshape(32, 1)
    ow = params["ow"].reshape(32, 48)
    wod = ow[:, 0:16]
    wof = ow[:, 16:48]
    bo = params["ob"].reshape(32, 1)

    out_cm = fused_pyramid_cm(p_imd, p_dif, w1_imd, w1_dif, b1c, w2t, b2c,
                              w3, b3, wod, wof, bo, tile_m=tile_m)            # [32, M2] f32
    out = out_cm.reshape(32, rfn, h // 4, w // 4).transpose(1, 0, 2, 3)
    return out                                                                # [rfn,32,h/4,w/4]


def init_params(key):
    ks = jax.random.split(key, 12)
    n = lambda k, s, sc=0.1: (sc * jax.random.normal(k, s, jnp.float32))
    return {
        "fw1": n(ks[0], (16, 12, 2, 2)), "fb1": n(ks[1], (16,), 0.02),
        "fw2": n(ks[2], (32, 16, 2, 2)), "fb2": n(ks[3], (32,), 0.02),
        "fw3": n(ks[4], (32, 32, 1, 1)), "fb3": n(ks[5], (32,), 0.02),
        "sw1": n(ks[6], (8, 1, 2, 2)),   "sb1": n(ks[7], (8,), 0.02),
        "sw2": n(ks[8], (16, 8, 2, 2)),  "sb2": n(ks[9], (16,), 0.02),
        "ow":  n(ks[10], (32, 48, 1, 1)), "ob": n(ks[11], (32,), 0.02),
    }


if __name__ == "__main__":
    key = jax.random.PRNGKey(0)
    kp, k0, k1 = jax.random.split(key, 3)

    rfn, h, w = 2, 32, 32      # small but big enough to exercise point/M tiling
    params = init_params(kp)

    imgs = jax.random.uniform(k0, (rfn, 3, h, w), jnp.float32)
    depths = jax.random.uniform(k1, (rfn, h, w), jnp.float32, minval=1.5, maxval=4.0)
    feats = jnp.zeros((rfn, 32, h // 4, w // 4), jnp.float32)   # unused (matches reference)

    K = jnp.array([[30.0, 0.0, (w - 1) / 2.0],
                   [0.0, 30.0, (h - 1) / 2.0],
                   [0.0, 0.0, 1.0]], jnp.float32)
    Ks = jnp.tile(K[None], (rfn, 1, 1))

    pose_list = []
    for v in range(rfn):
        P = jnp.eye(4, dtype=jnp.float32)
        P = P.at[:3, 3].set(jnp.array([0.15 * v, -0.10 * v, 0.05 * v], jnp.float32))
        pose_list.append(P)
    poses = jnp.stack(pose_list)                 # camera-to-world, inverted inside forward
    depth_range = jnp.array([1.0, 5.0], jnp.float32)

    fwd = jax.jit(depth_fusion_forward)
    out = fwd(params, imgs, feats, depths, Ks, poses, depth_range)
    out = jax.block_until_ready(out)
    assert out.shape == (rfn, 32, h // 4, w // 4), out.shape
    assert bool(jnp.all(jnp.isfinite(out)))
    print("KERNEL_OK")
</pallas_src>

<mosaic_0001>
module attributes {stable_mosaic.version = 11 : i64} {
  func.func @_diff_feats_kernel(%arg0: i32, %arg1: memref<2x12xf32, #tpu.memory_space<smem>>, %arg2: memref<2x2xf32, #tpu.memory_space<smem>>, %arg3: memref<3x1024xf32, #tpu.memory_space<vmem>>, %arg4: memref<2x96x32xbf16, #tpu.memory_space<vmem>>, %arg5: memref<2x32x32xf32, #tpu.memory_space<vmem>>, %arg6: memref<3x1024xbf16, #tpu.memory_space<vmem>>, %arg7: memref<8x1024xbf16, #tpu.memory_space<vmem>>) attributes {dimension_semantics = [#tpu.dimension_semantics<parallel>], iteration_bounds = array<i64: 2>, scalar_prefetch = 0 : i64, scratch_operands = 0 : i64, tpu.core_type = #tpu.core_type<tc>, window_params = [{transform_indices = @transform_0, window_bounds = array<i64: 2, 12>}, {transform_indices = @transform_1, window_bounds = array<i64: 2, 2>}, {transform_indices = @transform_2, window_bounds = array<i64: 3, 1024>}, {pipeline_mode = #tpu.pipeline_mode<synchronous>, transform_indices = @transform_3, window_bounds = array<i64: 2, 96, 32>}, {pipeline_mode = #tpu.pipeline_mode<synchronous>, transform_indices = @transform_4, window_bounds = array<i64: 2, 32, 32>}, {transform_indices = @transform_5, window_bounds = array<i64: 3, 1024>}, {transform_indices = @transform_6, window_bounds = array<i64: 8, 1024>}]} {
    %c0 = arith.constant 0 : index
    %c0_0 = arith.constant 0 : index
    %0 = vector.load %arg3[%c0, %c0_0] : memref<3x1024xf32, #tpu.memory_space<vmem>>, vector<1x1024xf32>
    %c1 = arith.constant 1 : index
    %c0_1 = arith.constant 0 : index
    %1 = vector.load %arg3[%c1, %c0_1] : memref<3x1024xf32, #tpu.memory_space<vmem>>, vector<1x1024xf32>
    %c2 = arith.constant 2 : index
    %c0_2 = arith.constant 0 : index
    %2 = vector.load %arg3[%c2, %c0_2] : memref<3x1024xf32, #tpu.memory_space<vmem>>, vector<1x1024xf32>
    %cst = arith.constant 0.000000e+00 : f32
    %3 = vector.broadcast %cst : f32 to vector<8x1024xf32>
    %cst_3 = arith.constant 0.000000e+00 : f32
    %4 = vector.broadcast %cst_3 : f32 to vector<1x1024xf32>
    %c0_4 = arith.constant 0 : index
    %c0_5 = arith.constant 0 : index
    %5 = memref.load %arg1[%c0_4, %c0_5] : memref<2x12xf32, #tpu.memory_space<smem>>
    %c0_6 = arith.constant 0 : index
    %c1_7 = arith.constant 1 : index
    %6 = memref.load %arg1[%c0_6, %c1_7] : memref<2x12xf32, #tpu.memory_space<smem>>
    %c0_8 = arith.constant 0 : index
    %c2_9 = arith.constant 2 : index
    %7 = memref.load %arg1[%c0_8, %c2_9] : memref<2x12xf32, #tpu.memory_space<smem>>
    %c0_10 = arith.constant 0 : index
    %c3 = arith.constant 3 : index
    %8 = memref.load %arg1[%c0_10, %c3] : memref<2x12xf32, #tpu.memory_space<smem>>
    %c0_11 = arith.constant 0 : index
    %c4 = arith.constant 4 : index
    %9 = memref.load %arg1[%c0_11, %c4] : memref<2x12xf32, #tpu.memory_space<smem>>
    %c0_12 = arith.constant 0 : index
    %c5 = arith.constant 5 : index
    %10 = memref.load %arg1[%c0_12, %c5] : memref<2x12xf32, #tpu.memory_space<smem>>
    %c0_13 = arith.constant 0 : index
    %c6 = arith.constant 6 : index
    %11 = memref.load %arg1[%c0_13, %c6] : memref<2x12xf32, #tpu.memory_space<smem>>
    %c0_14 = arith.constant 0 : index
    %c7 = arith.constant 7 : index
    %12 = memref.load %arg1[%c0_14, %c7] : memref<2x12xf32, #tpu.memory_space<smem>>
    %c0_15 = arith.constant 0 : index
    %c8 = arith.constant 8 : index
    %13 = memref.load %arg1[%c0_15, %c8] : memref<2x12xf32, #tpu.memory_space<smem>>
    %c0_16 = arith.constant 0 : index
    %c9 = arith.constant 9 : index
    %14 = memref.load %arg1[%c0_16, %c9] : memref<2x12xf32, #tpu.memory_space<smem>>
    %c0_17 = arith.constant 0 : index
    %c10 = arith.constant 10 : index
    %15 = memref.load %arg1[%c0_17, %c10] : memref<2x12xf32, #tpu.memory_space<smem>>
    %c0_18 = arith.constant 0 : index
    %c11 = arith.constant 11 : index
    %16 = memref.load %arg1[%c0_18, %c11] : memref<2x12xf32, #tpu.memory_space<smem>>
    %17 = vector.broadcast %5 : f32 to vector<1x1024xf32>
    %18 = arith.mulf %17, %0 : vector<1x1024xf32>
    %19 = vector.broadcast %6 : f32 to vector<1x1024xf32>
    %20 = arith.mulf %19, %1 : vector<1x1024xf32>
    %21 = arith.addf %18, %20 : vector<1x1024xf32>
    %22 = vector.broadcast %7 : f32 to vector<1x1024xf32>
    %23 = arith.mulf %22, %2 : vector<1x1024xf32>
    %24 = arith.addf %21, %23 : vector<1x1024xf32>
    %25 = vector.broadcast %8 : f32 to vector<1x1024xf32>
    %26 = arith.addf %24, %25 : vector<1x1024xf32>
    %27 = vector.broadcast %9 : f32 to vector<1x1024xf32>
    %28 = arith.mulf %27, %0 : vector<1x1024xf32>
    %29 = vector.broadcast %10 : f32 to vector<1x1024xf32>
    %30 = arith.mulf %29, %1 : vector<1x1024xf32>
    %31 = arith.addf %28, %30 : vector<1x1024xf32>
    %32 = vector.broadcast %11 : f32 to vector<1x1024xf32>
    %33 = arith.mulf %32, %2 : vector<1x1024xf32>
    %34 = arith.addf %31, %33 : vector<1x1024xf32>
    %35 = vector.broadcast %12 : f32 to vector<1x1024xf32>
    %36 = arith.addf %34, %35 : vector<1x1024xf32>
    %37 = vector.broadcast %13 : f32 to vector<1x1024xf32>
    %38 = arith.mulf %37, %0 : vector<1x1024xf32>
    %39 = vector.broadcast %14 : f32 to vector<1x1024xf32>
    %40 = arith.mulf %39, %1 : vector<1x1024xf32>
    %41 = arith.addf %38, %40 : vector<1x1024xf32>
    %42 = vector.broadcast %15 : f32 to vector<1x1024xf32>
    %43 = arith.mulf %42, %2 : vector<1x1024xf32>
    %44 = arith.addf %41, %43 : vector<1x1024xf32>
    %45 = vector.broadcast %16 : f32 to vector<1x1024xf32>
    %46 = arith.addf %44, %45 : vector<1x1024xf32>
    %47 = math.absf %46 : vector<1x1024xf32>
    %cst_19 = arith.constant 9.99999974E-5 : f32
    %48 = vector.broadcast %cst_19 : f32 to vector<1x1024xf32>
    %49 = arith.cmpf olt, %47, %48 : vector<1x1024xf32>
    %cst_20 = arith.constant 1.000000e-03 : f32
    %50 = vector.broadcast %cst_20 : f32 to vector<1x1024xf32>
    %51 = arith.select %49, %50, %46 : vector<1x1024xi1>, vector<1x1024xf32>
    %cst_21 = arith.constant 1.000000e+00 : f32
    %52 = vector.broadcast %cst_21 : f32 to vector<1x1024xf32>
    %53 = arith.divf %52, %51 : vector<1x1024xf32>
    %54 = arith.mulf %26, %53 : vector<1x1024xf32>
    %55 = arith.mulf %36, %53 : vector<1x1024xf32>
    %cst_22 = arith.constant dense<true> : vector<1x1024xi1>
    %56 = arith.xori %49, %cst_22 : vector<1x1024xi1>
    %cst_23 = arith.constant -5.000000e-01 : f32
    %57 = vector.broadcast %cst_23 : f32 to vector<1x1024xf32>
    %58 = arith.cmpf oge, %54, %57 : vector<1x1024xf32>
    %59 = arith.andi %56, %58 : vector<1x1024xi1>
    %cst_24 = arith.constant 3.150000e+01 : f32
    %60 = vector.broadcast %cst_24 : f32 to vector<1x1024xf32>
    %61 = arith.cmpf olt, %54, %60 : vector<1x1024xf32>
    %62 = arith.andi %59, %61 : vector<1x1024xi1>
    %cst_25 = arith.constant -5.000000e-01 : f32
    %63 = vector.broadcast %cst_25 : f32 to vector<1x1024xf32>
    %64 = arith.cmpf oge, %55, %63 : vector<1x1024xf32>
    %65 = arith.andi %62, %64 : vector<1x1024xi1>
    %cst_26 = arith.constant 3.150000e+01 : f32
    %66 = vector.broadcast %cst_26 : f32 to vector<1x1024xf32>
    %67 = arith.cmpf olt, %55, %66 : vector<1x1024xf32>
    %68 = arith.andi %65, %67 : vector<1x1024xi1>
    %cst_27 = arith.constant 0.000000e+00 : f32
    %cst_28 = arith.constant 3.100000e+01 : f32
    %69 = vector.broadcast %cst_27 : f32 to vector<1x1024xf32>
    %70 = arith.maximumf %69, %54 : vector<1x1024xf32>
    %71 = vector.broadcast %cst_28 : f32 to vector<1x1024xf32>
    %72 = arith.minimumf %71, %70 : vector<1x1024xf32>
    %cst_29 = arith.constant 0.000000e+00 : f32
    %cst_30 = arith.constant 3.100000e+01 : f32
    %73 = vector.broadcast %cst_29 : f32 to vector<1x1024xf32>
    %74 = arith.maximumf %73, %55 : vector<1x1024xf32>
    %75 = vector.broadcast %cst_30 : f32 to vector<1x1024xf32>
    %76 = arith.minimumf %75, %74 : vector<1x1024xf32>
    %77 = math.floor %72 : vector<1x1024xf32>
    %78 = math.floor %76 : vector<1x1024xf32>
    %79 = arith.subf %72, %77 : vector<1x1024xf32>
    %80 = arith.subf %76, %78 : vector<1x1024xf32>
    %81 = arith.fptosi %77 : vector<1x1024xf32> to vector<1x1024xi32>
    %82 = arith.fptosi %78 : vector<1x1024xf32> to vector<1x1024xi32>
    %c1_i32 = arith.constant 1 : i32
    %83 = vector.broadcast %c1_i32 : i32 to vector<1x1024xi32>
    %84 = arith.addi %81, %83 : vector<1x1024xi32>
    %c31_i32 = arith.constant 31 : i32
    %85 = vector.broadcast %c31_i32 : i32 to vector<1x1024xi32>
    %86 = arith.minsi %84, %85 : vector<1x1024xi32>
    %c1_i32_31 = arith.constant 1 : i32
    %87 = vector.broadcast %c1_i32_31 : i32 to vector<1x1024xi32>
    %88 = arith.addi %82, %87 : vector<1x1024xi32>
    %c31_i32_32 = arith.constant 31 : i32
    %89 = vector.broadcast %c31_i32_32 : i32 to vector<1x1024xi32>
    %90 = arith.minsi %88, %89 : vector<1x1024xi32>
    %91 = tpu.iota {dimensions = array<i32: 0>} : vector<32x1024xi32>
    %92 = vector.broadcast %81 : vector<1x1024xi32> to vector<32x1024xi32>
    %93 = arith.cmpi eq, %91, %92 : vector<32x1024xi32>
    %cst_33 = arith.constant 1.000000e+00 : f32
    %94 = vector.broadcast %cst_33 : f32 to vector<1x1024xf32>
    %95 = arith.subf %94, %79 : vector<1x1024xf32>
    %cst_34 = arith.constant 0.000000e+00 : f32
    %96 = vector.shape_cast %95 : vector<1x1024xf32> to vector<1x1024xf32>
    %97 = vector.broadcast %96 : vector<1x1024xf32> to vector<32x1024xf32>
    %98 = vector.broadcast %cst_34 : f32 to vector<32x1024xf32>
    %99 = arith.select %93, %97, %98 : vector<32x1024xi1>, vector<32x1024xf32>
    %100 = vector.broadcast %86 : vector<1x1024xi32> to vector<32x1024xi32>
    %101 = arith.cmpi eq, %91, %100 : vector<32x1024xi32>
    %cst_35 = arith.constant 0.000000e+00 : f32
    %102 = vector.shape_cast %79 : vector<1x1024xf32> to vector<1x1024xf32>
    %103 = vector.broadcast %102 : vector<1x1024xf32> to vector<32x1024xf32>
    %104 = vector.broadcast %cst_35 : f32 to vector<32x1024xf32>
    %105 = arith.select %101, %103, %104 : vector<32x1024xi1>, vector<32x1024xf32>
    %106 = arith.addf %99, %105 : vector<32x1024xf32>
    %107 = tpu.iota {dimensions = array<i32: 0>} : vector<32x1024xi32>
    %108 = vector.broadcast %82 : vector<1x1024xi32> to vector<32x1024xi32>
    %109 = arith.cmpi eq, %107, %108 : vector<32x1024xi32>
    %cst_36 = arith.constant 1.000000e+00 : f32
    %110 = vector.broadcast %cst_36 : f32 to vector<1x1024xf32>
    %111 = arith.subf %110, %80 : vector<1x1024xf32>
    %cst_37 = arith.constant 0.000000e+00 : f32
    %112 = vector.shape_cast %111 : vector<1x1024xf32> to vector<1x1024xf32>
    %113 = vector.broadcast %112 : vector<1x1024xf32> to vector<32x1024xf32>
    %114 = vector.broadcast %cst_37 : f32 to vector<32x1024xf32>
    %115 = arith.select %109, %113, %114 : vector<32x1024xi1>, vector<32x1024xf32>
    %116 = vector.broadcast %90 : vector<1x1024xi32> to vector<32x1024xi32>
    %117 = arith.cmpi eq, %107, %116 : vector<32x1024xi32>
    %cst_38 = arith.constant 0.000000e+00 : f32
    %118 = vector.shape_cast %80 : vector<1x1024xf32> to vector<1x1024xf32>
    %119 = vector.broadcast %118 : vector<1x1024xf32> to vector<32x1024xf32>
    %120 = vector.broadcast %cst_38 : f32 to vector<32x1024xf32>
    %121 = arith.select %117, %119, %120 : vector<32x1024xi1>, vector<32x1024xf32>
    %122 = arith.addf %115, %121 : vector<32x1024xf32>
    %c0_39 = arith.constant 0 : index
    %c0_40 = arith.constant 0 : index
    %c0_41 = arith.constant 0 : index
    %123 = vector.load %arg4[%c0_39, %c0_40, %c0_41] : memref<2x96x32xbf16, #tpu.memory_space<vmem>>, vector<1x96x32xbf16>
    %124 = vector.shape_cast %123 : vector<1x96x32xbf16> to vector<96x32xbf16>
    %c0_42 = arith.constant 0 : index
    %c0_43 = arith.constant 0 : index
    %c0_44 = arith.constant 0 : index
    %125 = vector.load %arg5[%c0_42, %c0_43, %c0_44] : memref<2x32x32xf32, #tpu.memory_space<vmem>>, vector<1x32x32xf32>
    %126 = vector.shape_cast %125 : vector<1x32x32xf32> to vector<32x32xf32>
    %127 = arith.truncf %106 : vector<32x1024xf32> to vector<32x1024xbf16>
    %cst_45 = arith.constant dense<0.000000e+00> : vector<96x1024xf32>
    %128 = tpu.matmul %124, %127, %cst_45 {dimension_numbers = #tpu.dot_dimension_numbers<[1], [0], [0], [1], [0, 0, 1, 1], [], []>} : vector<96x32xbf16>, vector<32x1024xbf16>, vector<96x1024xf32> -> vector<96x1024xf32>
    %cst_46 = arith.constant dense<0.000000e+00> : vector<32x1024xf32>
    %129 = tpu.matmul %126, %106, %cst_46 {dimension_numbers = #tpu.dot_dimension_numbers<[1], [0], [0], [1], [0, 0, 1, 1], [], []>} : vector<32x32xf32>, vector<32x1024xf32>, vector<32x1024xf32> -> vector<32x1024xf32>
    %130 = vector.extract_strided_slice %128 {offsets = [0, 0], sizes = [32, 1024], strides = [1, 1]} : vector<96x1024xf32> to vector<32x1024xf32>
    %131 = arith.mulf %130, %122 : vector<32x1024xf32>
    %cst_47 = arith.constant dense<0.000000e+00> : vector<1024xf32>
    %132 = vector.multi_reduction <add>, %131, %cst_47 [0] : vector<32x1024xf32> to vector<1024xf32>
    %133 = vector.shape_cast %132 : vector<1024xf32> to vector<1x1024xf32>
    %134 = vector.extract_strided_slice %128 {offsets = [32, 0], sizes = [32, 1024], strides = [1, 1]} : vector<96x1024xf32> to vector<32x1024xf32>
    %135 = arith.mulf %134, %122 : vector<32x1024xf32>
    %cst_48 = arith.constant dense<0.000000e+00> : vector<1024xf32>
    %136 = vector.multi_reduction <add>, %135, %cst_48 [0] : vector<32x1024xf32> to vector<1024xf32>
    %137 = vector.shape_cast %136 : vector<1024xf32> to vector<1x1024xf32>
    %138 = vector.extract_strided_slice %128 {offsets = [64, 0], sizes = [32, 1024], strides = [1, 1]} : vector<96x1024xf32> to vector<32x1024xf32>
    %139 = arith.mulf %138, %122 : vector<32x1024xf32>
    %cst_49 = arith.constant dense<0.000000e+00> : vector<1024xf32>
    %140 = vector.multi_reduction <add>, %139, %cst_49 [0] : vector<32x1024xf32> to vector<1024xf32>
    %141 = vector.shape_cast %140 : vector<1024xf32> to vector<1x1024xf32>
    %142 = tpu.concatenate %133, %137, %141 in 0 : vector<1x1024xf32>, vector<1x1024xf32>, vector<1x1024xf32> -> vector<3x1024xf32>
    %143 = arith.mulf %129, %122 : vector<32x1024xf32>
    %cst_50 = arith.constant dense<0.000000e+00> : vector<1024xf32>
    %144 = vector.multi_reduction <add>, %143, %cst_50 [0] : vector<32x1024xf32> to vector<1024xf32>
    %145 = vector.shape_cast %144 : vector<1024xf32> to vector<1x1024xf32>
    %cst_51 = arith.constant 9.99999974E-6 : f32
    %146 = vector.broadcast %cst_51 : f32 to vector<1x1024xf32>
    %147 = arith.maximumf %145, %146 : vector<1x1024xf32>
    %cst_52 = arith.constant 9.99999974E-6 : f32
    %148 = vector.broadcast %cst_52 : f32 to vector<1x1024xf32>
    %149 = arith.maximumf %51, %148 : vector<1x1024xf32>
    %c0_53 = arith.constant 0 : index
    %c0_54 = arith.constant 0 : index
    %150 = memref.load %arg2[%c0_53, %c0_54] : memref<2x2xf32, #tpu.memory_space<smem>>
    %c0_55 = arith.constant 0 : index
    %c1_56 = arith.constant 1 : index
    %151 = memref.load %arg2[%c0_55, %c1_56] : memref<2x2xf32, #tpu.memory_space<smem>>
    %cst_57 = arith.constant -1.000000e+00 : f32
    %152 = arith.divf %cst_57, %151 : f32
    %cst_58 = arith.constant -1.000000e+00 : f32
    %153 = arith.divf %cst_58, %150 : f32
    %154 = arith.subf %152, %153 : f32
    %cst_59 = arith.constant 1.000000e+00 : f32
    %155 = arith.divf %cst_59, %154 : f32
    %cst_60 = arith.constant 1.000000e+00 : f32
    %156 = vector.broadcast %cst_60 : f32 to vector<1x1024xf32>
    %157 = arith.divf %156, %149 : vector<1x1024xf32>
    %cst_61 = arith.constant 1.000000e+00 : f32
    %158 = vector.broadcast %cst_61 : f32 to vector<1x1024xf32>
    %159 = arith.divf %158, %147 : vector<1x1024xf32>
    %160 = arith.subf %157, %159 : vector<1x1024xf32>
    %161 = math.absf %160 : vector<1x1024xf32>
    %162 = vector.broadcast %155 : f32 to vector<1x1024xf32>
    %163 = arith.mulf %161, %162 : vector<1x1024xf32>
    %cst_62 = arith.constant 1.500000e+00 : f32
    %164 = vector.broadcast %cst_62 : f32 to vector<1x1024xf32>
    %165 = arith.minimumf %163, %164 : vector<1x1024xf32>
    %c0_63 = arith.constant 0 : index
    %c0_64 = arith.constant 0 : index
    %166 = vector.load %arg6[%c0_63, %c0_64] : memref<3x1024xbf16, #tpu.memory_space<vmem>>, vector<3x1024xbf16>
    %167 = arith.extf %166 : vector<3x1024xbf16> to vector<3x1024xf32>
    %168 = arith.subf %142, %167 : vector<3x1024xf32>
    %169 = math.absf %168 : vector<3x1024xf32>
    %170 = arith.extui %68 : vector<1x1024xi1> to vector<1x1024xi32>
    %171 = arith.sitofp %170 : vector<1x1024xi32> to vector<1x1024xf32>
    %172 = arith.mulf %169, %169 : vector<3x1024xf32>
    %173 = arith.mulf %165, %165 : vector<1x1024xf32>
    %174 = tpu.concatenate %169, %172, %165, %173 in 0 : vector<3x1024xf32>, vector<3x1024xf32>, vector<1x1024xf32>, vector<1x1024xf32> -> vector<8x1024xf32>
    %175 = vector.broadcast %171 : vector<1x1024xf32> to vector<8x1024xf32>
    %176 = arith.mulf %174, %175 : vector<8x1024xf32>
    %177 = arith.addf %3, %176 : vector<8x1024xf32>
    %178 = arith.addf %4, %171 : vector<1x1024xf32>
    %c1_65 = arith.constant 1 : index
    %c0_66 = arith.constant 0 : index
    %179 = memref.load %arg1[%c1_65, %c0_66] : memref<2x12xf32, #tpu.memory_space<smem>>
    %c1_67 = arith.constant 1 : index
    %c1_68 = arith.constant 1 : index
    %180 = memref.load %arg1[%c1_67, %c1_68] : memref<2x12xf32, #tpu.memory_space<smem>>
    %c1_69 = arith.constant 1 : index
    %c2_70 = arith.constant 2 : index
    %181 = memref.load %arg1[%c1_69, %c2_70] : memref<2x12xf32, #tpu.memory_space<smem>>
    %c1_71 = arith.constant 1 : index
    %c3_72 = arith.constant 3 : index
    %182 = memref.load %arg1[%c1_71, %c3_72] : memref<2x12xf32, #tpu.memory_space<smem>>
    %c1_73 = arith.constant 1 : index
    %c4_74 = arith.constant 4 : index
    %183 = memref.load %arg1[%c1_73, %c4_74] : memref<2x12xf32, #tpu.memory_space<smem>>
    %c1_75 = arith.constant 1 : index
    %c5_76 = arith.constant 5 : index
    %184 = memref.load %arg1[%c1_75, %c5_76] : memref<2x12xf32, #tpu.memory_space<smem>>
    %c1_77 = arith.constant 1 : index
    %c6_78 = arith.constant 6 : index
    %185 = memref.load %arg1[%c1_77, %c6_78] : memref<2x12xf32, #tpu.memory_space<smem>>
    %c1_79 = arith.constant 1 : index
    %c7_80 = arith.constant 7 : index
    %186 = memref.load %arg1[%c1_79, %c7_80] : memref<2x12xf32, #tpu.memory_space<smem>>
    %c1_81 = arith.constant 1 : index
    %c8_82 = arith.constant 8 : index
    %187 = memref.load %arg1[%c1_81, %c8_82] : memref<2x12xf32, #tpu.memory_space<smem>>
    %c1_83 = arith.constant 1 : index
    %c9_84 = arith.constant 9 : index
    %188 = memref.load %arg1[%c1_83, %c9_84] : memref<2x12xf32, #tpu.memory_space<smem>>
    %c1_85 = arith.constant 1 : index
    %c10_86 = arith.constant 10 : index
    %189 = memref.load %arg1[%c1_85, %c10_86] : memref<2x12xf32, #tpu.memory_space<smem>>
    %c1_87 = arith.constant 1 : index
    %c11_88 = arith.constant 11 : index
    %190 = memref.load %arg1[%c1_87, %c11_88] : memref<2x12xf32, #tpu.memory_space<smem>>
    %191 = vector.broadcast %179 : f32 to vector<1x1024xf32>
    %192 = arith.mulf %191, %0 : vector<1x1024xf32>
    %193 = vector.broadcast %180 : f32 to vector<1x1024xf32>
    %194 = arith.mulf %193, %1 : vector<1x1024xf32>
    %195 = arith.addf %192, %194 : vector<1x1024xf32>
    %196 = vector.broadcast %181 : f32 to vector<1x1024xf32>
    %197 = arith.mulf %196, %2 : vector<1x1024xf32>
    %198 = arith.addf %195, %197 : vector<1x1024xf32>
    %199 = vector.broadcast %182 : f32 to vector<1x1024xf32>
    %200 = arith.addf %198, %199 : vector<1x1024xf32>
    %201 = vector.broadcast %183 : f32 to vector<1x1024xf32>
    %202 = arith.mulf %201, %0 : vector<1x1024xf32>
    %203 = vector.broadcast %184 : f32 to vector<1x1024xf32>
    %204 = arith.mulf %203, %1 : vector<1x1024xf32>
    %205 = arith.addf %202, %204 : vector<1x1024xf32>
    %206 = vector.broadcast %185 : f32 to vector<1x1024xf32>
    %207 = arith.mulf %206, %2 : vector<1x1024xf32>
    %208 = arith.addf %205, %207 : vector<1x1024xf32>
    %209 = vector.broadcast %186 : f32 to vector<1x1024xf32>
    %210 = arith.addf %208, %209 : vector<1x1024xf32>
    %211 = vector.broadcast %187 : f32 to vector<1x1024xf32>
    %212 = arith.mulf %211, %0 : vector<1x1024xf32>
    %213 = vector.broadcast %188 : f32 to vector<1x1024xf32>
    %214 = arith.mulf %213, %1 : vector<1x1024xf32>
    %215 = arith.addf %212, %214 : vector<1x1024xf32>
    %216 = vector.broadcast %189 : f32 to vector<1x1024xf32>
    %217 = arith.mulf %216, %2 : vector<1x1024xf32>
    %218 = arith.addf %215, %217 : vector<1x1024xf32>
    %219 = vector.broadcast %190 : f32 to vector<1x1024xf32>
    %220 = arith.addf %218, %219 : vector<1x1024xf32>
    %221 = math.absf %220 : vector<1x1024xf32>
    %cst_89 = arith.constant 9.99999974E-5 : f32
    %222 = vector.broadcast %cst_89 : f32 to vector<1x1024xf32>
    %223 = arith.cmpf olt, %221, %222 : vector<1x1024xf32>
    %cst_90 = arith.constant 1.000000e-03 : f32
    %224 = vector.broadcast %cst_90 : f32 to vector<1x1024xf32>
    %225 = arith.select %223, %224, %220 : vector<1x1024xi1>, vector<1x1024xf32>
    %cst_91 = arith.constant 1.000000e+00 : f32
    %226 = vector.broadcast %cst_91 : f32 to vector<1x1024xf32>
    %227 = arith.divf %226, %225 : vector<1x1024xf32>
    %228 = arith.mulf %200, %227 : vector<1x1024xf32>
    %229 = arith.mulf %210, %227 : vector<1x1024xf32>
    %cst_92 = arith.constant dense<true> : vector<1x1024xi1>
    %230 = arith.xori %223, %cst_92 : vector<1x1024xi1>
    %cst_93 = arith.constant -5.000000e-01 : f32
    %231 = vector.broadcast %cst_93 : f32 to vector<1x1024xf32>
    %232 = arith.cmpf oge, %228, %231 : vector<1x1024xf32>
    %233 = arith.andi %230, %232 : vector<1x1024xi1>
    %cst_94 = arith.constant 3.150000e+01 : f32
    %234 = vector.broadcast %cst_94 : f32 to vector<1x1024xf32>
    %235 = arith.cmpf olt, %228, %234 : vector<1x1024xf32>
    %236 = arith.andi %233, %235 : vector<1x1024xi1>
    %cst_95 = arith.constant -5.000000e-01 : f32
    %237 = vector.broadcast %cst_95 : f32 to vector<1x1024xf32>
    %238 = arith.cmpf oge, %229, %237 : vector<1x1024xf32>
    %239 = arith.andi %236, %238 : vector<1x1024xi1>
    %cst_96 = arith.constant 3.150000e+01 : f32
    %240 = vector.broadcast %cst_96 : f32 to vector<1x1024xf32>
    %241 = arith.cmpf olt, %229, %240 : vector<1x1024xf32>
    %242 = arith.andi %239, %241 : vector<1x1024xi1>
    %cst_97 = arith.constant 0.000000e+00 : f32
    %cst_98 = arith.constant 3.100000e+01 : f32
    %243 = vector.broadcast %cst_97 : f32 to vector<1x1024xf32>
    %244 = arith.maximumf %243, %228 : vector<1x1024xf32>
    %245 = vector.broadcast %cst_98 : f32 to vector<1x1024xf32>
    %246 = arith.minimumf %245, %244 : vector<1x1024xf32>
    %cst_99 = arith.constant 0.000000e+00 : f32
    %cst_100 = arith.constant 3.100000e+01 : f32
    %247 = vector.broadcast %cst_99 : f32 to vector<1x1024xf32>
    %248 = arith.maximumf %247, %229 : vector<1x1024xf32>
    %249 = vector.broadcast %cst_100 : f32 to vector<1x1024xf32>
    %250 = arith.minimumf %249, %248 : vector<1x1024xf32>
    %251 = math.floor %246 : vector<1x1024xf32>
    %252 = math.floor %250 : vector<1x1024xf32>
    %253 = arith.subf %246, %251 : vector<1x1024xf32>
    %254 = arith.subf %250, %252 : vector<1x1024xf32>
    %255 = arith.fptosi %251 : vector<1x1024xf32> to vector<1x1024xi32>
    %256 = arith.fptosi %252 : vector<1x1024xf32> to vector<1x1024xi32>
    %c1_i32_101 = arith.constant 1 : i32
    %257 = vector.broadcast %c1_i32_101 : i32 to vector<1x1024xi32>
    %258 = arith.addi %255, %257 : vector<1x1024xi32>
    %c31_i32_102 = arith.constant 31 : i32
    %259 = vector.broadcast %c31_i32_102 : i32 to vector<1x1024xi32>
    %260 = arith.minsi %258, %259 : vector<1x1024xi32>
    %c1_i32_103 = arith.constant 1 : i32
    %261 = vector.broadcast %c1_i32_103 : i32 to vector<1x1024xi32>
    %262 = arith.addi %256, %261 : vector<1x1024xi32>
    %c31_i32_104 = arith.constant 31 : i32
    %263 = vector.broadcast %c31_i32_104 : i32 to vector<1x1024xi32>
    %264 = arith.minsi %262, %263 : vector<1x1024xi32>
    %265 = tpu.iota {dimensions = array<i32: 0>} : vector<32x1024xi32>
    %266 = vector.broadcast %255 : vector<1x1024xi32> to vector<32x1024xi32>
    %267 = arith.cmpi eq, %265, %266 : vector<32x1024xi32>
    %cst_105 = arith.constant 1.000000e+00 : f32
    %268 = vector.broadcast %cst_105 : f32 to vector<1x1024xf32>
    %269 = arith.subf %268, %253 : vector<1x1024xf32>
    %cst_106 = arith.constant 0.000000e+00 : f32
    %270 = vector.shape_cast %269 : vector<1x1024xf32> to vector<1x1024xf32>
    %271 = vector.broadcast %270 : vector<1x1024xf32> to vector<32x1024xf32>
    %272 = vector.broadcast %cst_106 : f32 to vector<32x1024xf32>
    %273 = arith.select %267, %271, %272 : vector<32x1024xi1>, vector<32x1024xf32>
    %274 = vector.broadcast %260 : vector<1x1024xi32> to vector<32x1024xi32>
    %275 = arith.cmpi eq, %265, %274 : vector<32x1024xi32>
    %cst_107 = arith.constant 0.000000e+00 : f32
    %276 = vector.shape_cast %253 : vector<1x1024xf32> to vector<1x1024xf32>
    %277 = vector.broadcast %276 : vector<1x1024xf32> to vector<32x1024xf32>
    %278 = vector.broadcast %cst_107 : f32 to vector<32x1024xf32>
    %279 = arith.select %275, %277, %278 : vector<32x1024xi1>, vector<32x1024xf32>
    %280 = arith.addf %273, %279 : vector<32x1024xf32>
    %281 = tpu.iota {dimensions = array<i32: 0>} : vector<32x1024xi32>
    %282 = vector.broadcast %256 : vector<1x1024xi32> to vector<32x1024xi32>
    %283 = arith.cmpi eq, %281, %282 : vector<32x1024xi32>
    %cst_108 = arith.constant 1.000000e+00 : f32
    %284 = vector.broadcast %cst_108 : f32 to vector<1x1024xf32>
    %285 = arith.subf %284, %254 : vector<1x1024xf32>
    %cst_109 = arith.constant 0.000000e+00 : f32
    %286 = vector.shape_cast %285 : vector<1x1024xf32> to vector<1x1024xf32>
    %287 = vector.broadcast %286 : vector<1x1024xf32> to vector<32x1024xf32>
    %288 = vector.broadcast %cst_109 : f32 to vector<32x1024xf32>
    %289 = arith.select %283, %287, %288 : vector<32x1024xi1>, vector<32x1024xf32>
    %290 = vector.broadcast %264 : vector<1x1024xi32> to vector<32x1024xi32>
    %291 = arith.cmpi eq, %281, %290 : vector<32x1024xi32>
    %cst_110 = arith.constant 0.000000e+00 : f32
    %292 = vector.shape_cast %254 : vector<1x1024xf32> to vector<1x1024xf32>
    %293 = vector.broadcast %292 : vector<1x1024xf32> to vector<32x1024xf32>
    %294 = vector.broadcast %cst_110 : f32 to vector<32x1024xf32>
    %295 = arith.select %291, %293, %294 : vector<32x1024xi1>, vector<32x1024xf32>
    %296 = arith.addf %289, %295 : vector<32x1024xf32>
    %c1_111 = arith.constant 1 : index
    %c0_112 = arith.constant 0 : index
    %c0_113 = arith.constant 0 : index
    %297 = vector.load %arg4[%c1_111, %c0_112, %c0_113] : memref<2x96x32xbf16, #tpu.memory_space<vmem>>, vector<1x96x32xbf16>
    %298 = vector.shape_cast %297 : vector<1x96x32xbf16> to vector<96x32xbf16>
    %c1_114 = arith.constant 1 : index
    %c0_115 = arith.constant 0 : index
    %c0_116 = arith.constant 0 : index
    %299 = vector.load %arg5[%c1_114, %c0_115, %c0_116] : memref<2x32x32xf32, #tpu.memory_space<vmem>>, vector<1x32x32xf32>
    %300 = vector.shape_cast %299 : vector<1x32x32xf32> to vector<32x32xf32>
    %301 = arith.truncf %280 : vector<32x1024xf32> to vector<32x1024xbf16>
    %cst_117 = arith.constant dense<0.000000e+00> : vector<96x1024xf32>
    %302 = tpu.matmul %298, %301, %cst_117 {dimension_numbers = #tpu.dot_dimension_numbers<[1], [0], [0], [1], [0, 0, 1, 1], [], []>} : vector<96x32xbf16>, vector<32x1024xbf16>, vector<96x1024xf32> -> vector<96x1024xf32>
    %cst_118 = arith.constant dense<0.000000e+00> : vector<32x1024xf32>
    %303 = tpu.matmul %300, %280, %cst_118 {dimension_numbers = #tpu.dot_dimension_numbers<[1], [0], [0], [1], [0, 0, 1, 1], [], []>} : vector<32x32xf32>, vector<32x1024xf32>, vector<32x1024xf32> -> vector<32x1024xf32>
    %304 = vector.extract_strided_slice %302 {offsets = [0, 0], sizes = [32, 1024], strides = [1, 1]} : vector<96x1024xf32> to vector<32x1024xf32>
    %305 = arith.mulf %304, %296 : vector<32x1024xf32>
    %cst_119 = arith.constant dense<0.000000e+00> : vector<1024xf32>
    %306 = vector.multi_reduction <add>, %305, %cst_119 [0] : vector<32x1024xf32> to vector<1024xf32>
    %307 = vector.shape_cast %306 : vector<1024xf32> to vector<1x1024xf32>
    %308 = vector.extract_strided_slice %302 {offsets = [32, 0], sizes = [32, 1024], strides = [1, 1]} : vector<96x1024xf32> to vector<32x1024xf32>
    %309 = arith.mulf %308, %296 : vector<32x1024xf32>
    %cst_120 = arith.constant dense<0.000000e+00> : vector<1024xf32>
    %310 = vector.multi_reduction <add>, %309, %cst_120 [0] : vector<32x1024xf32> to vector<1024xf32>
    %311 = vector.shape_cast %310 : vector<1024xf32> to vector<1x1024xf32>
    %312 = vector.extract_strided_slice %302 {offsets = [64, 0], sizes = [32, 1024], strides = [1, 1]} : vector<96x1024xf32> to vector<32x1024xf32>
    %313 = arith.mulf %312, %296 : vector<32x1024xf32>
    %cst_121 = arith.constant dense<0.000000e+00> : vector<1024xf32>
    %314 = vector.multi_reduction <add>, %313, %cst_121 [0] : vector<32x1024xf32> to vector<1024xf32>
    %315 = vector.shape_cast %314 : vector<1024xf32> to vector<1x1024xf32>
    %316 = tpu.concatenate %307, %311, %315 in 0 : vector<1x1024xf32>, vector<1x1024xf32>, vector<1x1024xf32> -> vector<3x1024xf32>
    %317 = arith.mulf %303, %296 : vector<32x1024xf32>
    %cst_122 = arith.constant dense<0.000000e+00> : vector<1024xf32>
    %318 = vector.multi_reduction <add>, %317, %cst_122 [0] : vector<32x1024xf32> to vector<1024xf32>
    %319 = vector.shape_cast %318 : vector<1024xf32> to vector<1x1024xf32>
    %cst_123 = arith.constant 9.99999974E-6 : f32
    %320 = vector.broadcast %cst_123 : f32 to vector<1x1024xf32>
    %321 = arith.maximumf %319, %320 : vector<1x1024xf32>
    %cst_124 = arith.constant 9.99999974E-6 : f32
    %322 = vector.broadcast %cst_124 : f32 to vector<1x1024xf32>
    %323 = arith.maximumf %225, %322 : vector<1x1024xf32>
    %c1_125 = arith.constant 1 : index
    %c0_126 = arith.constant 0 : index
    %324 = memref.load %arg2[%c1_125, %c0_126] : memref<2x2xf32, #tpu.memory_space<smem>>
    %c1_127 = arith.constant 1 : index
    %c1_128 = arith.constant 1 : index
    %325 = memref.load %arg2[%c1_127, %c1_128] : memref<2x2xf32, #tpu.memory_space<smem>>
    %cst_129 = arith.constant -1.000000e+00 : f32
    %326 = arith.divf %cst_129, %325 : f32
    %cst_130 = arith.constant -1.000000e+00 : f32
    %327 = arith.divf %cst_130, %324 : f32
    %328 = arith.subf %326, %327 : f32
    %cst_131 = arith.constant 1.000000e+00 : f32
    %329 = arith.divf %cst_131, %328 : f32
    %cst_132 = arith.constant 1.000000e+00 : f32
    %330 = vector.broadcast %cst_132 : f32 to vector<1x1024xf32>
    %331 = arith.divf %330, %323 : vector<1x1024xf32>
    %cst_133 = arith.constant 1.000000e+00 : f32
    %332 = vector.broadcast %cst_133 : f32 to vector<1x1024xf32>
    %333 = arith.divf %332, %321 : vector<1x1024xf32>
    %334 = arith.subf %331, %333 : vector<1x1024xf32>
    %335 = math.absf %334 : vector<1x1024xf32>
    %336 = vector.broadcast %329 : f32 to vector<1x1024xf32>
    %337 = arith.mulf %335, %336 : vector<1x1024xf32>
    %cst_134 = arith.constant 1.500000e+00 : f32
    %338 = vector.broadcast %cst_134 : f32 to vector<1x1024xf32>
    %339 = arith.minimumf %337, %338 : vector<1x1024xf32>
    %c0_135 = arith.constant 0 : index
    %c0_136 = arith.constant 0 : index
    %340 = vector.load %arg6[%c0_135, %c0_136] : memref<3x1024xbf16, #tpu.memory_space<vmem>>, vector<3x1024xbf16>
    %341 = arith.extf %340 : vector<3x1024xbf16> to vector<3x1024xf32>
    %342 = arith.subf %316, %341 : vector<3x1024xf32>
    %343 = math.absf %342 : vector<3x1024xf32>
    %344 = arith.extui %242 : vector<1x1024xi1> to vector<1x1024xi32>
    %345 = arith.sitofp %344 : vector<1x1024xi32> to vector<1x1024xf32>
    %346 = arith.mulf %343, %343 : vector<3x1024xf32>
    %347 = arith.mulf %339, %339 : vector<1x1024xf32>
    %348 = tpu.concatenate %343, %346, %339, %347 in 0 : vector<3x1024xf32>, vector<3x1024xf32>, vector<1x1024xf32>, vector<1x1024xf32> -> vector<8x1024xf32>
    %349 = vector.broadcast %345 : vector<1x1024xf32> to vector<8x1024xf32>
    %350 = arith.mulf %348, %349 : vector<8x1024xf32>
    %351 = arith.addf %177, %350 : vector<8x1024xf32>
    %352 = arith.addf %178, %345 : vector<1x1024xf32>
    %cst_137 = arith.constant 9.99999974E-5 : f32
    %353 = vector.broadcast %cst_137 : f32 to vector<1x1024xf32>
    %354 = arith.maximumf %352, %353 : vector<1x1024xf32>
    %cst_138 = arith.constant 1.000000e+00 : f32
    %355 = vector.broadcast %cst_138 : f32 to vector<1x1024xf32>
    %356 = arith.divf %355, %354 : vector<1x1024xf32>
    %357 = vector.broadcast %356 : vector<1x1024xf32> to vector<8x1024xf32>
    %358 = arith.mulf %351, %357 : vector<8x1024xf32>
    %359 = vector.extract_strided_slice %358 {offsets = [0, 0], sizes = [3, 1024], strides = [1, 1]} : vector<8x1024xf32> to vector<3x1024xf32>
    %360 = vector.extract_strided_slice %358 {offsets = [3, 0], sizes = [3, 1024], strides = [1, 1]} : vector<8x1024xf32> to vector<3x1024xf32>
    %361 = arith.mulf %359, %359 : vector<3x1024xf32>
    %362 = arith.subf %360, %361 : vector<3x1024xf32>
    %cst_139 = arith.constant 0.000000e+00 : f32
    %363 = vector.broadcast %cst_139 : f32 to vector<3x1024xf32>
    %364 = arith.maximumf %362, %363 : vector<3x1024xf32>
    %365 = vector.extract_strided_slice %358 {offsets = [6, 0], sizes = [1, 1024], strides = [1, 1]} : vector<8x1024xf32> to vector<1x1024xf32>
    %366 = vector.extract_strided_slice %358 {offsets = [7, 0], sizes = [1, 1024], strides = [1, 1]} : vector<8x1024xf32> to vector<1x1024xf32>
    %367 = arith.mulf %365, %365 : vector<1x1024xf32>
    %368 = arith.subf %366, %367 : vector<1x1024xf32>
    %cst_140 = arith.constant 0.000000e+00 : f32
    %369 = vector.broadcast %cst_140 : f32 to vector<1x1024xf32>
    %370 = arith.maximumf %368, %369 : vector<1x1024xf32>
    %371 = tpu.concatenate %359, %364, %365, %370 in 0 : vector<3x1024xf32>, vector<3x1024xf32>, vector<1x1024xf32>, vector<1x1024xf32> -> vector<8x1024xf32>
    %372 = arith.truncf %371 : vector<8x1024xf32> to vector<8x1024xbf16>
    %c0_141 = arith.constant 0 : index
    %c0_142 = arith.constant 0 : index
    %373 = vector.load %arg7[%c0_141, %c0_142] : memref<8x1024xbf16, #tpu.memory_space<vmem>>, vector<8x1024xbf16>
    tpu.vector_store %arg7[%c0_141, %c0_142], %372 {strides = array<i32>} : memref<8x1024xbf16, #tpu.memory_space<vmem>>, vector<8x1024xbf16>,
    return
  }
  func.func @transform_0(%arg0: i32) -> (i32, i32) {
    %c0_i32 = arith.constant 0 : i32
    %c0_i32_0 = arith.constant 0 : i32
    %c0_i32_1 = arith.constant 0 : i32
    return %c0_i32, %c0_i32_0 : i32, i32
  }
  func.func @transform_1(%arg0: i32) -> (i32, i32) {
    %c0_i32 = arith.constant 0 : i32
    %c0_i32_0 = arith.constant 0 : i32
    %c0_i32_1 = arith.constant 0 : i32
    return %c0_i32, %c0_i32_0 : i32, i32
  }
  func.func @transform_2(%arg0: i32) -> (i32, i32) {
    %c0_i32 = arith.constant 0 : i32
    %c0_i32_0 = arith.constant 0 : i32
    return %c0_i32, %arg0 : i32, i32
  }
  func.func @transform_3(%arg0: i32) -> (i32, i32, i32) {
    %c0_i32 = arith.constant 0 : i32
    %c0_i32_0 = arith.constant 0 : i32
    %c0_i32_1 = arith.constant 0 : i32
    %c0_i32_2 = arith.constant 0 : i32
    return %c0_i32, %c0_i32_0, %c0_i32_1 : i32, i32, i32
  }
  func.func @transform_4(%arg0: i32) -> (i32, i32, i32) {
    %c0_i32 = arith.constant 0 : i32
    %c0_i32_0 = arith.constant 0 : i32
    %c0_i32_1 = arith.constant 0 : i32
    %c0_i32_2 = arith.constant 0 : i32
    return %c0_i32, %c0_i32_0, %c0_i32_1 : i32, i32, i32
  }
  func.func @transform_5(%arg0: i32) -> (i32, i32) {
    %c0_i32 = arith.constant 0 : i32
    %c0_i32_0 = arith.constant 0 : i32
    return %c0_i32, %arg0 : i32, i32
  }
  func.func @transform_6(%arg0: i32) -> (i32, i32) {
    %c0_i32 = arith.constant 0 : i32
    %c0_i32_0 = arith.constant 0 : i32
    return %c0_i32, %arg0 : i32, i32
  }
}

module attributes {stable_mosaic.version = 11 : i64} {
  func.func @_pyramid_kernel(%arg0: i32, %arg1: memref<24x16xbf16, #tpu.memory_space<vmem>>, %arg2: memref<24x32xbf16, #tpu.memory_space<vmem>>, %arg3: memref<24x1xf32, #tpu.memory_space<vmem>>, %arg4: memref<4x48x24xbf16, #tpu.memory_space<vmem>>, %arg5: memref<48x1xf32, #tpu.memory_space<vmem>>, %arg6: memref<32x32xbf16, #tpu.memory_space<vmem>>, %arg7: memref<32x1xf32, #tpu.memory_space<vmem>>, %arg8: memref<32x16xbf16, #tpu.memory_space<vmem>>, %arg9: memref<32x32xbf16, #tpu.memory_space<vmem>>, %arg10: memref<32x1xf32, #tpu.memory_space<vmem>>, %arg11: memref<4x16x128xbf16, #tpu.memory_space<vmem>>, %arg12: memref<4x32x128xbf16, #tpu.memory_space<vmem>>, %arg13: memref<32x128xf32, #tpu.memory_space<vmem>>) attributes {dimension_semantics = [#tpu.dimension_semantics<parallel>], iteration_bounds = array<i64: 1>, scalar_prefetch = 0 : i64, scratch_operands = 0 : i64, tpu.core_type = #tpu.core_type<tc>, window_params = [{pipeline_mode = #tpu.pipeline_mode<synchronous>, transform_indices = @transform_0, window_bounds = array<i64: 24, 16>}, {pipeline_mode = #tpu.pipeline_mode<synchronous>, transform_indices = @transform_1, window_bounds = array<i64: 24, 32>}, {pipeline_mode = #tpu.pipeline_mode<synchronous>, transform_indices = @transform_2, window_bounds = array<i64: 24, 1>}, {pipeline_mode = #tpu.pipeline_mode<synchronous>, transform_indices = @transform_3, window_bounds = array<i64: 4, 48, 24>}, {pipeline_mode = #tpu.pipeline_mode<synchronous>, transform_indices = @transform_4, window_bounds = array<i64: 48, 1>}, {pipeline_mode = #tpu.pipeline_mode<synchronous>, transform_indices = @transform_5, window_bounds = array<i64: 32, 32>}, {pipeline_mode = #tpu.pipeline_mode<synchronous>, transform_indices = @transform_6, window_bounds = array<i64: 32, 1>}, {pipeline_mode = #tpu.pipeline_mode<synchronous>, transform_indices = @transform_7, window_bounds = array<i64: 32, 16>}, {pipeline_mode = #tpu.pipeline_mode<synchronous>, transform_indices = @transform_8, window_bounds = array<i64: 32, 32>}, {pipeline_mode = #tpu.pipeline_mode<synchronous>, transform_indices = @transform_9, window_bounds = array<i64: 32, 1>}, {transform_indices = @transform_10, window_bounds = array<i64: 4, 16, 128>}, {transform_indices = @transform_11, window_bounds = array<i64: 4, 32, 128>}, {transform_indices = @transform_12, window_bounds = array<i64: 32, 128>}]} {
    %cst = arith.constant 0.000000e+00 : f32
    %0 = vector.broadcast %cst : f32 to vector<48x128xf32>
    %c0 = arith.constant 0 : index
    %c0_0 = arith.constant 0 : index
    %1 = vector.load %arg1[%c0, %c0_0] : memref<24x16xbf16, #tpu.memory_space<vmem>>, vector<24x16xbf16>
    %c0_1 = arith.constant 0 : index
    %c0_2 = arith.constant 0 : index
    %c0_3 = arith.constant 0 : index
    %2 = vector.load %arg11[%c0_1, %c0_2, %c0_3] : memref<4x16x128xbf16, #tpu.memory_space<vmem>>, vector<1x16x128xbf16>
    %3 = vector.shape_cast %2 : vector<1x16x128xbf16> to vector<16x128xbf16>
    %cst_4 = arith.constant dense<0.000000e+00> : vector<24x128xf32>
    %4 = tpu.matmul %1, %3, %cst_4 {dimension_numbers = #tpu.dot_dimension_numbers<[1], [0], [0], [1], [0, 0, 1, 1], [], []>} : vector<24x16xbf16>, vector<16x128xbf16>, vector<24x128xf32> -> vector<24x128xf32>
    %c0_5 = arith.constant 0 : index
    %c0_6 = arith.constant 0 : index
    %5 = vector.load %arg2[%c0_5, %c0_6] : memref<24x32xbf16, #tpu.memory_space<vmem>>, vector<24x32xbf16>
    %c0_7 = arith.constant 0 : index
    %c0_8 = arith.constant 0 : index
    %c0_9 = arith.constant 0 : index
    %6 = vector.load %arg12[%c0_7, %c0_8, %c0_9] : memref<4x32x128xbf16, #tpu.memory_space<vmem>>, vector<1x32x128xbf16>
    %7 = vector.shape_cast %6 : vector<1x32x128xbf16> to vector<32x128xbf16>
    %cst_10 = arith.constant dense<0.000000e+00> : vector<24x128xf32>
    %8 = tpu.matmul %5, %7, %cst_10 {dimension_numbers = #tpu.dot_dimension_numbers<[1], [0], [0], [1], [0, 0, 1, 1], [], []>} : vector<24x32xbf16>, vector<32x128xbf16>, vector<24x128xf32> -> vector<24x128xf32>
    %9 = arith.addf %4, %8 : vector<24x128xf32>
    %c0_11 = arith.constant 0 : index
    %c0_12 = arith.constant 0 : index
    %10 = vector.load %arg3[%c0_11, %c0_12] : memref<24x1xf32, #tpu.memory_space<vmem>>, vector<24x1xf32>
    %11 = vector.broadcast %10 : vector<24x1xf32> to vector<24x128xf32>
    %12 = arith.addf %9, %11 : vector<24x128xf32>
    %cst_13 = arith.constant 0.000000e+00 : f32
    %13 = vector.broadcast %cst_13 : f32 to vector<24x128xf32>
    %14 = arith.maximumf %12, %13 : vector<24x128xf32>
    %15 = arith.truncf %14 : vector<24x128xf32> to vector<24x128xbf16>
    %c0_14 = arith.constant 0 : index
    %c0_15 = arith.constant 0 : index
    %c0_16 = arith.constant 0 : index
    %16 = vector.load %arg4[%c0_14, %c0_15, %c0_16] : memref<4x48x24xbf16, #tpu.memory_space<vmem>>, vector<1x48x24xbf16>
    %17 = vector.shape_cast %16 : vector<1x48x24xbf16> to vector<48x24xbf16>
    %cst_17 = arith.constant dense<0.000000e+00> : vector<48x128xf32>
    %18 = tpu.matmul %17, %15, %cst_17 {dimension_numbers = #tpu.dot_dimension_numbers<[1], [0], [0], [1], [0, 0, 1, 1], [], []>} : vector<48x24xbf16>, vector<24x128xbf16>, vector<48x128xf32> -> vector<48x128xf32>
    %19 = arith.addf %0, %18 : vector<48x128xf32>
    %c0_18 = arith.constant 0 : index
    %c0_19 = arith.constant 0 : index
    %20 = vector.load %arg1[%c0_18, %c0_19] : memref<24x16xbf16, #tpu.memory_space<vmem>>, vector<24x16xbf16>
    %c1 = arith.constant 1 : index
    %c0_20 = arith.constant 0 : index
    %c0_21 = arith.constant 0 : index
    %21 = vector.load %arg11[%c1, %c0_20, %c0_21] : memref<4x16x128xbf16, #tpu.memory_space<vmem>>, vector<1x16x128xbf16>
    %22 = vector.shape_cast %21 : vector<1x16x128xbf16> to vector<16x128xbf16>
    %cst_22 = arith.constant dense<0.000000e+00> : vector<24x128xf32>
    %23 = tpu.matmul %20, %22, %cst_22 {dimension_numbers = #tpu.dot_dimension_numbers<[1], [0], [0], [1], [0, 0, 1, 1], [], []>} : vector<24x16xbf16>, vector<16x128xbf16>, vector<24x128xf32> -> vector<24x128xf32>
    %c0_23 = arith.constant 0 : index
    %c0_24 = arith.constant 0 : index
    %24 = vector.load %arg2[%c0_23, %c0_24] : memref<24x32xbf16, #tpu.memory_space<vmem>>, vector<24x32xbf16>
    %c1_25 = arith.constant 1 : index
    %c0_26 = arith.constant 0 : index
    %c0_27 = arith.constant 0 : index
    %25 = vector.load %arg12[%c1_25, %c0_26, %c0_27] : memref<4x32x128xbf16, #tpu.memory_space<vmem>>, vector<1x32x128xbf16>
    %26 = vector.shape_cast %25 : vector<1x32x128xbf16> to vector<32x128xbf16>
    %cst_28 = arith.constant dense<0.000000e+00> : vector<24x128xf32>
    %27 = tpu.matmul %24, %26, %cst_28 {dimension_numbers = #tpu.dot_dimension_numbers<[1], [0], [0], [1], [0, 0, 1, 1], [], []>} : vector<24x32xbf16>, vector<32x128xbf16>, vector<24x128xf32> -> vector<24x128xf32>
    %28 = arith.addf %23, %27 : vector<24x128xf32>
    %c0_29 = arith.constant 0 : index
    %c0_30 = arith.constant 0 : index
    %29 = vector.load %arg3[%c0_29, %c0_30] : memref<24x1xf32, #tpu.memory_space<vmem>>, vector<24x1xf32>
    %30 = vector.broadcast %29 : vector<24x1xf32> to vector<24x128xf32>
    %31 = arith.addf %28, %30 : vector<24x128xf32>
    %cst_31 = arith.constant 0.000000e+00 : f32
    %32 = vector.broadcast %cst_31 : f32 to vector<24x128xf32>
    %33 = arith.maximumf %31, %32 : vector<24x128xf32>
    %34 = arith.truncf %33 : vector<24x128xf32> to vector<24x128xbf16>
    %c1_32 = arith.constant 1 : index
    %c0_33 = arith.constant 0 : index
    %c0_34 = arith.constant 0 : index
    %35 = vector.load %arg4[%c1_32, %c0_33, %c0_34] : memref<4x48x24xbf16, #tpu.memory_space<vmem>>, vector<1x48x24xbf16>
    %36 = vector.shape_cast %35 : vector<1x48x24xbf16> to vector<48x24xbf16>
    %cst_35 = arith.constant dense<0.000000e+00> : vector<48x128xf32>
    %37 = tpu.matmul %36, %34, %cst_35 {dimension_numbers = #tpu.dot_dimension_numbers<[1], [0], [0], [1], [0, 0, 1, 1], [], []>} : vector<48x24xbf16>, vector<24x128xbf16>, vector<48x128xf32> -> vector<48x128xf32>
    %38 = arith.addf %19, %37 : vector<48x128xf32>
    %c0_36 = arith.constant 0 : index
    %c0_37 = arith.constant 0 : index
    %39 = vector.load %arg1[%c0_36, %c0_37] : memref<24x16xbf16, #tpu.memory_space<vmem>>, vector<24x16xbf16>
    %c2 = arith.constant 2 : index
    %c0_38 = arith.constant 0 : index
    %c0_39 = arith.constant 0 : index
    %40 = vector.load %arg11[%c2, %c0_38, %c0_39] : memref<4x16x128xbf16, #tpu.memory_space<vmem>>, vector<1x16x128xbf16>
    %41 = vector.shape_cast %40 : vector<1x16x128xbf16> to vector<16x128xbf16>
    %cst_40 = arith.constant dense<0.000000e+00> : vector<24x128xf32>
    %42 = tpu.matmul %39, %41, %cst_40 {dimension_numbers = #tpu.dot_dimension_numbers<[1], [0], [0], [1], [0, 0, 1, 1], [], []>} : vector<24x16xbf16>, vector<16x128xbf16>, vector<24x128xf32> -> vector<24x128xf32>
    %c0_41 = arith.constant 0 : index
    %c0_42 = arith.constant 0 : index
    %43 = vector.load %arg2[%c0_41, %c0_42] : memref<24x32xbf16, #tpu.memory_space<vmem>>, vector<24x32xbf16>
    %c2_43 = arith.constant 2 : index
    %c0_44 = arith.constant 0 : index
    %c0_45 = arith.constant 0 : index
    %44 = vector.load %arg12[%c2_43, %c0_44, %c0_45] : memref<4x32x128xbf16, #tpu.memory_space<vmem>>, vector<1x32x128xbf16>
    %45 = vector.shape_cast %44 : vector<1x32x128xbf16> to vector<32x128xbf16>
    %cst_46 = arith.constant dense<0.000000e+00> : vector<24x128xf32>
    %46 = tpu.matmul %43, %45, %cst_46 {dimension_numbers = #tpu.dot_dimension_numbers<[1], [0], [0], [1], [0, 0, 1, 1], [], []>} : vector<24x32xbf16>, vector<32x128xbf16>, vector<24x128xf32> -> vector<24x128xf32>
    %47 = arith.addf %42, %46 : vector<24x128xf32>
    %c0_47 = arith.constant 0 : index
    %c0_48 = arith.constant 0 : index
    %48 = vector.load %arg3[%c0_47, %c0_48] : memref<24x1xf32, #tpu.memory_space<vmem>>, vector<24x1xf32>
    %49 = vector.broadcast %48 : vector<24x1xf32> to vector<24x128xf32>
    %50 = arith.addf %47, %49 : vector<24x128xf32>
    %cst_49 = arith.constant 0.000000e+00 : f32
    %51 = vector.broadcast %cst_49 : f32 to vector<24x128xf32>
    %52 = arith.maximumf %50, %51 : vector<24x128xf32>
    %53 = arith.truncf %52 : vector<24x128xf32> to vector<24x128xbf16>
    %c2_50 = arith.constant 2 : index
    %c0_51 = arith.constant 0 : index
    %c0_52 = arith.constant 0 : index
    %54 = vector.load %arg4[%c2_50, %c0_51, %c0_52] : memref<4x48x24xbf16, #tpu.memory_space<vmem>>, vector<1x48x24xbf16>
    %55 = vector.shape_cast %54 : vector<1x48x24xbf16> to vector<48x24xbf16>
    %cst_53 = arith.constant dense<0.000000e+00> : vector<48x128xf32>
    %56 = tpu.matmul %55, %53, %cst_53 {dimension_numbers = #tpu.dot_dimension_numbers<[1], [0], [0], [1], [0, 0, 1, 1], [], []>} : vector<48x24xbf16>, vector<24x128xbf16>, vector<48x128xf32> -> vector<48x128xf32>
    %57 = arith.addf %38, %56 : vector<48x128xf32>
    %c0_54 = arith.constant 0 : index
    %c0_55 = arith.constant 0 : index
    %58 = vector.load %arg1[%c0_54, %c0_55] : memref<24x16xbf16, #tpu.memory_space<vmem>>, vector<24x16xbf16>
    %c3 = arith.constant 3 : index
    %c0_56 = arith.constant 0 : index
    %c0_57 = arith.constant 0 : index
    %59 = vector.load %arg11[%c3, %c0_56, %c0_57] : memref<4x16x128xbf16, #tpu.memory_space<vmem>>, vector<1x16x128xbf16>
    %60 = vector.shape_cast %59 : vector<1x16x128xbf16> to vector<16x128xbf16>
    %cst_58 = arith.constant dense<0.000000e+00> : vector<24x128xf32>
    %61 = tpu.matmul %58, %60, %cst_58 {dimension_numbers = #tpu.dot_dimension_numbers<[1], [0], [0], [1], [0, 0, 1, 1], [], []>} : vector<24x16xbf16>, vector<16x128xbf16>, vector<24x128xf32> -> vector<24x128xf32>
    %c0_59 = arith.constant 0 : index
    %c0_60 = arith.constant 0 : index
    %62 = vector.load %arg2[%c0_59, %c0_60] : memref<24x32xbf16, #tpu.memory_space<vmem>>, vector<24x32xbf16>
    %c3_61 = arith.constant 3 : index
    %c0_62 = arith.constant 0 : index
    %c0_63 = arith.constant 0 : index
    %63 = vector.load %arg12[%c3_61, %c0_62, %c0_63] : memref<4x32x128xbf16, #tpu.memory_space<vmem>>, vector<1x32x128xbf16>
    %64 = vector.shape_cast %63 : vector<1x32x128xbf16> to vector<32x128xbf16>
    %cst_64 = arith.constant dense<0.000000e+00> : vector<24x128xf32>
    %65 = tpu.matmul %62, %64, %cst_64 {dimension_numbers = #tpu.dot_dimension_numbers<[1], [0], [0], [1], [0, 0, 1, 1], [], []>} : vector<24x32xbf16>, vector<32x128xbf16>, vector<24x128xf32> -> vector<24x128xf32>
    %66 = arith.addf %61, %65 : vector<24x128xf32>
    %c0_65 = arith.constant 0 : index
    %c0_66 = arith.constant 0 : index
    %67 = vector.load %arg3[%c0_65, %c0_66] : memref<24x1xf32, #tpu.memory_space<vmem>>, vector<24x1xf32>
    %68 = vector.broadcast %67 : vector<24x1xf32> to vector<24x128xf32>
    %69 = arith.addf %66, %68 : vector<24x128xf32>
    %cst_67 = arith.constant 0.000000e+00 : f32
    %70 = vector.broadcast %cst_67 : f32 to vector<24x128xf32>
    %71 = arith.maximumf %69, %70 : vector<24x128xf32>
    %72 = arith.truncf %71 : vector<24x128xf32> to vector<24x128xbf16>
    %c3_68 = arith.constant 3 : index
    %c0_69 = arith.constant 0 : index
    %c0_70 = arith.constant 0 : index
    %73 = vector.load %arg4[%c3_68, %c0_69, %c0_70] : memref<4x48x24xbf16, #tpu.memory_space<vmem>>, vector<1x48x24xbf16>
    %74 = vector.shape_cast %73 : vector<1x48x24xbf16> to vector<48x24xbf16>
    %cst_71 = arith.constant dense<0.000000e+00> : vector<48x128xf32>
    %75 = tpu.matmul %74, %72, %cst_71 {dimension_numbers = #tpu.dot_dimension_numbers<[1], [0], [0], [1], [0, 0, 1, 1], [], []>} : vector<48x24xbf16>, vector<24x128xbf16>, vector<48x128xf32> -> vector<48x128xf32>
    %76 = arith.addf %57, %75 : vector<48x128xf32>
    %c0_72 = arith.constant 0 : index
    %c0_73 = arith.constant 0 : index
    %77 = vector.load %arg5[%c0_72, %c0_73] : memref<48x1xf32, #tpu.memory_space<vmem>>, vector<48x1xf32>
    %78 = vector.broadcast %77 : vector<48x1xf32> to vector<48x128xf32>
    %79 = arith.addf %76, %78 : vector<48x128xf32>
    %80 = vector.extract_strided_slice %79 {offsets = [0, 0], sizes = [32, 128], strides = [1, 1]} : vector<48x128xf32> to vector<32x128xf32>
    %cst_74 = arith.constant 0.000000e+00 : f32
    %81 = vector.broadcast %cst_74 : f32 to vector<32x128xf32>
    %82 = arith.maximumf %80, %81 : vector<32x128xf32>
    %83 = vector.extract_strided_slice %79 {offsets = [32, 0], sizes = [16, 128], strides = [1, 1]} : vector<48x128xf32> to vector<16x128xf32>
    %84 = arith.truncf %83 : vector<16x128xf32> to vector<16x128xbf16>
    %c0_75 = arith.constant 0 : index
    %c0_76 = arith.constant 0 : index
    %85 = vector.load %arg6[%c0_75, %c0_76] : memref<32x32xbf16, #tpu.memory_space<vmem>>, vector<32x32xbf16>
    %86 = arith.truncf %82 : vector<32x128xf32> to vector<32x128xbf16>
    %cst_77 = arith.constant dense<0.000000e+00> : vector<32x128xf32>
    %87 = tpu.matmul %85, %86, %cst_77 {dimension_numbers = #tpu.dot_dimension_numbers<[1], [0], [0], [1], [0, 0, 1, 1], [], []>} : vector<32x32xbf16>, vector<32x128xbf16>, vector<32x128xf32> -> vector<32x128xf32>
    %c0_78 = arith.constant 0 : index
    %c0_79 = arith.constant 0 : index
    %88 = vector.load %arg7[%c0_78, %c0_79] : memref<32x1xf32, #tpu.memory_space<vmem>>, vector<32x1xf32>
    %89 = vector.broadcast %88 : vector<32x1xf32> to vector<32x128xf32>
    %90 = arith.addf %87, %89 : vector<32x128xf32>
    %91 = arith.addf %90, %82 : vector<32x128xf32>
    %cst_80 = arith.constant 0.000000e+00 : f32
    %92 = vector.broadcast %cst_80 : f32 to vector<32x128xf32>
    %93 = arith.maximumf %91, %92 : vector<32x128xf32>
    %94 = arith.truncf %93 : vector<32x128xf32> to vector<32x128xbf16>
    %c0_81 = arith.constant 0 : index
    %c0_82 = arith.constant 0 : index
    %95 = vector.load %arg8[%c0_81, %c0_82] : memref<32x16xbf16, #tpu.memory_space<vmem>>, vector<32x16xbf16>
    %cst_83 = arith.constant dense<0.000000e+00> : vector<32x128xf32>
    %96 = tpu.matmul %95, %84, %cst_83 {dimension_numbers = #tpu.dot_dimension_numbers<[1], [0], [0], [1], [0, 0, 1, 1], [], []>} : vector<32x16xbf16>, vector<16x128xbf16>, vector<32x128xf32> -> vector<32x128xf32>
    %c0_84 = arith.constant 0 : index
    %c0_85 = arith.constant 0 : index
    %97 = vector.load %arg9[%c0_84, %c0_85] : memref<32x32xbf16, #tpu.memory_space<vmem>>, vector<32x32xbf16>
    %cst_86 = arith.constant dense<0.000000e+00> : vector<32x128xf32>
    %98 = tpu.matmul %97, %94, %cst_86 {dimension_numbers = #tpu.dot_dimension_numbers<[1], [0], [0], [1], [0, 0, 1, 1], [], []>} : vector<32x32xbf16>, vector<32x128xbf16>, vector<32x128xf32> -> vector<32x128xf32>
    %99 = arith.addf %96, %98 : vector<32x128xf32>
    %c0_87 = arith.constant 0 : index
    %c0_88 = arith.constant 0 : index
    %100 = vector.load %arg10[%c0_87, %c0_88] : memref<32x1xf32, #tpu.memory_space<vmem>>, vector<32x1xf32>
    %101 = vector.broadcast %100 : vector<32x1xf32> to vector<32x128xf32>
    %102 = arith.addf %99, %101 : vector<32x128xf32>
    %c0_89 = arith.constant 0 : index
    %c0_90 = arith.constant 0 : index
    %103 = vector.load %arg13[%c0_89, %c0_90] : memref<32x128xf32, #tpu.memory_space<vmem>>, vector<32x128xf32>
    tpu.vector_store %arg13[%c0_89, %c0_90], %102 {strides = array<i32>} : memref<32x128xf32, #tpu.memory_space<vmem>>, vector<32x128xf32>,
    return
  }
  func.func @transform_0(%arg0: i32) -> (i32, i32) {
    %c0_i32 = arith.constant 0 : i32
    %c0_i32_0 = arith.constant 0 : i32
    %c0_i32_1 = arith.constant 0 : i32
    return %c0_i32, %c0_i32_0 : i32, i32
  }
  func.func @transform_1(%arg0: i32) -> (i32, i32) {
    %c0_i32 = arith.constant 0 : i32
    %c0_i32_0 = arith.constant 0 : i32
    %c0_i32_1 = arith.constant 0 : i32
    return %c0_i32, %c0_i32_0 : i32, i32
  }
  func.func @transform_2(%arg0: i32) -> (i32, i32) {
    %c0_i32 = arith.constant 0 : i32
    %c0_i32_0 = arith.constant 0 : i32
    %c0_i32_1 = arith.constant 0 : i32
    return %c0_i32, %c0_i32_0 : i32, i32
  }
  func.func @transform_3(%arg0: i32) -> (i32, i32, i32) {
    %c0_i32 = arith.constant 0 : i32
    %c0_i32_0 = arith.constant 0 : i32
    %c0_i32_1 = arith.constant 0 : i32
    %c0_i32_2 = arith.constant 0 : i32
    return %c0_i32, %c0_i32_0, %c0_i32_1 : i32, i32, i32
  }
  func.func @transform_4(%arg0: i32) -> (i32, i32) {
    %c0_i32 = arith.constant 0 : i32
    %c0_i32_0 = arith.constant 0 : i32
    %c0_i32_1 = arith.constant 0 : i32
    return %c0_i32, %c0_i32_0 : i32, i32
  }
  func.func @transform_5(%arg0: i32) -> (i32, i32) {
    %c0_i32 = arith.constant 0 : i32
    %c0_i32_0 = arith.constant 0 : i32
    %c0_i32_1 = arith.constant 0 : i32
    return %c0_i32, %c0_i32_0 : i32, i32
  }
  func.func @transform_6(%arg0: i32) -> (i32, i32) {
    %c0_i32 = arith.constant 0 : i32
    %c0_i32_0 = arith.constant 0 : i32
    %c0_i32_1 = arith.constant 0 : i32
    return %c0_i32, %c0_i32_0 : i32, i32
  }
  func.func @transform_7(%arg0: i32) -> (i32, i32) {
    %c0_i32 = arith.constant 0 : i32
    %c0_i32_0 = arith.constant 0 : i32
    %c0_i32_1 = arith.constant 0 : i32
    return %c0_i32, %c0_i32_0 : i32, i32
  }
  func.func @transform_8(%arg0: i32) -> (i32, i32) {
    %c0_i32 = arith.constant 0 : i32
    %c0_i32_0 = arith.constant 0 : i32
    %c0_i32_1 = arith.constant 0 : i32
    return %c0_i32, %c0_i32_0 : i32, i32
  }
  func.func @transform_9(%arg0: i32) -> (i32, i32) {
    %c0_i32 = arith.constant 0 : i32
    %c0_i32_0 = arith.constant 0 : i32
    %c0_i32_1 = arith.constant 0 : i32
    return %c0_i32, %c0_i32_0 : i32, i32
  }
  func.func @transform_10(%arg0: i32) -> (i32, i32, i32) {
    %c0_i32 = arith.constant 0 : i32
    %c0_i32_0 = arith.constant 0 : i32
    %c0_i32_1 = arith.constant 0 : i32
    return %c0_i32, %c0_i32_0, %arg0 : i32, i32, i32
  }
  func.func @transform_11(%arg0: i32) -> (i32, i32, i32) {
    %c0_i32 = arith.constant 0 : i32
    %c0_i32_0 = arith.constant 0 : i32
    %c0_i32_1 = arith.constant 0 : i32
    return %c0_i32, %c0_i32_0, %arg0 : i32, i32, i32
  }
  func.func @transform_12(%arg0: i32) -> (i32, i32) {
    %c0_i32 = arith.constant 0 : i32
    %c0_i32_0 = arith.constant 0 : i32
    return %c0_i32, %arg0 : i32, i32
  }
}

</mosaic_0001>

<llo_original>
// kernel: custom-call.22
$region0: #{custom-call.22}
  %s0 = inlined_call_operand.hbm [shape: f32[2,4,4], index: 0, kind: input, shape index: {}]
  %s1 = inlined_call_operand.vmem [shape: f32[2,4,4], index: 1, kind: output, shape index: {0}]
  %s2 = inlined_call_operand.hbm [shape: s32[2,4], index: 2, kind: output, shape index: {1}]
  %s3 = inlined_call_operand.vmem [shape: s32[2,4], index: 3, kind: output, shape index: {2}]
  %4 = xla_tuple %s1, %s2, %s3
  $region1: #{custom-call.22} parent=0
    #allocation0 [shape = 'u8[4096]{0}', space=vmem, size = 0x1000, scoped, tag = 'operand span for operand 0']
    #allocation1 [shape = 'u8[4096]{0}', space=vmem, size = 0x1000, scoped, tag = 'packed  for operand 0']
    #allocation2 [shape = 's32[2]{0}', space=sflag, size = 0x8, scoped, tag = 'scoped memory for custom-call.22']
    #allocation3 [shape = 's32[2]{0}', space=sflag, size = 0x8, scoped, tag = 'scoped memory for custom-call.22']
    #allocation4 [shape = 'u8[4096]{0}', space=vmem, size = 0x1000, scoped, tag = 'operand span for operand 1']
    #allocation5 [shape = 'u8[4096]{0}', space=vmem, size = 0x1000, scoped, tag = 'packed  for operand 1']
    #allocation6 [shape = 'u8[4096]{0}', space=vmem, size = 0x1000, scoped, tag = 'operand span for operand 2']
    #allocation7 [shape = 'u8[2048]{0}', space=vmem, size = 0x800, scoped, tag = 'packed  for operand 2']
    #allocation8 [shape = 'u8[4096]{0}', space=vmem, size = 0x1000, scoped, tag = 'operand span for operand 3']
    #allocation9 [shape = 'u8[2048]{0}', space=vmem, size = 0x800, scoped, tag = 'packed  for operand 3']
    %5 = vsyncpa [#allocation2], 0
    %s6 = scalar_lea.sflag [#allocation2], 1
    %7 = vsyncpa %s6, 0
    %8 = vsyncpa [#allocation3], 0
    %s9 = scalar_lea.sflag [#allocation3], 1
    %10 = vsyncpa %s9, 0
    loop: start=0, step=1, limit=4
    $region2: #{custom-call.22} parent=1 // loop_pre_header
      _
    $region3: #{custom-call.22} parent=1 // loop_header
      %s12 = sphi 0, %s16
      %p13 = scmp.ge.s32.totalorder %s12, 4
      %s24 = sphi 0, %s26
      %s27 = sphi 0, %s24
      %s28 = sphi 0, %s27
      %s44 = sphi 0, %s28
      %s52 = sphi 0, %s54
      %s55 = sphi 0, %s52
      %s56 = sphi 0, %s55
      %s72 = sphi 0, %s56
    $region4: #{custom-call.22} parent=1 // loop_header_branch
      %15 = sbr.rel (%p13) target = $region8
    $region5: #{custom-call.22} parent=1 // loop_body
      %s17 = ssub.s32 %s12, 1
      %s18 = ssub.s32 %s12, 2
      %s19 = sadd.s32 %s12, 1
      %s20 = sshrl.u32 %s12, 3
      %s21 = sshrl.u32 %s19, 3
      %s22 = ssub.s32 %s20, %s21
      %p23 = scmp.eq.s32.totalorder %s22, 0
      %s25 = sadd.s32 %s24, 1
      %s26 = scalar_select %p23, %s24, %s25
      %p29 = pneg %p23
      %p30 = scmp.eq.s32.totalorder %s12, 1
      %p31 = por %p29, %p30
      %p32 = scmp.ne.s32.totalorder %s24, %s27
      %p33 = scmp.eq.s32.totalorder %s12, 0
      %p34 = por %p32, %p33
      %p35 = scmp.ne.s32.totalorder %s24, %s27
      %p36 = scmp.eq.s32.totalorder %s17, 1
      %p37 = por %p35, %p36
      %p38 = scmp.ne.s32.totalorder %s27, %s28
      %p39 = scmp.eq.s32.totalorder %s17, 0
      %p40 = por %p38, %p39
      %p41 = scmp.ne.s32.totalorder %s27, %s28
      %p42 = scmp.eq.s32.totalorder %s18, 1
      %p43 = por %p41, %p42
      %p45 = scmp.ne.s32.totalorder %s28, %s44
      %p46 = scmp.eq.s32.totalorder %s18, 0
      %p47 = por %p45, %p46
      %s48 = sshrl.u32 %s12, 3
      %s49 = sshrl.u32 %s19, 3
      %s50 = ssub.s32 %s48, %s49
      %p51 = scmp.eq.s32.totalorder %s50, 0
      %s53 = sadd.s32 %s52, 1
      %s54 = scalar_select %p51, %s52, %s53
      %p57 = pneg %p51
      %p58 = scmp.eq.s32.totalorder %s12, 1
      %p59 = por %p57, %p58
      %p60 = scmp.ne.s32.totalorder %s52, %s55
      %p61 = scmp.eq.s32.totalorder %s12, 0
      %p62 = por %p60, %p61
      %p63 = scmp.ne.s32.totalorder %s52, %s55
      %p64 = scmp.eq.s32.totalorder %s17, 1
      %p65 = por %p63, %p64
      %p66 = scmp.ne.s32.totalorder %s55, %s56
      %p67 = scmp.eq.s32.totalorder %s17, 0
      %p68 = por %p66, %p67
      %p69 = scmp.ne.s32.totalorder %s55, %s56
      %p70 = scmp.eq.s32.totalorder %s18, 1
      %p71 = por %p69, %p70
      %p73 = scmp.ne.s32.totalorder %s56, %s72
      %p74 = scmp.eq.s32.totalorder %s18, 0
      %p75 = por %p73, %p74
      %p76 = scmp.le.s32.totalorder 1, %s12
      %p77 = scmp.lt.s32.totalorder %s12, 3
      %p78 = pnand %p76, %p77
      %p79 = pneg %p78
      // Predicated region
      $region9: #{custom-call.22} parent=5 // pred_check
        _
      $region10: #{custom-call.22} parent=5 // pred_check_branch
        %81 = sbr.rel (%p78) target = $region12
      $region11: #{custom-call.22} parent=5 // pred_region
        %s82 = ssub.s32 %s12, 1
      $region12: #{custom-call.22} parent=5 // pred_fallthru
        _
      %p83 = scmp.lt.s32.totalorder %s12, 2
      // Predicated region
      $region13: #{custom-call.22} parent=5 // pred_check
        %p84 = pneg %p83
      $region14: #{custom-call.22} parent=5 // pred_check_branch
        %86 = sbr.rel (%p84) target = $region16
      $region15: #{custom-call.22} parent=5 // pred_region
        %s87 = sand.u32 %s12, 1
        %s88 = scalar_lea.sflag [#allocation2], %s87
        %s89 = sand.u32 %s12, 1
        %s90 = smul.addr %s89, 4
        %s91 = scalar_lea.vmem [#allocation1], %s90
        %s93 = ssub.s32 64, 64
        %94 = vsyncadd %s88, %s93
        %s95 = smul.addr %s12, 64
        %s96 = scalar_lea.hbm %s0, %s95
        %s98 = sshll.u32 %s91, 4
        %s99 = int_to_ptr.vmem [resolvable:$true] %s98
        %101 = dma.hbm_to_vmem [thread:$0]  %s96, 64, %s99, %s88
      $region16: #{custom-call.22} parent=5 // pred_fallthru
        _
      %p102 = scmp.le.s32.totalorder 1, %s12
      %p103 = scmp.lt.s32.totalorder %s12, 3
      %p104 = pnand %p102, %p103
      %p105 = pneg %p104
      // Predicated region
      $region17: #{custom-call.22} parent=5 // pred_check
        _
      $region18: #{custom-call.22} parent=5 // pred_check_branch
        %107 = sbr.rel (%p104) target = $region20
      $region19: #{custom-call.22} parent=5 // pred_region
        #allocation10 [shape = 's32[4,128]{1,0}', space=vmem, size = 0x1000, scoped, tag = 'scratch for permutations']
        %s108 = ssub.s32 %s12, 1
        %s109 = sand.u32 %s17, 1
        %s110 = scalar_lea.sflag [#allocation2], %s109
        %s111 = sand.u32 %s17, 1
        %s112 = smul.addr %s111, 4
        %s113 = scalar_lea.vmem [#allocation1], %s112
        %114 = dma.done %s110, 64
        %s115 = sand.u32 %s17, 1
        %s116 = scalar_lea.sflag [#allocation2], %s115
        %s117 = sand.u32 %s17, 1
        %s118 = smul.addr %s117, 4
        %s119 = scalar_lea.vmem [#allocation1], %s118
        %s120 = sand.u32 %s17, 1
        %s121 = sand.u32 %s17, 1
        %s122 = smul.addr %s121, 4
        %s123 = scalar_lea.vmem [#allocation5], %s122
        %p124 = pneg %p40
        %p125 = pneg %p37
        %s126 = sand.u32 %s27, 1
        %s127 = scalar_lea.sflag [#allocation3], %s126
        %s128 = sand.u32 %s27, 1
        %s129 = smul.addr %s128, 2
        %s130 = scalar_lea.vmem [#allocation7], %s129
        %p131 = pneg %p68
        %p132 = pneg %p65
        %s133 = sand.u32 %s55, 1
        %s134 = sand.u32 %s55, 1
        %s135 = smul.addr %s134, 2
        %s136 = scalar_lea.vmem [#allocation9], %s135
        %s138 = sshllo.u32 0, 4
        %v139 = vld [vmem:[%s119] sm:%s138]
        %140 = vst [vmem:[#allocation0] sm:%s138] %v139
        %s141 = sshrl.u32 %s17, 3
        %s142 = sshrl.u32 %s17, 3
        %v143 = vld [vmem:[#allocation0] sm:$0xff]
        %144 = vst [vmem:[#allocation4] sm:$0xff] %v143
        %s145 = sand.u32 %s17, 7
        %s146 = scalar_lea.vmem [#allocation6], %s145
        %s147 = sand.u32 %s17, 7
        %s148 = scalar_lea.vmem [#allocation8], %s147
        %149 = vst [vmem:[%s146] sm:$0x1] 0
        %v150 = vlaneseq
        %v151 = vshrl.u32 %v150, 7
        %v152 = vmov %v151
        %154 = vst [vmem:[#allocation10] sm:$0xff] %v152
        loop: start=0, step=1, limit=4
        $region22: #{custom-call.22} parent=19 // loop_pre_header
          _
        $region23: #{custom-call.22} parent=19 // loop_header
          %s156 = sphi 0, %s160
          %p157 = scmp.ge.s32.totalorder %s156, 4
        $region24: #{custom-call.22} parent=19 // loop_header_branch
          %159 = sbr.rel (%p157) target = $region28
        $region25: #{custom-call.22} parent=19 // loop_body
          %v161 = vstv %s156
          %v162 = vlaneseq
          %v163 = vshrl.u32 %v162, 7
          %v164 = vmov %v163
          %v165 = vld [vmem:[#allocation4] sm:$0xff]
          %v166 = vand.u32 2147483647, %v165
          %v168 = vstv %s156
          %vm169 = vcmp.ge.s32.totalorder %v164, %v168
          %vm170 = vcmp.lt.s32.totalorder %v164, 4
          %vm171 = vmand %vm169, %vm170
          %vm172 = vcmp.lt.f32.partialorder -inf, %v166
          %vm173 = vmand %vm171, %vm172
          %v174 = vsel %vm173, %v164, %v161
          %v175 = vsel %vm173, %v166, -inf
          %v176 = vrot.slane %v175, 1
          %v177 = vrot.slane %v174, 1
          %vm178 = vcmp.ge.f32.partialorder %v176, %v175
          %v179 = vsel %vm178, %v176, %v175
          %v180 = vsel %vm178, %v177, %v174
          %v181 = vrot.slane %v176, 1
          %v182 = vrot.slane %v177, 1
          %vm183 = vcmp.ge.f32.partialorder %v181, %v179
          %v184 = vsel %vm183, %v181, %v179
          %v185 = vsel %vm183, %v182, %v180
          %v186 = vrot.slane %v181, 1
          %v187 = vrot.slane %v182, 1
          %vm188 = vcmp.ge.f32.partialorder %v186, %v184
          %v189 = vsel %vm188, %v186, %v184
          %v190 = vsel %vm188, %v187, %v185
          %v191 = vrot.slane %v186, 1
          %v192 = vrot.slane %v187, 1
          %vm193 = vcmp.ge.f32.partialorder %v191, %v189
          %v194 = vsel %vm193, %v191, %v189
          %v195 = vsel %vm193, %v192, %v190
          %v196 = vrot.slane %v191, 1
          %v197 = vrot.slane %v192, 1
          %vm198 = vcmp.ge.f32.partialorder %v196, %v194
          %v199 = vsel %vm198, %v196, %v194
          %v200 = vsel %vm198, %v197, %v195
          %v201 = vrot.slane %v196, 1
          %v202 = vrot.slane %v197, 1
          %vm203 = vcmp.ge.f32.partialorder %v201, %v199
          %v204 = vsel %vm203, %v201, %v199
          %v205 = vsel %vm203, %v202, %v200
          %v206 = vrot.slane %v201, 1
          %v207 = vrot.slane %v202, 1
          %vm208 = vcmp.ge.f32.partialorder %v206, %v204
          %v209 = vsel %vm208, %v206, %v204
          %v210 = vsel %vm208, %v207, %v205
          %s211 = ssub.s32 128, %s156
          %212 = vrot.lane.b32.xlu0 %v210, %s211
          %v213 = vpop.permute.xlu0 %212
          %s214 = vtos %v213
          %v215 = vstv %s156
          %v216 = vlaneseq
          %v217 = vand.u32 %v216, 127
          %vm218 = vcmp.eq.s32.totalorder %v217, %v215
          %v219 = vstv %s214
          %v220 = vld [vmem:[%s146] ss:$0 sm:$0xff]
          %v221 = vsel %vm218, %v219, %v220
          %222 = vst [vmem:[%s146] sm:$0x1] %v221
          %s223 = scalar_lea.vmem [#allocation4], %s156
          %s224 = scalar_lea.vmem [#allocation4], %s214
          %v225 = vld [vmem:[%s223] ss:$0 sm:$0xff]
          %v226 = vld [vmem:[%s224] ss:$0 sm:$0xff]
          %227 = vst [vmem:[%s224] sm:$0x1] %v225
          %228 = vst [vmem:[%s223] sm:$0x1] %v226
          %s229 = scalar_lea.vmem [#allocation10], %s156
          %s230 = scalar_lea.vmem [#allocation10], %s214
          %v231 = vld [vmem:[%s229] ss:$0 sm:$0xff]
          %v232 = vld [vmem:[%s230] ss:$0 sm:$0xff]
          %233 = vst [vmem:[%s230] sm:$0x1] %v231
          %234 = vst [vmem:[%s229] sm:$0x1] %v232
          %vm235 = vcmp.ne.f32.partialorder %v226, 0.0
          %vm236 = vmand %vm218, %vm235
          %v237 = vsel %vm236, %v226, 1.0
          %v238 = vlaneseq
          %v239 = vand.u32 %v238, 127
          %v240 = vstv %s156
          %vm241 = vcmp.gt.s32.totalorder %v239, %v240
          %v242 = vsel %vm241, %v226, 0.0
          %v243 = vlaneseq
          %v244 = vshrl.u32 %v243, 7
          %v245 = vmov %v244
          %v246 = vld [vmem:[#allocation4] sm:$0xff]
          %v248 = vstv %s156
          %vm249 = vcmp.gt.s32.totalorder %v245, %v248
          %v250 = vsel %vm249, %v237, 1.0
          %v251 = vrcp.pop %v250
          %v252 = vmul.f32 %v246, %v251
          %vm253 = vmand %vm249, %vm218
          %v254 = vsel %vm253, %v252, 0.0
          %255 = vadd.xlane.f32.xlu0 %v254
          %v256 = vpop.xlane.xlu0 %255
          %v257 = vmul.f32 %v256, %v242
          %v258 = vsub.f32 %v252, %v257
          %259 = vst [vmem:[#allocation4] sm:$0xff] %v258
        $region26: #{custom-call.22} parent=19 // loop_footer
          %s160 = sadd.s32 1, %s156
        $region27: #{custom-call.22} parent=19 // loop_footer_branch
          %155 = sbr.rel target = $region23
        $region28: #{custom-call.22} parent=19 // loop_exit
          _
        %v260 = vld [vmem:[#allocation10] sm:$0xff]
        %s261 = scalar_lea.vmem [#allocation10], 8
        %s262 = scalar_lea.vmem [#allocation10], 16
        %s263 = scalar_lea.vmem [#allocation10], 24
        %s264 = scalar_lea.vmem [#allocation10], 32
        %s265 = scalar_lea.vmem [#allocation10], 40
        %s266 = scalar_lea.vmem [#allocation10], 48
        %s267 = scalar_lea.vmem [#allocation10], 56
        %s268 = scalar_lea.vmem [#allocation10], 64
        %s269 = scalar_lea.vmem [#allocation10], 72
        %s270 = scalar_lea.vmem [#allocation10], 80
        %s271 = scalar_lea.vmem [#allocation10], 88
        %s272 = scalar_lea.vmem [#allocation10], 96
        %s273 = scalar_lea.vmem [#allocation10], 104
        %s274 = scalar_lea.vmem [#allocation10], 112
        %s275 = scalar_lea.vmem [#allocation10], 120
        %276 = vxpose.xlu0.b32.start [1/16] %v260, 128
        %277 = vxpose.xlu0.b32.cont [2/16] 0, 128
        %278 = vxpose.xlu0.b32.cont [3/16] 0, 128
        %279 = vxpose.xlu0.b32.cont [4/16] 0, 128
        %280 = vxpose.xlu0.b32.cont [5/16] 0, 128
        %281 = vxpose.xlu0.b32.cont [6/16] 0, 128
        %282 = vxpose.xlu0.b32.cont [7/16] 0, 128
        %283 = vxpose.xlu0.b32.cont [8/16] 0, 128
        %284 = vxpose.xlu0.b32.cont [9/16] 0, 128
        %285 = vxpose.xlu0.b32.cont [10/16] 0, 128
        %286 = vxpose.xlu0.b32.cont [11/16] 0, 128
        %287 = vxpose.xlu0.b32.cont [12/16] 0, 128
        %288 = vxpose.xlu0.b32.cont [13/16] 0, 128
        %289 = vxpose.xlu0.b32.cont [14/16] 0, 128
        %290 = vxpose.xlu0.b32.cont [15/16] 0, 128
        %291 = vxpose.xlu0.b32.end [16/16] 0, 128
        %v292 = vpop.trf.xlu0
        %v293 = vpop.trf.xlu0
        %v294 = vpop.trf.xlu0
        %v295 = vpop.trf.xlu0
        %v296 = vpop.trf.xlu0
        %v297 = vpop.trf.xlu0
        %v298 = vpop.trf.xlu0
        %v299 = vpop.trf.xlu0
        %v300 = vpop.trf.xlu0
        %v301 = vpop.trf.xlu0
        %v302 = vpop.trf.xlu0
        %v303 = vpop.trf.xlu0
        %v304 = vpop.trf.xlu0
        %v305 = vpop.trf.xlu0
        %v306 = vpop.trf.xlu0
        %v307 = vpop.trf.xlu0
        %308 = vst [vmem:[%s148] sm:$0x1] %v292
        %s310 = sshllo.u32 0, 4
        %v312 = vld [vmem:[#allocation4] sm:%s310]
        %s313 = sshllo.u32 0, 4
        %314 = vst [vmem:[%s123] sm:%s313] %v312
        %s316 = sshllo.u32 0, 2
        %v318 = vld [vmem:[#allocation6] sm:%s316]
        %s319 = sshllo.u32 0, 2
        %320 = vst [vmem:[%s130] sm:%s319] %v318
        %s322 = sshllo.u32 0, 2
        %v324 = vld [vmem:[#allocation8] sm:%s322]
        %s325 = sshllo.u32 0, 2
        %326 = vst [vmem:[%s136] sm:%s325] %v324
        %s327 = sand.u32 %s17, 1
        %s328 = sand.u32 %s17, 1
        %s329 = smul.addr %s328, 4
        %s330 = scalar_lea.vmem [#allocation5], %s329
        %s331 = sand.u32 %s27, 1
        %s332 = scalar_lea.sflag [#allocation3], %s331
        %s333 = sand.u32 %s27, 1
        %s334 = smul.addr %s333, 2
        %s335 = scalar_lea.vmem [#allocation7], %s334
        %s336 = sand.u32 %s55, 1
        %s337 = sand.u32 %s55, 1
        %s338 = smul.addr %s337, 2
        %s339 = scalar_lea.vmem [#allocation9], %s338
        %s340 = smul.addr %s17, 4
        %s341 = scalar_lea.vmem %s1, %s340
        // Predicated region
        $region29: #{custom-call.22} parent=19 // pred_check
          _
        $region30: #{custom-call.22} parent=19 // pred_check_branch
          %343 = sbr.rel (0) target = $region32
        $region31: #{custom-call.22} parent=19 // pred_region
          // Predicated region
          $region33: #{custom-call.22} parent=31 // pred_check
            _
          $region34: #{custom-call.22} parent=31 // pred_check_branch
            %345 = sbr.rel target = $region36
          $region35: #{custom-call.22} parent=31 // pred_region
            // Predicated region
            $region48: #{custom-call.22} parent=35 // pred_check
              _
            $region49: #{custom-call.22} parent=35 // pred_check_branch
              %360 = sbr.rel (0) target = $region51
            $region50: #{custom-call.22} parent=35 // pred_region
              loop: start=0, step=1, limit=1
              $region52: #{custom-call.22} parent=50 // loop_pre_header
                _
              $region53: #{custom-call.22} parent=50 // loop_header
                %s363 = sphi 0, %s367
                %p364 = scmp.ge.s32.totalorder %s363, 1
                %s368 = sphi %s330, %s330
                %s369 = sphi %s341, %s341
              $region54: #{custom-call.22} parent=50 // loop_header_branch
                %366 = sbr.rel (%p364) target = $region58
              $region55: #{custom-call.22} parent=50 // loop_body
                %v370 = vld [vmem:[%s368] sm:$0xf]
                %371 = vst [vmem:[%s369] sm:$0xf] %v370
              $region56: #{custom-call.22} parent=50 // loop_footer
                %s367 = sadd.s32 1, %s363
              $region57: #{custom-call.22} parent=50 // loop_footer_branch
                %362 = sbr.rel target = $region53
              $region58: #{custom-call.22} parent=50 // loop_exit
                _
            $region51: #{custom-call.22} parent=35 // pred_fallthru
              _
          $region36: #{custom-call.22} parent=31 // pred_fallthru
            _
          // Predicated region
          $region37: #{custom-call.22} parent=31 // pred_check
            _
          $region38: #{custom-call.22} parent=31 // pred_check_branch
            %347 = sbr.rel (0) target = $region40
          $region39: #{custom-call.22} parent=31 // pred_region
            loop: start=0, step=1, limit=1
            $region41: #{custom-call.22} parent=39 // loop_pre_header
              _
            $region42: #{custom-call.22} parent=39 // loop_header
              %s350 = sphi 0, %s354
              %p351 = scmp.ge.s32.totalorder %s350, 1
              %s355 = sphi %s330, %s330
              %s356 = sphi %s341, %s341
            $region43: #{custom-call.22} parent=39 // loop_header_branch
              %353 = sbr.rel (%p351) target = $region47
            $region44: #{custom-call.22} parent=39 // loop_body
              %v357 = vld [vmem:[%s355] sm:$0xf]
              %358 = vst [vmem:[%s356] sm:$0xf] %v357
            $region45: #{custom-call.22} parent=39 // loop_footer
              %s354 = sadd.s32 1, %s350
            $region46: #{custom-call.22} parent=39 // loop_footer_branch
              %349 = sbr.rel target = $region42
            $region47: #{custom-call.22} parent=39 // loop_exit
              _
          $region40: #{custom-call.22} parent=31 // pred_fallthru
            _
        $region32: #{custom-call.22} parent=19 // pred_fallthru
          _
        %372 = vnop
        // Predicated region
        $region59: #{custom-call.22} parent=19 // pred_check
          %p373 = pneg %p37
        $region60: #{custom-call.22} parent=19 // pred_check_branch
          %375 = sbr.rel (%p373) target = $region62
        $region61: #{custom-call.22} parent=19 // pred_region
          %s376 = sshrl.u32 %s17, 3
          %s378 = ssub.s32 32, 32
          %379 = vsyncadd %s332, %s378
          %s380 = smul.addr %s376, 32
          %s381 = scalar_lea.hbm %s2, %s380
          %s383 = sshll.u32 %s335, 4
          %s384 = int_to_ptr.vmem [resolvable:$true] %s383
          %386 = dma.vmem_to_hbm [thread:$0]  %s384, 32, %s381, %s332
        $region62: #{custom-call.22} parent=19 // pred_fallthru
          _
        // Predicated region
        $region63: #{custom-call.22} parent=19 // pred_check
          %p387 = pneg %p65
        $region64: #{custom-call.22} parent=19 // pred_check_branch
          %389 = sbr.rel (%p387) target = $region66
        $region65: #{custom-call.22} parent=19 // pred_region
          %s390 = sshrl.u32 %s17, 3
          %s391 = smul.addr %s390, 2
          %s392 = scalar_lea.vmem %s3, %s391
          // Predicated region
          $region67: #{custom-call.22} parent=65 // pred_check
            _
          $region68: #{custom-call.22} parent=65 // pred_check_branch
            %394 = sbr.rel (0) target = $region70
          $region69: #{custom-call.22} parent=65 // pred_region
            // Predicated region
            $region71: #{custom-call.22} parent=69 // pred_check
              _
            $region72: #{custom-call.22} parent=69 // pred_check_branch
              %396 = sbr.rel target = $region74
            $region73: #{custom-call.22} parent=69 // pred_region
              // Predicated region
              $region86: #{custom-call.22} parent=73 // pred_check
                _
              $region87: #{custom-call.22} parent=73 // pred_check_branch
                %411 = sbr.rel (0) target = $region89
              $region88: #{custom-call.22} parent=73 // pred_region
                loop: start=0, step=1, limit=1
                $region90: #{custom-call.22} parent=88 // loop_pre_header
                  _
                $region91: #{custom-call.22} parent=88 // loop_header
                  %s414 = sphi 0, %s418
                  %p415 = scmp.ge.s32.totalorder %s414, 1
                  %s419 = sphi %s339, %s339
                  %s420 = sphi %s392, %s392
                $region92: #{custom-call.22} parent=88 // loop_header_branch
                  %417 = sbr.rel (%p415) target = $region96
                $region93: #{custom-call.22} parent=88 // loop_body
                  %v421 = vld [vmem:[%s419] sm:$0x3]
                  %422 = vst [vmem:[%s420] sm:$0x3] %v421
                $region94: #{custom-call.22} parent=88 // loop_footer
                  %s418 = sadd.s32 1, %s414
                $region95: #{custom-call.22} parent=88 // loop_footer_branch
                  %413 = sbr.rel target = $region91
                $region96: #{custom-call.22} parent=88 // loop_exit
                  _
              $region89: #{custom-call.22} parent=73 // pred_fallthru
                _
            $region74: #{custom-call.22} parent=69 // pred_fallthru
              _
            // Predicated region
            $region75: #{custom-call.22} parent=69 // pred_check
              _
            $region76: #{custom-call.22} parent=69 // pred_check_branch
              %398 = sbr.rel (0) target = $region78
            $region77: #{custom-call.22} parent=69 // pred_region
              loop: start=0, step=1, limit=1
              $region79: #{custom-call.22} parent=77 // loop_pre_header
                _
              $region80: #{custom-call.22} parent=77 // loop_header
                %s401 = sphi 0, %s405
                %p402 = scmp.ge.s32.totalorder %s401, 1
                %s406 = sphi %s339, %s339
                %s407 = sphi %s392, %s392
              $region81: #{custom-call.22} parent=77 // loop_header_branch
                %404 = sbr.rel (%p402) target = $region85
              $region82: #{custom-call.22} parent=77 // loop_body
                %v408 = vld [vmem:[%s406] sm:$0x3]
                %409 = vst [vmem:[%s407] sm:$0x3] %v408
              $region83: #{custom-call.22} parent=77 // loop_footer
                %s405 = sadd.s32 1, %s401
              $region84: #{custom-call.22} parent=77 // loop_footer_branch
                %400 = sbr.rel target = $region80
              $region85: #{custom-call.22} parent=77 // loop_exit
                _
            $region78: #{custom-call.22} parent=69 // pred_fallthru
              _
          $region70: #{custom-call.22} parent=65 // pred_fallthru
            _
          %423 = vnop
        $region66: #{custom-call.22} parent=19 // pred_fallthru
          _
      $region20: #{custom-call.22} parent=5 // pred_fallthru
        _
      %p424 = scmp.le.s32.totalorder 2, %s12
      // Predicated region
      $region97: #{custom-call.22} parent=5 // pred_check
        %p425 = pneg %p424
      $region98: #{custom-call.22} parent=5 // pred_check_branch
        %427 = sbr.rel (%p425) target = $region100
      $region99: #{custom-call.22} parent=5 // pred_region
        %s428 = ssub.s32 %s12, 2
        %s429 = sand.u32 %s18, 1
        %s430 = sand.u32 %s18, 1
        %s431 = smul.addr %s430, 4
        %s432 = scalar_lea.vmem [#allocation5], %s431
        // Predicated region
        $region101: #{custom-call.22} parent=99 // pred_check
          %p433 = pneg %p43
        $region102: #{custom-call.22} parent=99 // pred_check_branch
          %435 = sbr.rel (%p433) target = $region104
        $region103: #{custom-call.22} parent=99 // pred_region
          %s436 = sand.u32 %s28, 1
          %s437 = scalar_lea.sflag [#allocation3], %s436
          %s438 = sand.u32 %s28, 1
          %s439 = smul.addr %s438, 2
          %s440 = scalar_lea.vmem [#allocation7], %s439
          %441 = dma.done %s437, 32
        $region104: #{custom-call.22} parent=99 // pred_fallthru
          _
        // Predicated region
        $region105: #{custom-call.22} parent=99 // pred_check
          %p442 = pneg %p71
        $region106: #{custom-call.22} parent=99 // pred_check_branch
          %444 = sbr.rel (%p442) target = $region108
        $region107: #{custom-call.22} parent=99 // pred_region
          %s445 = sand.u32 %s56, 1
          %s446 = sand.u32 %s56, 1
          %s447 = smul.addr %s446, 2
          %s448 = scalar_lea.vmem [#allocation9], %s447
        $region108: #{custom-call.22} parent=99 // pred_fallthru
          _
      $region100: #{custom-call.22} parent=5 // pred_fallthru
        _
    $region6: #{custom-call.22} parent=1 // loop_footer
      %s16 = sadd.s32 1, %s12
    $region7: #{custom-call.22} parent=1 // loop_footer_branch
      %11 = sbr.rel target = $region3
    $region8: #{custom-call.22} parent=1 // loop_exit
      _
    %449 = vsyncpa [#allocation2], 1
    %s450 = scalar_lea.sflag [#allocation2], 1
    %451 = vsyncpa %s450, 1
    %452 = vsyncpa [#allocation3], 1
    %s453 = scalar_lea.sflag [#allocation3], 1
    %454 = vsyncpa %s453, 1

// kernel: custom-call.24
$region0: #{custom-call.24}
  %s0 = inlined_call_operand.vmem [shape: f32[2,1,4,4], index: 0, kind: input, shape index: {}]
  %s1 = inlined_call_operand.vmem [shape: f32[2,1,4,4], index: 1, kind: output, shape index: {}]
  $region1: #{custom-call.24} parent=0
    #allocation0 [shape = 'u8[4096]{0}', space=vmem, size = 0x1000, scoped, tag = 'operand span for operand 0']
    #allocation1 [shape = 'u8[4096]{0}', space=vmem, size = 0x1000, scoped, tag = 'packed  for operand 0']
    #allocation2 [shape = 'u8[4096]{0}', space=vmem, size = 0x1000, scoped, tag = 'operand span for operand 1']
    #allocation3 [shape = 'u8[4096]{0}', space=vmem, size = 0x1000, scoped, tag = 'packed  for operand 1']
    loop: start=0, step=1, limit=4
    $region2: #{custom-call.24} parent=1 // loop_pre_header
      _
    $region3: #{custom-call.24} parent=1 // loop_header
      %s3 = sphi 0, %s7
      %p4 = scmp.ge.s32.totalorder %s3, 4
      %s10 = sphi 0, %s36
      %s11 = sphi 0, %s32
      %s12 = sphi 0, %s28
      %s13 = sphi 0, %s24
      %s14 = sphi 0, %s10
      %s15 = sphi 0, %s11
      %s16 = sphi 0, %s12
      %s17 = sphi 0, %s13
      %s18 = sphi 0, %s14
      %s19 = sphi 0, %s15
      %s20 = sphi 0, %s16
      %s21 = sphi 0, %s17
    $region4: #{custom-call.24} parent=1 // loop_header_branch
      %6 = sbr.rel (%p4) target = $region8
    $region5: #{custom-call.24} parent=1 // loop_body
      %s8 = ssub.s32 %s3, 1
      %s9 = ssub.s32 %s3, 2
      %s22 = sadd.s32 1, %s13
      %p23 = scmp.ge.s32.totalorder %s22, 1
      %s24 = scalar_select %p23, 0, %s22
      %s25 = sadd.s32 1, %s12
      %s26 = scalar_select %p23, %s25, %s12
      %p27 = scmp.ge.s32.totalorder %s26, 1
      %s28 = scalar_select %p27, 0, %s26
      %s29 = sadd.s32 1, %s11
      %s30 = scalar_select %p27, %s29, %s11
      %p31 = scmp.ge.s32.totalorder %s30, 1
      %s32 = scalar_select %p31, 0, %s30
      %s33 = sadd.s32 1, %s10
      %s34 = scalar_select %p31, %s33, %s10
      %p35 = scmp.ge.s32.totalorder %s34, 2
      %s36 = scalar_select %p35, 0, %s34
      %p37 = scmp.le.s32.totalorder 1, %s3
      %p38 = scmp.lt.s32.totalorder %s3, 3
      %p39 = pnand %p37, %p38
      %p40 = pneg %p39
      // Predicated region
      $region9: #{custom-call.24} parent=5 // pred_check
        _
      $region10: #{custom-call.24} parent=5 // pred_check_branch
        %42 = sbr.rel (%p39) target = $region12
      $region11: #{custom-call.24} parent=5 // pred_region
        %s43 = ssub.s32 %s3, 1
      $region12: #{custom-call.24} parent=5 // pred_fallthru
        _
      %p44 = scmp.lt.s32.totalorder %s3, 2
      // Predicated region
      $region13: #{custom-call.24} parent=5 // pred_check
        %p45 = pneg %p44
      $region14: #{custom-call.24} parent=5 // pred_check_branch
        %47 = sbr.rel (%p45) target = $region16
      $region15: #{custom-call.24} parent=5 // pred_region
        %s48 = sand.u32 %s3, 1
        %s49 = sand.u32 %s3, 1
        %s50 = smul.addr %s49, 4
        %s51 = scalar_lea.vmem [#allocation1], %s50
        %s52 = sadd.s32 %s13, %s12
        %s53 = sadd.s32 %s52, %s11
        %s54 = sadd.s32 %s53, %s10
        %s55 = smul.addr %s54, 4
        %s56 = scalar_lea.vmem %s0, %s55
        // Predicated region
        $region17: #{custom-call.24} parent=15 // pred_check
          _
        $region18: #{custom-call.24} parent=15 // pred_check_branch
          %58 = sbr.rel (0) target = $region20
        $region19: #{custom-call.24} parent=15 // pred_region
          // Predicated region
          $region21: #{custom-call.24} parent=19 // pred_check
            _
          $region22: #{custom-call.24} parent=19 // pred_check_branch
            %60 = sbr.rel target = $region24
          $region23: #{custom-call.24} parent=19 // pred_region
            // Predicated region
            $region36: #{custom-call.24} parent=23 // pred_check
              _
            $region37: #{custom-call.24} parent=23 // pred_check_branch
              %75 = sbr.rel (0) target = $region39
            $region38: #{custom-call.24} parent=23 // pred_region
              loop: start=0, step=1, limit=1
              $region40: #{custom-call.24} parent=38 // loop_pre_header
                _
              $region41: #{custom-call.24} parent=38 // loop_header
                %s78 = sphi 0, %s82
                %p79 = scmp.ge.s32.totalorder %s78, 1
                %s83 = sphi %s56, %s56
                %s84 = sphi %s51, %s51
              $region42: #{custom-call.24} parent=38 // loop_header_branch
                %81 = sbr.rel (%p79) target = $region46
              $region43: #{custom-call.24} parent=38 // loop_body
                %v85 = vld [vmem:[%s83] sm:$0xf]
                %86 = vst [vmem:[%s84] sm:$0xf] %v85
              $region44: #{custom-call.24} parent=38 // loop_footer
                %s82 = sadd.s32 1, %s78
              $region45: #{custom-call.24} parent=38 // loop_footer_branch
                %77 = sbr.rel target = $region41
              $region46: #{custom-call.24} parent=38 // loop_exit
                _
            $region39: #{custom-call.24} parent=23 // pred_fallthru
              _
          $region24: #{custom-call.24} parent=19 // pred_fallthru
            _
          // Predicated region
          $region25: #{custom-call.24} parent=19 // pred_check
            _
          $region26: #{custom-call.24} parent=19 // pred_check_branch
            %62 = sbr.rel (0) target = $region28
          $region27: #{custom-call.24} parent=19 // pred_region
            loop: start=0, step=1, limit=1
            $region29: #{custom-call.24} parent=27 // loop_pre_header
              _
            $region30: #{custom-call.24} parent=27 // loop_header
              %s65 = sphi 0, %s69
              %p66 = scmp.ge.s32.totalorder %s65, 1
              %s70 = sphi %s56, %s56
              %s71 = sphi %s51, %s51
            $region31: #{custom-call.24} parent=27 // loop_header_branch
              %68 = sbr.rel (%p66) target = $region35
            $region32: #{custom-call.24} parent=27 // loop_body
              %v72 = vld [vmem:[%s70] sm:$0xf]
              %73 = vst [vmem:[%s71] sm:$0xf] %v72
            $region33: #{custom-call.24} parent=27 // loop_footer
              %s69 = sadd.s32 1, %s65
            $region34: #{custom-call.24} parent=27 // loop_footer_branch
              %64 = sbr.rel target = $region30
            $region35: #{custom-call.24} parent=27 // loop_exit
              _
          $region28: #{custom-call.24} parent=19 // pred_fallthru
            _
        $region20: #{custom-call.24} parent=15 // pred_fallthru
          _
        %87 = vnop
      $region16: #{custom-call.24} parent=5 // pred_fallthru
        _
      %p88 = scmp.le.s32.totalorder 1, %s3
      %p89 = scmp.lt.s32.totalorder %s3, 3
      %p90 = pnand %p88, %p89
      %p91 = pneg %p90
      // Predicated region
      $region47: #{custom-call.24} parent=5 // pred_check
        _
      $region48: #{custom-call.24} parent=5 // pred_check_branch
        %93 = sbr.rel (%p90) target = $region50
      $region49: #{custom-call.24} parent=5 // pred_region
        #allocation4 [shape = 'f32[4,4]{1,0}', space=vmem, size = 0x1000, scoped, tag = 'rescaled input a']
        %s94 = ssub.s32 %s3, 1
        %s95 = sand.u32 %s8, 1
        %s96 = sand.u32 %s8, 1
        %s97 = smul.addr %s96, 4
        %s98 = scalar_lea.vmem [#allocation1], %s97
        %s99 = sand.u32 %s8, 1
        %s100 = sand.u32 %s8, 1
        %s101 = smul.addr %s100, 4
        %s102 = scalar_lea.vmem [#allocation1], %s101
        %s103 = sand.u32 %s8, 1
        %s104 = sand.u32 %s8, 1
        %s105 = smul.addr %s104, 4
        %s106 = scalar_lea.vmem [#allocation3], %s105
        %s108 = sshllo.u32 0, 4
        %v109 = vld [vmem:[%s102] sm:%s108]
        %110 = vst [vmem:[#allocation0] sm:%s108] %v109
        %v111 = vlaneseq
        %v112 = vand.u32 %v111, 127
        %vm113 = vcmp.lt.s32.totalorder %v112, 4
        %v114 = vlaneseq
        %v115 = vshrl.u32 %v114, 7
        %vm117 = vcmp.eq.s32.totalorder %v115, %v112
        %v118 = vld [vmem:[#allocation0] sm:$0xff]
        %v119 = vsel %vm117, %v118, 0.0
        %120 = vadd.xlane.f32.xlu0 %v119
        %v121 = vpop.xlane.xlu0 %120
        %vm122 = vcmp.ge.s32.totalorder %v115, %v112
        %vm123 = vmand %vm122, %vm113
        %v124 = vsel %vm123, %v118, 0.0
        %v125 = vrcp.pop %v121
        %v126 = vmul.f32 %v124, %v125
        %127 = vst [vmem:[#allocation4] sm:$0xff] %v126
        %v128 = vlaneseq
        %v129 = vand.u32 %v128, 127
        %v130 = vlaneseq
        %v131 = vshrl.u32 %v130, 7
        %vm133 = vcmp.eq.s32.totalorder %v129, %v131
        %v134 = vlaneseq
        %v135 = vand.u32 %v134, 127
        %vm136 = vcmp.eq.s32.totalorder %v135, 0
        %v137 = vsel %vm136, 1.0, -1.0
        %v138 = vsel %vm133, %v137, 0.0
        %s139 = scalar_lea.vmem [#allocation4], 1
        %v140 = vld [vmem:[%s139] ss:$0 sm:$0xff]
        %v141 = vxor.u32 %v140, 2147483648
        %v142 = vlaneseq
        %v143 = vand.u32 %v142, 127
        %vm144 = vcmp.eq.s32.totalorder %v143, 1
        %v145 = vmul.f32 %v141, %v138
        %146 = vadd.xlane.f32.xlu0 %v145
        %v147 = vpop.xlane.xlu0 %146
        %v148 = vsel %vm144, %v147, %v138
        %s149 = scalar_lea.vmem [#allocation4], 2
        %v150 = vld [vmem:[%s149] ss:$0 sm:$0xff]
        %v151 = vxor.u32 %v150, 2147483648
        %v152 = vlaneseq
        %v153 = vand.u32 %v152, 127
        %vm154 = vcmp.eq.s32.totalorder %v153, 2
        %v155 = vmul.f32 %v151, %v148
        %156 = vadd.xlane.f32.xlu0 %v155
        %v157 = vpop.xlane.xlu0 %156
        %v158 = vsel %vm154, %v157, %v148
        %s159 = scalar_lea.vmem [#allocation4], 3
        %v160 = vld [vmem:[%s159] ss:$0 sm:$0xff]
        %v161 = vxor.u32 %v160, 2147483648
        %v162 = vlaneseq
        %v163 = vand.u32 %v162, 127
        %vm164 = vcmp.eq.s32.totalorder %v163, 3
        %v165 = vmul.f32 %v161, %v158
        %166 = vadd.xlane.f32.xlu0 %v165
        %v167 = vpop.xlane.xlu0 %166
        %v168 = vsel %vm164, %v167, %v158
        %v169 = vrcp.pop %v121
        %v170 = vmul.f32 %v168, %v169
        %vm171 = vweird.f32 %v121
        %v172 = vsel %vm171, %v168, %v170
        %173 = vst [vmem:[#allocation2] sm:$0xff] %v172
        %s175 = sshllo.u32 0, 4
        %v177 = vld [vmem:[#allocation2] sm:%s175]
        %s178 = sshllo.u32 0, 4
        %179 = vst [vmem:[%s106] sm:%s178] %v177
        %s180 = sand.u32 %s8, 1
        %s181 = sand.u32 %s8, 1
        %s182 = smul.addr %s181, 4
        %s183 = scalar_lea.vmem [#allocation3], %s182
        %s184 = sadd.s32 %s17, %s16
        %s185 = sadd.s32 %s184, %s15
        %s186 = sadd.s32 %s185, %s14
        %s187 = smul.addr %s186, 4
        %s188 = scalar_lea.vmem %s1, %s187
        // Predicated region
        $region51: #{custom-call.24} parent=49 // pred_check
          _
        $region52: #{custom-call.24} parent=49 // pred_check_branch
          %190 = sbr.rel (0) target = $region54
        $region53: #{custom-call.24} parent=49 // pred_region
          // Predicated region
          $region55: #{custom-call.24} parent=53 // pred_check
            _
          $region56: #{custom-call.24} parent=53 // pred_check_branch
            %192 = sbr.rel target = $region58
          $region57: #{custom-call.24} parent=53 // pred_region
            // Predicated region
            $region70: #{custom-call.24} parent=57 // pred_check
              _
            $region71: #{custom-call.24} parent=57 // pred_check_branch
              %207 = sbr.rel (0) target = $region73
            $region72: #{custom-call.24} parent=57 // pred_region
              loop: start=0, step=1, limit=1
              $region74: #{custom-call.24} parent=72 // loop_pre_header
                _
              $region75: #{custom-call.24} parent=72 // loop_header
                %s210 = sphi 0, %s214
                %p211 = scmp.ge.s32.totalorder %s210, 1
                %s215 = sphi %s183, %s183
                %s216 = sphi %s188, %s188
              $region76: #{custom-call.24} parent=72 // loop_header_branch
                %213 = sbr.rel (%p211) target = $region80
              $region77: #{custom-call.24} parent=72 // loop_body
                %v217 = vld [vmem:[%s215] sm:$0xf]
                %218 = vst [vmem:[%s216] sm:$0xf] %v217
              $region78: #{custom-call.24} parent=72 // loop_footer
                %s214 = sadd.s32 1, %s210
              $region79: #{custom-call.24} parent=72 // loop_footer_branch
                %209 = sbr.rel target = $region75
              $region80: #{custom-call.24} parent=72 // loop_exit
                _
            $region73: #{custom-call.24} parent=57 // pred_fallthru
              _
          $region58: #{custom-call.24} parent=53 // pred_fallthru
            _
          // Predicated region
          $region59: #{custom-call.24} parent=53 // pred_check
            _
          $region60: #{custom-call.24} parent=53 // pred_check_branch
            %194 = sbr.rel (0) target = $region62
          $region61: #{custom-call.24} parent=53 // pred_region
            loop: start=0, step=1, limit=1
            $region63: #{custom-call.24} parent=61 // loop_pre_header
              _
            $region64: #{custom-call.24} parent=61 // loop_header
              %s197 = sphi 0, %s201
              %p198 = scmp.ge.s32.totalorder %s197, 1
              %s202 = sphi %s183, %s183
              %s203 = sphi %s188, %s188
            $region65: #{custom-call.24} parent=61 // loop_header_branch
              %200 = sbr.rel (%p198) target = $region69
            $region66: #{custom-call.24} parent=61 // loop_body
              %v204 = vld [vmem:[%s202] sm:$0xf]
              %205 = vst [vmem:[%s203] sm:$0xf] %v204
            $region67: #{custom-call.24} parent=61 // loop_footer
              %s201 = sadd.s32 1, %s197
            $region68: #{custom-call.24} parent=61 // loop_footer_branch
              %196 = sbr.rel target = $region64
            $region69: #{custom-call.24} parent=61 // loop_exit
              _
          $region62: #{custom-call.24} parent=53 // pred_fallthru
            _
        $region54: #{custom-call.24} parent=49 // pred_fallthru
          _
        %219 = vnop
      $region50: #{custom-call.24} parent=5 // pred_fallthru
        _
      %p220 = scmp.le.s32.totalorder 2, %s3
      // Predicated region
      $region81: #{custom-call.24} parent=5 // pred_check
        %p221 = pneg %p220
      $region82: #{custom-call.24} parent=5 // pred_check_branch
        %223 = sbr.rel (%p221) target = $region84
      $region83: #{custom-call.24} parent=5 // pred_region
        %s224 = ssub.s32 %s3, 2
        %s225 = sand.u32 %s9, 1
        %s226 = sand.u32 %s9, 1
        %s227 = smul.addr %s226, 4
        %s228 = scalar_lea.vmem [#allocation3], %s227
      $region84: #{custom-call.24} parent=5 // pred_fallthru
        _
    $region6: #{custom-call.24} parent=1 // loop_footer
      %s7 = sadd.s32 1, %s3
    $region7: #{custom-call.24} parent=1 // loop_footer_branch
      %2 = sbr.rel target = $region3
    $region8: #{custom-call.24} parent=1 // loop_exit
      _

// kernel: custom-call.23
$region0: #{custom-call.23}
  %s0 = inlined_call_operand.vmem [shape: f32[2,1,4,4], index: 0, kind: input, shape index: {}]
  %s1 = inlined_call_operand.vmem [shape: f32[2,1,4,4], index: 1, kind: output, shape index: {}]
  $region1: #{custom-call.23} parent=0
    #allocation0 [shape = 'u8[4096]{0}', space=vmem, size = 0x1000, scoped, tag = 'operand span for operand 0']
    #allocation1 [shape = 'u8[4096]{0}', space=vmem, size = 0x1000, scoped, tag = 'packed  for operand 0']
    #allocation2 [shape = 'u8[4096]{0}', space=vmem, size = 0x1000, scoped, tag = 'operand span for operand 1']
    #allocation3 [shape = 'u8[4096]{0}', space=vmem, size = 0x1000, scoped, tag = 'packed  for operand 1']
    loop: start=0, step=1, limit=4
    $region2: #{custom-call.23} parent=1 // loop_pre_header
      _
    $region3: #{custom-call.23} parent=1 // loop_header
      %s3 = sphi 0, %s7
      %p4 = scmp.ge.s32.totalorder %s3, 4
      %s10 = sphi 0, %s36
      %s11 = sphi 0, %s32
      %s12 = sphi 0, %s28
      %s13 = sphi 0, %s24
      %s14 = sphi 0, %s10
      %s15 = sphi 0, %s11
      %s16 = sphi 0, %s12
      %s17 = sphi 0, %s13
      %s18 = sphi 0, %s14
      %s19 = sphi 0, %s15
      %s20 = sphi 0, %s16
      %s21 = sphi 0, %s17
    $region4: #{custom-call.23} parent=1 // loop_header_branch
      %6 = sbr.rel (%p4) target = $region8
    $region5: #{custom-call.23} parent=1 // loop_body
      %s8 = ssub.s32 %s3, 1
      %s9 = ssub.s32 %s3, 2
      %s22 = sadd.s32 1, %s13
      %p23 = scmp.ge.s32.totalorder %s22, 1
      %s24 = scalar_select %p23, 0, %s22
      %s25 = sadd.s32 1, %s12
      %s26 = scalar_select %p23, %s25, %s12
      %p27 = scmp.ge.s32.totalorder %s26, 1
      %s28 = scalar_select %p27, 0, %s26
      %s29 = sadd.s32 1, %s11
      %s30 = scalar_select %p27, %s29, %s11
      %p31 = scmp.ge.s32.totalorder %s30, 1
      %s32 = scalar_select %p31, 0, %s30
      %s33 = sadd.s32 1, %s10
      %s34 = scalar_select %p31, %s33, %s10
      %p35 = scmp.ge.s32.totalorder %s34, 2
      %s36 = scalar_select %p35, 0, %s34
      %p37 = scmp.le.s32.totalorder 1, %s3
      %p38 = scmp.lt.s32.totalorder %s3, 3
      %p39 = pnand %p37, %p38
      %p40 = pneg %p39
      // Predicated region
      $region9: #{custom-call.23} parent=5 // pred_check
        _
      $region10: #{custom-call.23} parent=5 // pred_check_branch
        %42 = sbr.rel (%p39) target = $region12
      $region11: #{custom-call.23} parent=5 // pred_region
        %s43 = ssub.s32 %s3, 1
      $region12: #{custom-call.23} parent=5 // pred_fallthru
        _
      %p44 = scmp.lt.s32.totalorder %s3, 2
      // Predicated region
      $region13: #{custom-call.23} parent=5 // pred_check
        %p45 = pneg %p44
      $region14: #{custom-call.23} parent=5 // pred_check_branch
        %47 = sbr.rel (%p45) target = $region16
      $region15: #{custom-call.23} parent=5 // pred_region
        %s48 = sand.u32 %s3, 1
        %s49 = sand.u32 %s3, 1
        %s50 = smul.addr %s49, 4
        %s51 = scalar_lea.vmem [#allocation1], %s50
        %s52 = sadd.s32 %s13, %s12
        %s53 = sadd.s32 %s52, %s11
        %s54 = sadd.s32 %s53, %s10
        %s55 = smul.addr %s54, 4
        %s56 = scalar_lea.vmem %s0, %s55
        // Predicated region
        $region17: #{custom-call.23} parent=15 // pred_check
          _
        $region18: #{custom-call.23} parent=15 // pred_check_branch
          %58 = sbr.rel (0) target = $region20
        $region19: #{custom-call.23} parent=15 // pred_region
          // Predicated region
          $region21: #{custom-call.23} parent=19 // pred_check
            _
          $region22: #{custom-call.23} parent=19 // pred_check_branch
            %60 = sbr.rel target = $region24
          $region23: #{custom-call.23} parent=19 // pred_region
            // Predicated region
            $region36: #{custom-call.23} parent=23 // pred_check
              _
            $region37: #{custom-call.23} parent=23 // pred_check_branch
              %75 = sbr.rel (0) target = $region39
            $region38: #{custom-call.23} parent=23 // pred_region
              loop: start=0, step=1, limit=1
              $region40: #{custom-call.23} parent=38 // loop_pre_header
                _
              $region41: #{custom-call.23} parent=38 // loop_header
                %s78 = sphi 0, %s82
                %p79 = scmp.ge.s32.totalorder %s78, 1
                %s83 = sphi %s56, %s56
                %s84 = sphi %s51, %s51
              $region42: #{custom-call.23} parent=38 // loop_header_branch
                %81 = sbr.rel (%p79) target = $region46
              $region43: #{custom-call.23} parent=38 // loop_body
                %v85 = vld [vmem:[%s83] sm:$0xf]
                %86 = vst [vmem:[%s84] sm:$0xf] %v85
              $region44: #{custom-call.23} parent=38 // loop_footer
                %s82 = sadd.s32 1, %s78
              $region45: #{custom-call.23} parent=38 // loop_footer_branch
                %77 = sbr.rel target = $region41
              $region46: #{custom-call.23} parent=38 // loop_exit
                _
            $region39: #{custom-call.23} parent=23 // pred_fallthru
              _
          $region24: #{custom-call.23} parent=19 // pred_fallthru
            _
          // Predicated region
          $region25: #{custom-call.23} parent=19 // pred_check
            _
          $region26: #{custom-call.23} parent=19 // pred_check_branch
            %62 = sbr.rel (0) target = $region28
          $region27: #{custom-call.23} parent=19 // pred_region
            loop: start=0, step=1, limit=1
            $region29: #{custom-call.23} parent=27 // loop_pre_header
              _
            $region30: #{custom-call.23} parent=27 // loop_header
              %s65 = sphi 0, %s69
              %p66 = scmp.ge.s32.totalorder %s65, 1
              %s70 = sphi %s56, %s56
              %s71 = sphi %s51, %s51
            $region31: #{custom-call.23} parent=27 // loop_header_branch
              %68 = sbr.rel (%p66) target = $region35
            $region32: #{custom-call.23} parent=27 // loop_body
              %v72 = vld [vmem:[%s70] sm:$0xf]
              %73 = vst [vmem:[%s71] sm:$0xf] %v72
            $region33: #{custom-call.23} parent=27 // loop_footer
              %s69 = sadd.s32 1, %s65
            $region34: #{custom-call.23} parent=27 // loop_footer_branch
              %64 = sbr.rel target = $region30
            $region35: #{custom-call.23} parent=27 // loop_exit
              _
          $region28: #{custom-call.23} parent=19 // pred_fallthru
            _
        $region20: #{custom-call.23} parent=15 // pred_fallthru
          _
        %87 = vnop
      $region16: #{custom-call.23} parent=5 // pred_fallthru
        _
      %p88 = scmp.le.s32.totalorder 1, %s3
      %p89 = scmp.lt.s32.totalorder %s3, 3
      %p90 = pnand %p88, %p89
      %p91 = pneg %p90
      // Predicated region
      $region47: #{custom-call.23} parent=5 // pred_check
        _
      $region48: #{custom-call.23} parent=5 // pred_check_branch
        %93 = sbr.rel (%p90) target = $region50
      $region49: #{custom-call.23} parent=5 // pred_region
        #allocation4 [shape = 'f32[4,4]{1,0}', space=vmem, size = 0x1000, scoped, tag = 'rescaled input a']
        %s94 = ssub.s32 %s3, 1
        %s95 = sand.u32 %s8, 1
        %s96 = sand.u32 %s8, 1
        %s97 = smul.addr %s96, 4
        %s98 = scalar_lea.vmem [#allocation1], %s97
        %s99 = sand.u32 %s8, 1
        %s100 = sand.u32 %s8, 1
        %s101 = smul.addr %s100, 4
        %s102 = scalar_lea.vmem [#allocation1], %s101
        %s103 = sand.u32 %s8, 1
        %s104 = sand.u32 %s8, 1
        %s105 = smul.addr %s104, 4
        %s106 = scalar_lea.vmem [#allocation3], %s105
        %s108 = sshllo.u32 0, 4
        %v109 = vld [vmem:[%s102] sm:%s108]
        %110 = vst [vmem:[#allocation0] sm:%s108] %v109
        %v111 = vlaneseq
        %v112 = vand.u32 %v111, 127
        %vm113 = vcmp.lt.s32.totalorder %v112, 4
        %v114 = vlaneseq
        %v115 = vshrl.u32 %v114, 7
        %vm117 = vcmp.eq.s32.totalorder %v115, %v112
        %v118 = vld [vmem:[#allocation0] sm:$0xff]
        %v119 = vsel %vm117, %v118, 0.0
        %120 = vadd.xlane.f32.xlu0 %v119
        %v121 = vpop.xlane.xlu0 %120
        %vm122 = vcmp.le.s32.totalorder %v115, %v112
        %vm123 = vmand %vm122, %vm113
        %v124 = vsel %vm123, %v118, 0.0
        %v125 = vrcp.pop %v121
        %v126 = vmul.f32 %v124, %v125
        %127 = vst [vmem:[#allocation4] sm:$0xff] %v126
        %v128 = vlaneseq
        %v129 = vand.u32 %v128, 127
        %v130 = vlaneseq
        %v131 = vshrl.u32 %v130, 7
        %vm133 = vcmp.eq.s32.totalorder %v129, %v131
        %v134 = vlaneseq
        %v135 = vand.u32 %v134, 127
        %vm136 = vcmp.eq.s32.totalorder %v135, 3
        %v137 = vsel %vm136, 1.0, -1.0
        %v138 = vsel %vm133, %v137, 0.0
        %s139 = scalar_lea.vmem [#allocation4], 2
        %v140 = vld [vmem:[%s139] ss:$0 sm:$0xff]
        %v141 = vxor.u32 %v140, 2147483648
        %v142 = vlaneseq
        %v143 = vand.u32 %v142, 127
        %vm144 = vcmp.eq.s32.totalorder %v143, 2
        %v145 = vmul.f32 %v141, %v138
        %146 = vadd.xlane.f32.xlu0 %v145
        %v147 = vpop.xlane.xlu0 %146
        %v148 = vsel %vm144, %v147, %v138
        %s149 = scalar_lea.vmem [#allocation4], 1
        %v150 = vld [vmem:[%s149] ss:$0 sm:$0xff]
        %v151 = vxor.u32 %v150, 2147483648
        %v152 = vlaneseq
        %v153 = vand.u32 %v152, 127
        %vm154 = vcmp.eq.s32.totalorder %v153, 1
        %v155 = vmul.f32 %v151, %v148
        %156 = vadd.xlane.f32.xlu0 %v155
        %v157 = vpop.xlane.xlu0 %156
        %v158 = vsel %vm154, %v157, %v148
        %v159 = vld [vmem:[#allocation4] ss:$0 sm:$0xff]
        %v160 = vxor.u32 %v159, 2147483648
        %v161 = vlaneseq
        %v162 = vand.u32 %v161, 127
        %vm163 = vcmp.eq.s32.totalorder %v162, 0
        %v164 = vmul.f32 %v160, %v158
        %165 = vadd.xlane.f32.xlu0 %v164
        %v166 = vpop.xlane.xlu0 %165
        %v167 = vsel %vm163, %v166, %v158
        %v168 = vrcp.pop %v121
        %v169 = vmul.f32 %v167, %v168
        %vm170 = vweird.f32 %v121
        %v171 = vsel %vm170, %v167, %v169
        %172 = vst [vmem:[#allocation2] sm:$0xff] %v171
        %s174 = sshllo.u32 0, 4
        %v176 = vld [vmem:[#allocation2] sm:%s174]
        %s177 = sshllo.u32 0, 4
        %178 = vst [vmem:[%s106] sm:%s177] %v176
        %s179 = sand.u32 %s8, 1
        %s180 = sand.u32 %s8, 1
        %s181 = smul.addr %s180, 4
        %s182 = scalar_lea.vmem [#allocation3], %s181
        %s183 = sadd.s32 %s17, %s16
        %s184 = sadd.s32 %s183, %s15
        %s185 = sadd.s32 %s184, %s14
        %s186 = smul.addr %s185, 4
        %s187 = scalar_lea.vmem %s1, %s186
        // Predicated region
        $region51: #{custom-call.23} parent=49 // pred_check
          _
        $region52: #{custom-call.23} parent=49 // pred_check_branch
          %189 = sbr.rel (0) target = $region54
        $region53: #{custom-call.23} parent=49 // pred_region
          // Predicated region
          $region55: #{custom-call.23} parent=53 // pred_check
            _
          $region56: #{custom-call.23} parent=53 // pred_check_branch
            %191 = sbr.rel target = $region58
          $region57: #{custom-call.23} parent=53 // pred_region
            // Predicated region
            $region70: #{custom-call.23} parent=57 // pred_check
              _
            $region71: #{custom-call.23} parent=57 // pred_check_branch
              %206 = sbr.rel (0) target = $region73
            $region72: #{custom-call.23} parent=57 // pred_region
              loop: start=0, step=1, limit=1
              $region74: #{custom-call.23} parent=72 // loop_pre_header
                _
              $region75: #{custom-call.23} parent=72 // loop_header
                %s209 = sphi 0, %s213
                %p210 = scmp.ge.s32.totalorder %s209, 1
                %s214 = sphi %s182, %s182
                %s215 = sphi %s187, %s187
              $region76: #{custom-call.23} parent=72 // loop_header_branch
                %212 = sbr.rel (%p210) target = $region80
              $region77: #{custom-call.23} parent=72 // loop_body
                %v216 = vld [vmem:[%s214] sm:$0xf]
                %217 = vst [vmem:[%s215] sm:$0xf] %v216
              $region78: #{custom-call.23} parent=72 // loop_footer
                %s213 = sadd.s32 1, %s209
              $region79: #{custom-call.23} parent=72 // loop_footer_branch
                %208 = sbr.rel target = $region75
              $region80: #{custom-call.23} parent=72 // loop_exit
                _
            $region73: #{custom-call.23} parent=57 // pred_fallthru
              _
          $region58: #{custom-call.23} parent=53 // pred_fallthru
            _
          // Predicated region
          $region59: #{custom-call.23} parent=53 // pred_check
            _
          $region60: #{custom-call.23} parent=53 // pred_check_branch
            %193 = sbr.rel (0) target = $region62
          $region61: #{custom-call.23} parent=53 // pred_region
            loop: start=0, step=1, limit=1
            $region63: #{custom-call.23} parent=61 // loop_pre_header
              _
            $region64: #{custom-call.23} parent=61 // loop_header
              %s196 = sphi 0, %s200
              %p197 = scmp.ge.s32.totalorder %s196, 1
              %s201 = sphi %s182, %s182
              %s202 = sphi %s187, %s187
            $region65: #{custom-call.23} parent=61 // loop_header_branch
              %199 = sbr.rel (%p197) target = $region69
            $region66: #{custom-call.23} parent=61 // loop_body
              %v203 = vld [vmem:[%s201] sm:$0xf]
              %204 = vst [vmem:[%s202] sm:$0xf] %v203
            $region67: #{custom-call.23} parent=61 // loop_footer
              %s200 = sadd.s32 1, %s196
            $region68: #{custom-call.23} parent=61 // loop_footer_branch
              %195 = sbr.rel target = $region64
            $region69: #{custom-call.23} parent=61 // loop_exit
              _
          $region62: #{custom-call.23} parent=53 // pred_fallthru
            _
        $region54: #{custom-call.23} parent=49 // pred_fallthru
          _
        %218 = vnop
      $region50: #{custom-call.23} parent=5 // pred_fallthru
        _
      %p219 = scmp.le.s32.totalorder 2, %s3
      // Predicated region
      $region81: #{custom-call.23} parent=5 // pred_check
        %p220 = pneg %p219
      $region82: #{custom-call.23} parent=5 // pred_check_branch
        %222 = sbr.rel (%p220) target = $region84
      $region83: #{custom-call.23} parent=5 // pred_region
        %s223 = ssub.s32 %s3, 2
        %s224 = sand.u32 %s9, 1
        %s225 = sand.u32 %s9, 1
        %s226 = smul.addr %s225, 4
        %s227 = scalar_lea.vmem [#allocation3], %s226
      $region84: #{custom-call.23} parent=5 // pred_fallthru
        _
    $region6: #{custom-call.23} parent=1 // loop_footer
      %s7 = sadd.s32 1, %s3
    $region7: #{custom-call.23} parent=1 // loop_footer_branch
      %2 = sbr.rel target = $region3
    $region8: #{custom-call.23} parent=1 // loop_exit
      _

// kernel: neg.4
$region0: #{neg.4}
  #allocation0 [shape = 's32[1]{0}', space=sflag, size = 0x4, scoped, tag = 'scoped memory for neg.4']
  %s0 = inlined_call_operand.vmem [shape: f32[2,3], index: 0, kind: input, shape index: {}]
  %s1 = inlined_call_operand.vmem [shape: f32[2,3], index: 1, kind: output, shape index: {}]
  %v2 = vld [vmem:[%s0] sm:$0x3]
  %3 = xla_tuple %v2
  %4 = xla_tuple %3
  %v5 = vxor.u32 %v2, 2147483648
  %6 = xla_tuple %v5
  %7 = vst [vmem:[%s1] sm:$0x3] %v5

// kernel: custom-call.25
$region0: #{custom-call.25}
  %s0 = inlined_call_operand.vmem [shape: f32[2,3,3], index: 0, kind: input, shape index: {}]
  %s1 = inlined_call_operand.vmem [shape: f32[2,3,3], index: 1, kind: output, shape index: {0}]
  %s2 = inlined_call_operand.hbm [shape: s32[2,3], index: 2, kind: output, shape index: {1}]
  %s3 = inlined_call_operand.vmem [shape: s32[2,3], index: 3, kind: output, shape index: {2}]
  %4 = xla_tuple %s1, %s2, %s3
  $region1: #{custom-call.25} parent=0
    #allocation0 [shape = 'u8[4096]{0}', space=vmem, size = 0x1000, scoped, tag = 'operand span for operand 0']
    #allocation1 [shape = 'u8[4096]{0}', space=vmem, size = 0x1000, scoped, tag = 'packed  for operand 0']
    #allocation2 [shape = 'u8[4096]{0}', space=vmem, size = 0x1000, scoped, tag = 'operand span for operand 1']
    #allocation3 [shape = 'u8[4096]{0}', space=vmem, size = 0x1000, scoped, tag = 'packed  for operand 1']
    #allocation4 [shape = 'u8[4096]{0}', space=vmem, size = 0x1000, scoped, tag = 'operand span for operand 2']
    #allocation5 [shape = 'u8[2048]{0}', space=vmem, size = 0x800, scoped, tag = 'packed  for operand 2']
    #allocation6 [shape = 's32[2]{0}', space=sflag, size = 0x8, scoped, tag = 'scoped memory for custom-call.25']
    #allocation7 [shape = 'u8[4096]{0}', space=vmem, size = 0x1000, scoped, tag = 'operand span for operand 3']
    #allocation8 [shape = 'u8[2048]{0}', space=vmem, size = 0x800, scoped, tag = 'packed  for operand 3']
    %5 = vsyncpa [#allocation6], 0
    %s6 = scalar_lea.sflag [#allocation6], 1
    %7 = vsyncpa %s6, 0
    loop: start=0, step=1, limit=4
    $region2: #{custom-call.25} parent=1 // loop_pre_header
      _
    $region3: #{custom-call.25} parent=1 // loop_header
      %s9 = sphi 0, %s13
      %p10 = scmp.ge.s32.totalorder %s9, 4
      %s21 = sphi 0, %s23
      %s24 = sphi 0, %s21
      %s25 = sphi 0, %s24
      %s41 = sphi 0, %s25
      %s49 = sphi 0, %s51
      %s52 = sphi 0, %s49
      %s53 = sphi 0, %s52
      %s69 = sphi 0, %s53
    $region4: #{custom-call.25} parent=1 // loop_header_branch
      %12 = sbr.rel (%p10) target = $region8
    $region5: #{custom-call.25} parent=1 // loop_body
      %s14 = ssub.s32 %s9, 1
      %s15 = ssub.s32 %s9, 2
      %s16 = sadd.s32 %s9, 1
      %s17 = sshrl.u32 %s9, 3
      %s18 = sshrl.u32 %s16, 3
      %s19 = ssub.s32 %s17, %s18
      %p20 = scmp.eq.s32.totalorder %s19, 0
      %s22 = sadd.s32 %s21, 1
      %s23 = scalar_select %p20, %s21, %s22
      %p26 = pneg %p20
      %p27 = scmp.eq.s32.totalorder %s9, 1
      %p28 = por %p26, %p27
      %p29 = scmp.ne.s32.totalorder %s21, %s24
      %p30 = scmp.eq.s32.totalorder %s9, 0
      %p31 = por %p29, %p30
      %p32 = scmp.ne.s32.totalorder %s21, %s24
      %p33 = scmp.eq.s32.totalorder %s14, 1
      %p34 = por %p32, %p33
      %p35 = scmp.ne.s32.totalorder %s24, %s25
      %p36 = scmp.eq.s32.totalorder %s14, 0
      %p37 = por %p35, %p36
      %p38 = scmp.ne.s32.totalorder %s24, %s25
      %p39 = scmp.eq.s32.totalorder %s15, 1
      %p40 = por %p38, %p39
      %p42 = scmp.ne.s32.totalorder %s25, %s41
      %p43 = scmp.eq.s32.totalorder %s15, 0
      %p44 = por %p42, %p43
      %s45 = sshrl.u32 %s9, 3
      %s46 = sshrl.u32 %s16, 3
      %s47 = ssub.s32 %s45, %s46
      %p48 = scmp.eq.s32.totalorder %s47, 0
      %s50 = sadd.s32 %s49, 1
      %s51 = scalar_select %p48, %s49, %s50
      %p54 = pneg %p48
      %p55 = scmp.eq.s32.totalorder %s9, 1
      %p56 = por %p54, %p55
      %p57 = scmp.ne.s32.totalorder %s49, %s52
      %p58 = scmp.eq.s32.totalorder %s9, 0
      %p59 = por %p57, %p58
      %p60 = scmp.ne.s32.totalorder %s49, %s52
      %p61 = scmp.eq.s32.totalorder %s14, 1
      %p62 = por %p60, %p61
      %p63 = scmp.ne.s32.totalorder %s52, %s53
      %p64 = scmp.eq.s32.totalorder %s14, 0
      %p65 = por %p63, %p64
      %p66 = scmp.ne.s32.totalorder %s52, %s53
      %p67 = scmp.eq.s32.totalorder %s15, 1
      %p68 = por %p66, %p67
      %p70 = scmp.ne.s32.totalorder %s53, %s69
      %p71 = scmp.eq.s32.totalorder %s15, 0
      %p72 = por %p70, %p71
      %p73 = scmp.le.s32.totalorder 1, %s9
      %p74 = scmp.lt.s32.totalorder %s9, 3
      %p75 = pnand %p73, %p74
      %p76 = pneg %p75
      // Predicated region
      $region9: #{custom-call.25} parent=5 // pred_check
        _
      $region10: #{custom-call.25} parent=5 // pred_check_branch
        %78 = sbr.rel (%p75) target = $region12
      $region11: #{custom-call.25} parent=5 // pred_region
        %s79 = ssub.s32 %s9, 1
      $region12: #{custom-call.25} parent=5 // pred_fallthru
        _
      %p80 = scmp.lt.s32.totalorder %s9, 2
      // Predicated region
      $region13: #{custom-call.25} parent=5 // pred_check
        %p81 = pneg %p80
      $region14: #{custom-call.25} parent=5 // pred_check_branch
        %83 = sbr.rel (%p81) target = $region16
      $region15: #{custom-call.25} parent=5 // pred_region
        %s84 = sand.u32 %s9, 1
        %s85 = sand.u32 %s9, 1
        %s86 = smul.addr %s85, 4
        %s87 = scalar_lea.vmem [#allocation1], %s86
        %s88 = smul.addr %s9, 4
        %s89 = scalar_lea.vmem %s0, %s88
        // Predicated region
        $region17: #{custom-call.25} parent=15 // pred_check
          _
        $region18: #{custom-call.25} parent=15 // pred_check_branch
          %91 = sbr.rel (0) target = $region20
        $region19: #{custom-call.25} parent=15 // pred_region
          // Predicated region
          $region21: #{custom-call.25} parent=19 // pred_check
            _
          $region22: #{custom-call.25} parent=19 // pred_check_branch
            %93 = sbr.rel target = $region24
          $region23: #{custom-call.25} parent=19 // pred_region
            // Predicated region
            $region36: #{custom-call.25} parent=23 // pred_check
              _
            $region37: #{custom-call.25} parent=23 // pred_check_branch
              %108 = sbr.rel (0) target = $region39
            $region38: #{custom-call.25} parent=23 // pred_region
              loop: start=0, step=1, limit=1
              $region40: #{custom-call.25} parent=38 // loop_pre_header
                _
              $region41: #{custom-call.25} parent=38 // loop_header
                %s111 = sphi 0, %s115
                %p112 = scmp.ge.s32.totalorder %s111, 1
                %s116 = sphi %s89, %s89
                %s117 = sphi %s87, %s87
              $region42: #{custom-call.25} parent=38 // loop_header_branch
                %114 = sbr.rel (%p112) target = $region46
              $region43: #{custom-call.25} parent=38 // loop_body
                %v118 = vld [vmem:[%s116] sm:$0xf]
                %119 = vst [vmem:[%s117] sm:$0xf] %v118
              $region44: #{custom-call.25} parent=38 // loop_footer
                %s115 = sadd.s32 1, %s111
              $region45: #{custom-call.25} parent=38 // loop_footer_branch
                %110 = sbr.rel target = $region41
              $region46: #{custom-call.25} parent=38 // loop_exit
                _
            $region39: #{custom-call.25} parent=23 // pred_fallthru
              _
          $region24: #{custom-call.25} parent=19 // pred_fallthru
            _
          // Predicated region
          $region25: #{custom-call.25} parent=19 // pred_check
            _
          $region26: #{custom-call.25} parent=19 // pred_check_branch
            %95 = sbr.rel (0) target = $region28
          $region27: #{custom-call.25} parent=19 // pred_region
            loop: start=0, step=1, limit=1
            $region29: #{custom-call.25} parent=27 // loop_pre_header
              _
            $region30: #{custom-call.25} parent=27 // loop_header
              %s98 = sphi 0, %s102
              %p99 = scmp.ge.s32.totalorder %s98, 1
              %s103 = sphi %s89, %s89
              %s104 = sphi %s87, %s87
            $region31: #{custom-call.25} parent=27 // loop_header_branch
              %101 = sbr.rel (%p99) target = $region35
            $region32: #{custom-call.25} parent=27 // loop_body
              %v105 = vld [vmem:[%s103] sm:$0xf]
              %106 = vst [vmem:[%s104] sm:$0xf] %v105
            $region33: #{custom-call.25} parent=27 // loop_footer
              %s102 = sadd.s32 1, %s98
            $region34: #{custom-call.25} parent=27 // loop_footer_branch
              %97 = sbr.rel target = $region30
            $region35: #{custom-call.25} parent=27 // loop_exit
              _
          $region28: #{custom-call.25} parent=19 // pred_fallthru
            _
        $region20: #{custom-call.25} parent=15 // pred_fallthru
          _
        %120 = vnop
      $region16: #{custom-call.25} parent=5 // pred_fallthru
        _
      %p121 = scmp.le.s32.totalorder 1, %s9
      %p122 = scmp.lt.s32.totalorder %s9, 3
      %p123 = pnand %p121, %p122
      %p124 = pneg %p123
      // Predicated region
      $region47: #{custom-call.25} parent=5 // pred_check
        _
      $region48: #{custom-call.25} parent=5 // pred_check_branch
        %126 = sbr.rel (%p123) target = $region50
      $region49: #{custom-call.25} parent=5 // pred_region
        #allocation9 [shape = 's32[3,128]{1,0}', space=vmem, size = 0x1000, scoped, tag = 'scratch for permutations']
        %s127 = ssub.s32 %s9, 1
        %s128 = sand.u32 %s14, 1
        %s129 = sand.u32 %s14, 1
        %s130 = smul.addr %s129, 4
        %s131 = scalar_lea.vmem [#allocation1], %s130
        %s132 = sand.u32 %s14, 1
        %s133 = sand.u32 %s14, 1
        %s134 = smul.addr %s133, 4
        %s135 = scalar_lea.vmem [#allocation1], %s134
        %s136 = sand.u32 %s14, 1
        %s137 = sand.u32 %s14, 1
        %s138 = smul.addr %s137, 4
        %s139 = scalar_lea.vmem [#allocation3], %s138
        %p140 = pneg %p37
        %p141 = pneg %p34
        %s142 = sand.u32 %s24, 1
        %s143 = scalar_lea.sflag [#allocation6], %s142
        %s144 = sand.u32 %s24, 1
        %s145 = smul.addr %s144, 2
        %s146 = scalar_lea.vmem [#allocation5], %s145
        %p147 = pneg %p65
        %p148 = pneg %p62
        %s149 = sand.u32 %s52, 1
        %s150 = sand.u32 %s52, 1
        %s151 = smul.addr %s150, 2
        %s152 = scalar_lea.vmem [#allocation8], %s151
        %s154 = sshllo.u32 0, 4
        %v155 = vld [vmem:[%s135] sm:%s154]
        %156 = vst [vmem:[#allocation0] sm:%s154] %v155
        %s157 = sshrl.u32 %s14, 3
        %s158 = sshrl.u32 %s14, 3
        %v159 = vld [vmem:[#allocation0] sm:$0xff]
        %160 = vst [vmem:[#allocation2] sm:$0xff] %v159
        %s161 = sand.u32 %s14, 7
        %s162 = scalar_lea.vmem [#allocation4], %s161
        %s163 = sand.u32 %s14, 7
        %s164 = scalar_lea.vmem [#allocation7], %s163
        %165 = vst [vmem:[%s162] sm:$0x1] 0
        %v166 = vlaneseq
        %v167 = vshrl.u32 %v166, 7
        %v168 = vmov %v167
        %170 = vst [vmem:[#allocation9] sm:$0xff] %v168
        loop: start=0, step=1, limit=3
        $region52: #{custom-call.25} parent=49 // loop_pre_header
          _
        $region53: #{custom-call.25} parent=49 // loop_header
          %s172 = sphi 0, %s176
          %p173 = scmp.ge.s32.totalorder %s172, 3
        $region54: #{custom-call.25} parent=49 // loop_header_branch
          %175 = sbr.rel (%p173) target = $region58
        $region55: #{custom-call.25} parent=49 // loop_body
          %v177 = vstv %s172
          %v178 = vlaneseq
          %v179 = vshrl.u32 %v178, 7
          %v180 = vmov %v179
          %v181 = vld [vmem:[#allocation2] sm:$0xff]
          %v182 = vand.u32 2147483647, %v181
          %v184 = vstv %s172
          %vm185 = vcmp.ge.s32.totalorder %v180, %v184
          %vm186 = vcmp.lt.s32.totalorder %v180, 3
          %vm187 = vmand %vm185, %vm186
          %vm188 = vcmp.lt.f32.partialorder -inf, %v182
          %vm189 = vmand %vm187, %vm188
          %v190 = vsel %vm189, %v180, %v177
          %v191 = vsel %vm189, %v182, -inf
          %v192 = vrot.slane %v191, 1
          %v193 = vrot.slane %v190, 1
          %vm194 = vcmp.ge.f32.partialorder %v192, %v191
          %v195 = vsel %vm194, %v192, %v191
          %v196 = vsel %vm194, %v193, %v190
          %v197 = vrot.slane %v192, 1
          %v198 = vrot.slane %v193, 1
          %vm199 = vcmp.ge.f32.partialorder %v197, %v195
          %v200 = vsel %vm199, %v197, %v195
          %v201 = vsel %vm199, %v198, %v196
          %v202 = vrot.slane %v197, 1
          %v203 = vrot.slane %v198, 1
          %vm204 = vcmp.ge.f32.partialorder %v202, %v200
          %v205 = vsel %vm204, %v202, %v200
          %v206 = vsel %vm204, %v203, %v201
          %v207 = vrot.slane %v202, 1
          %v208 = vrot.slane %v203, 1
          %vm209 = vcmp.ge.f32.partialorder %v207, %v205
          %v210 = vsel %vm209, %v207, %v205
          %v211 = vsel %vm209, %v208, %v206
          %v212 = vrot.slane %v207, 1
          %v213 = vrot.slane %v208, 1
          %vm214 = vcmp.ge.f32.partialorder %v212, %v210
          %v215 = vsel %vm214, %v212, %v210
          %v216 = vsel %vm214, %v213, %v211
          %v217 = vrot.slane %v212, 1
          %v218 = vrot.slane %v213, 1
          %vm219 = vcmp.ge.f32.partialorder %v217, %v215
          %v220 = vsel %vm219, %v217, %v215
          %v221 = vsel %vm219, %v218, %v216
          %v222 = vrot.slane %v217, 1
          %v223 = vrot.slane %v218, 1
          %vm224 = vcmp.ge.f32.partialorder %v222, %v220
          %v225 = vsel %vm224, %v222, %v220
          %v226 = vsel %vm224, %v223, %v221
          %s227 = ssub.s32 128, %s172
          %228 = vrot.lane.b32.xlu0 %v226, %s227
          %v229 = vpop.permute.xlu0 %228
          %s230 = vtos %v229
          %v231 = vstv %s172
          %v232 = vlaneseq
          %v233 = vand.u32 %v232, 127
          %vm234 = vcmp.eq.s32.totalorder %v233, %v231
          %v235 = vstv %s230
          %v236 = vld [vmem:[%s162] ss:$0 sm:$0xff]
          %v237 = vsel %vm234, %v235, %v236
          %238 = vst [vmem:[%s162] sm:$0x1] %v237
          %s239 = scalar_lea.vmem [#allocation2], %s172
          %s240 = scalar_lea.vmem [#allocation2], %s230
          %v241 = vld [vmem:[%s239] ss:$0 sm:$0xff]
          %v242 = vld [vmem:[%s240] ss:$0 sm:$0xff]
          %243 = vst [vmem:[%s240] sm:$0x1] %v241
          %244 = vst [vmem:[%s239] sm:$0x1] %v242
          %s245 = scalar_lea.vmem [#allocation9], %s172
          %s246 = scalar_lea.vmem [#allocation9], %s230
          %v247 = vld [vmem:[%s245] ss:$0 sm:$0xff]
          %v248 = vld [vmem:[%s246] ss:$0 sm:$0xff]
          %249 = vst [vmem:[%s246] sm:$0x1] %v247
          %250 = vst [vmem:[%s245] sm:$0x1] %v248
          %vm251 = vcmp.ne.f32.partialorder %v242, 0.0
          %vm252 = vmand %vm234, %vm251
          %v253 = vsel %vm252, %v242, 1.0
          %v254 = vlaneseq
          %v255 = vand.u32 %v254, 127
          %v256 = vstv %s172
          %vm257 = vcmp.gt.s32.totalorder %v255, %v256
          %v258 = vsel %vm257, %v242, 0.0
          %v259 = vlaneseq
          %v260 = vshrl.u32 %v259, 7
          %v261 = vmov %v260
          %v262 = vld [vmem:[#allocation2] sm:$0xff]
          %v264 = vstv %s172
          %vm265 = vcmp.gt.s32.totalorder %v261, %v264
          %v266 = vsel %vm265, %v253, 1.0
          %v267 = vrcp.pop %v266
          %v268 = vmul.f32 %v262, %v267
          %vm269 = vmand %vm265, %vm234
          %v270 = vsel %vm269, %v268, 0.0
          %271 = vadd.xlane.f32.xlu0 %v270
          %v272 = vpop.xlane.xlu0 %271
          %v273 = vmul.f32 %v272, %v258
          %v274 = vsub.f32 %v268, %v273
          %275 = vst [vmem:[#allocation2] sm:$0xff] %v274
        $region56: #{custom-call.25} parent=49 // loop_footer
          %s176 = sadd.s32 1, %s172
        $region57: #{custom-call.25} parent=49 // loop_footer_branch
          %171 = sbr.rel target = $region53
        $region58: #{custom-call.25} parent=49 // loop_exit
          _
        %v276 = vld [vmem:[#allocation9] sm:$0xff]
        %s277 = scalar_lea.vmem [#allocation9], 8
        %s278 = scalar_lea.vmem [#allocation9], 16
        %s279 = scalar_lea.vmem [#allocation9], 24
        %s280 = scalar_lea.vmem [#allocation9], 32
        %s281 = scalar_lea.vmem [#allocation9], 40
        %s282 = scalar_lea.vmem [#allocation9], 48
        %s283 = scalar_lea.vmem [#allocation9], 56
        %s284 = scalar_lea.vmem [#allocation9], 64
        %s285 = scalar_lea.vmem [#allocation9], 72
        %s286 = scalar_lea.vmem [#allocation9], 80
        %s287 = scalar_lea.vmem [#allocation9], 88
        %s288 = scalar_lea.vmem [#allocation9], 96
        %s289 = scalar_lea.vmem [#allocation9], 104
        %s290 = scalar_lea.vmem [#allocation9], 112
        %s291 = scalar_lea.vmem [#allocation9], 120
        %292 = vxpose.xlu0.b32.start [1/16] %v276, 128
        %293 = vxpose.xlu0.b32.cont [2/16] 0, 128
        %294 = vxpose.xlu0.b32.cont [3/16] 0, 128
        %295 = vxpose.xlu0.b32.cont [4/16] 0, 128
        %296 = vxpose.xlu0.b32.cont [5/16] 0, 128
        %297 = vxpose.xlu0.b32.cont [6/16] 0, 128
        %298 = vxpose.xlu0.b32.cont [7/16] 0, 128
        %299 = vxpose.xlu0.b32.cont [8/16] 0, 128
        %300 = vxpose.xlu0.b32.cont [9/16] 0, 128
        %301 = vxpose.xlu0.b32.cont [10/16] 0, 128
        %302 = vxpose.xlu0.b32.cont [11/16] 0, 128
        %303 = vxpose.xlu0.b32.cont [12/16] 0, 128
        %304 = vxpose.xlu0.b32.cont [13/16] 0, 128
        %305 = vxpose.xlu0.b32.cont [14/16] 0, 128
        %306 = vxpose.xlu0.b32.cont [15/16] 0, 128
        %307 = vxpose.xlu0.b32.end [16/16] 0, 128
        %v308 = vpop.trf.xlu0
        %v309 = vpop.trf.xlu0
        %v310 = vpop.trf.xlu0
        %v311 = vpop.trf.xlu0
        %v312 = vpop.trf.xlu0
        %v313 = vpop.trf.xlu0
        %v314 = vpop.trf.xlu0
        %v315 = vpop.trf.xlu0
        %v316 = vpop.trf.xlu0
        %v317 = vpop.trf.xlu0
        %v318 = vpop.trf.xlu0
        %v319 = vpop.trf.xlu0
        %v320 = vpop.trf.xlu0
        %v321 = vpop.trf.xlu0
        %v322 = vpop.trf.xlu0
        %v323 = vpop.trf.xlu0
        %324 = vst [vmem:[%s164] sm:$0x1] %v308
        %s326 = sshllo.u32 0, 4
        %v328 = vld [vmem:[#allocation2] sm:%s326]
        %s329 = sshllo.u32 0, 4
        %330 = vst [vmem:[%s139] sm:%s329] %v328
        %s332 = sshllo.u32 0, 2
        %v334 = vld [vmem:[#allocation4] sm:%s332]
        %s335 = sshllo.u32 0, 2
        %336 = vst [vmem:[%s146] sm:%s335] %v334
        %s338 = sshllo.u32 0, 2
        %v340 = vld [vmem:[#allocation7] sm:%s338]
        %s341 = sshllo.u32 0, 2
        %342 = vst [vmem:[%s152] sm:%s341] %v340
        %s343 = sand.u32 %s14, 1
        %s344 = sand.u32 %s14, 1
        %s345 = smul.addr %s344, 4
        %s346 = scalar_lea.vmem [#allocation3], %s345
        %s347 = sand.u32 %s24, 1
        %s348 = scalar_lea.sflag [#allocation6], %s347
        %s349 = sand.u32 %s24, 1
        %s350 = smul.addr %s349, 2
        %s351 = scalar_lea.vmem [#allocation5], %s350
        %s352 = sand.u32 %s52, 1
        %s353 = sand.u32 %s52, 1
        %s354 = smul.addr %s353, 2
        %s355 = scalar_lea.vmem [#allocation8], %s354
        %s356 = smul.addr %s14, 4
        %s357 = scalar_lea.vmem %s1, %s356
        // Predicated region
        $region59: #{custom-call.25} parent=49 // pred_check
          _
        $region60: #{custom-call.25} parent=49 // pred_check_branch
          %359 = sbr.rel (0) target = $region62
        $region61: #{custom-call.25} parent=49 // pred_region
          // Predicated region
          $region63: #{custom-call.25} parent=61 // pred_check
            _
          $region64: #{custom-call.25} parent=61 // pred_check_branch
            %361 = sbr.rel target = $region66
          $region65: #{custom-call.25} parent=61 // pred_region
            // Predicated region
            $region78: #{custom-call.25} parent=65 // pred_check
              _
            $region79: #{custom-call.25} parent=65 // pred_check_branch
              %376 = sbr.rel (0) target = $region81
            $region80: #{custom-call.25} parent=65 // pred_region
              loop: start=0, step=1, limit=1
              $region82: #{custom-call.25} parent=80 // loop_pre_header
                _
              $region83: #{custom-call.25} parent=80 // loop_header
                %s379 = sphi 0, %s383
                %p380 = scmp.ge.s32.totalorder %s379, 1
                %s384 = sphi %s346, %s346
                %s385 = sphi %s357, %s357
              $region84: #{custom-call.25} parent=80 // loop_header_branch
                %382 = sbr.rel (%p380) target = $region88
              $region85: #{custom-call.25} parent=80 // loop_body
                %v386 = vld [vmem:[%s384] sm:$0xf]
                %387 = vst [vmem:[%s385] sm:$0xf] %v386
              $region86: #{custom-call.25} parent=80 // loop_footer
                %s383 = sadd.s32 1, %s379
              $region87: #{custom-call.25} parent=80 // loop_footer_branch
                %378 = sbr.rel target = $region83
              $region88: #{custom-call.25} parent=80 // loop_exit
                _
            $region81: #{custom-call.25} parent=65 // pred_fallthru
              _
          $region66: #{custom-call.25} parent=61 // pred_fallthru
            _
          // Predicated region
          $region67: #{custom-call.25} parent=61 // pred_check
            _
          $region68: #{custom-call.25} parent=61 // pred_check_branch
            %363 = sbr.rel (0) target = $region70
          $region69: #{custom-call.25} parent=61 // pred_region
            loop: start=0, step=1, limit=1
            $region71: #{custom-call.25} parent=69 // loop_pre_header
              _
            $region72: #{custom-call.25} parent=69 // loop_header
              %s366 = sphi 0, %s370
              %p367 = scmp.ge.s32.totalorder %s366, 1
              %s371 = sphi %s346, %s346
              %s372 = sphi %s357, %s357
            $region73: #{custom-call.25} parent=69 // loop_header_branch
              %369 = sbr.rel (%p367) target = $region77
            $region74: #{custom-call.25} parent=69 // loop_body
              %v373 = vld [vmem:[%s371] sm:$0xf]
              %374 = vst [vmem:[%s372] sm:$0xf] %v373
            $region75: #{custom-call.25} parent=69 // loop_footer
              %s370 = sadd.s32 1, %s366
            $region76: #{custom-call.25} parent=69 // loop_footer_branch
              %365 = sbr.rel target = $region72
            $region77: #{custom-call.25} parent=69 // loop_exit
              _
          $region70: #{custom-call.25} parent=61 // pred_fallthru
            _
        $region62: #{custom-call.25} parent=49 // pred_fallthru
          _
        %388 = vnop
        // Predicated region
        $region89: #{custom-call.25} parent=49 // pred_check
          %p389 = pneg %p34
        $region90: #{custom-call.25} parent=49 // pred_check_branch
          %391 = sbr.rel (%p389) target = $region92
        $region91: #{custom-call.25} parent=49 // pred_region
          %s392 = sshrl.u32 %s14, 3
          %s394 = ssub.s32 32, 32
          %395 = vsyncadd %s348, %s394
          %s396 = smul.addr %s392, 32
          %s397 = scalar_lea.hbm %s2, %s396
          %s399 = sshll.u32 %s351, 4
          %s400 = int_to_ptr.vmem [resolvable:$true] %s399
          %402 = dma.vmem_to_hbm [thread:$0]  %s400, 32, %s397, %s348
        $region92: #{custom-call.25} parent=49 // pred_fallthru
          _
        // Predicated region
        $region93: #{custom-call.25} parent=49 // pred_check
          %p403 = pneg %p62
        $region94: #{custom-call.25} parent=49 // pred_check_branch
          %405 = sbr.rel (%p403) target = $region96
        $region95: #{custom-call.25} parent=49 // pred_region
          %s406 = sshrl.u32 %s14, 3
          %s407 = smul.addr %s406, 2
          %s408 = scalar_lea.vmem %s3, %s407
          // Predicated region
          $region97: #{custom-call.25} parent=95 // pred_check
            _
          $region98: #{custom-call.25} parent=95 // pred_check_branch
            %410 = sbr.rel (0) target = $region100
          $region99: #{custom-call.25} parent=95 // pred_region
            // Predicated region
            $region101: #{custom-call.25} parent=99 // pred_check
              _
            $region102: #{custom-call.25} parent=99 // pred_check_branch
              %412 = sbr.rel target = $region104
            $region103: #{custom-call.25} parent=99 // pred_region
              // Predicated region
              $region116: #{custom-call.25} parent=103 // pred_check
                _
              $region117: #{custom-call.25} parent=103 // pred_check_branch
                %427 = sbr.rel (0) target = $region119
              $region118: #{custom-call.25} parent=103 // pred_region
                loop: start=0, step=1, limit=1
                $region120: #{custom-call.25} parent=118 // loop_pre_header
                  _
                $region121: #{custom-call.25} parent=118 // loop_header
                  %s430 = sphi 0, %s434
                  %p431 = scmp.ge.s32.totalorder %s430, 1
                  %s435 = sphi %s355, %s355
                  %s436 = sphi %s408, %s408
                $region122: #{custom-call.25} parent=118 // loop_header_branch
                  %433 = sbr.rel (%p431) target = $region126
                $region123: #{custom-call.25} parent=118 // loop_body
                  %v437 = vld [vmem:[%s435] sm:$0x3]
                  %438 = vst [vmem:[%s436] sm:$0x3] %v437
                $region124: #{custom-call.25} parent=118 // loop_footer
                  %s434 = sadd.s32 1, %s430
                $region125: #{custom-call.25} parent=118 // loop_footer_branch
                  %429 = sbr.rel target = $region121
                $region126: #{custom-call.25} parent=118 // loop_exit
                  _
              $region119: #{custom-call.25} parent=103 // pred_fallthru
                _
            $region104: #{custom-call.25} parent=99 // pred_fallthru
              _
            // Predicated region
            $region105: #{custom-call.25} parent=99 // pred_check
              _
            $region106: #{custom-call.25} parent=99 // pred_check_branch
              %414 = sbr.rel (0) target = $region108
            $region107: #{custom-call.25} parent=99 // pred_region
              loop: start=0, step=1, limit=1
              $region109: #{custom-call.25} parent=107 // loop_pre_header
                _
              $region110: #{custom-call.25} parent=107 // loop_header
                %s417 = sphi 0, %s421
                %p418 = scmp.ge.s32.totalorder %s417, 1
                %s422 = sphi %s355, %s355
                %s423 = sphi %s408, %s408
              $region111: #{custom-call.25} parent=107 // loop_header_branch
                %420 = sbr.rel (%p418) target = $region115
              $region112: #{custom-call.25} parent=107 // loop_body
                %v424 = vld [vmem:[%s422] sm:$0x3]
                %425 = vst [vmem:[%s423] sm:$0x3] %v424
              $region113: #{custom-call.25} parent=107 // loop_footer
                %s421 = sadd.s32 1, %s417
              $region114: #{custom-call.25} parent=107 // loop_footer_branch
                %416 = sbr.rel target = $region110
              $region115: #{custom-call.25} parent=107 // loop_exit
                _
            $region108: #{custom-call.25} parent=99 // pred_fallthru
              _
          $region100: #{custom-call.25} parent=95 // pred_fallthru
            _
          %439 = vnop
        $region96: #{custom-call.25} parent=49 // pred_fallthru
          _
      $region50: #{custom-call.25} parent=5 // pred_fallthru
        _
      %p440 = scmp.le.s32.totalorder 2, %s9
      // Predicated region
      $region127: #{custom-call.25} parent=5 // pred_check
        %p441 = pneg %p440
      $region128: #{custom-call.25} parent=5 // pred_check_branch
        %443 = sbr.rel (%p441) target = $region130
      $region129: #{custom-call.25} parent=5 // pred_region
        %s444 = ssub.s32 %s9, 2
        %s445 = sand.u32 %s15, 1
        %s446 = sand.u32 %s15, 1
        %s447 = smul.addr %s446, 4
        %s448 = scalar_lea.vmem [#allocation3], %s447
        // Predicated region
        $region131: #{custom-call.25} parent=129 // pred_check
          %p449 = pneg %p40
        $region132: #{custom-call.25} parent=129 // pred_check_branch
          %451 = sbr.rel (%p449) target = $region134
        $region133: #{custom-call.25} parent=129 // pred_region
          %s452 = sand.u32 %s25, 1
          %s453 = scalar_lea.sflag [#allocation6], %s452
          %s454 = sand.u32 %s25, 1
          %s455 = smul.addr %s454, 2
          %s456 = scalar_lea.vmem [#allocation5], %s455
          %457 = dma.done %s453, 32
        $region134: #{custom-call.25} parent=129 // pred_fallthru
          _
        // Predicated region
        $region135: #{custom-call.25} parent=129 // pred_check
          %p458 = pneg %p68
        $region136: #{custom-call.25} parent=129 // pred_check_branch
          %460 = sbr.rel (%p458) target = $region138
        $region137: #{custom-call.25} parent=129 // pred_region
          %s461 = sand.u32 %s53, 1
          %s462 = sand.u32 %s53, 1
          %s463 = smul.addr %s462, 2
          %s464 = scalar_lea.vmem [#allocation8], %s463
        $region138: #{custom-call.25} parent=129 // pred_fallthru
          _
      $region130: #{custom-call.25} parent=5 // pred_fallthru
        _
    $region6: #{custom-call.25} parent=1 // loop_footer
      %s13 = sadd.s32 1, %s9
    $region7: #{custom-call.25} parent=1 // loop_footer_branch
      %8 = sbr.rel target = $region3
    $region8: #{custom-call.25} parent=1 // loop_exit
      _
    %465 = vsyncpa [#allocation6], 1
    %s466 = scalar_lea.sflag [#allocation6], 1
    %467 = vsyncpa %s466, 1

// kernel: custom-call.27
$region0: #{custom-call.27}
  %s0 = inlined_call_operand.vmem [shape: f32[2,1,3,3], index: 0, kind: input, shape index: {}]
  %s1 = inlined_call_operand.vmem [shape: f32[2,1,3,3], index: 1, kind: output, shape index: {}]
  $region1: #{custom-call.27} parent=0
    #allocation0 [shape = 'u8[4096]{0}', space=vmem, size = 0x1000, scoped, tag = 'operand span for operand 0']
    #allocation1 [shape = 'u8[4096]{0}', space=vmem, size = 0x1000, scoped, tag = 'packed  for operand 0']
    #allocation2 [shape = 'u8[4096]{0}', space=vmem, size = 0x1000, scoped, tag = 'operand span for operand 1']
    #allocation3 [shape = 'u8[4096]{0}', space=vmem, size = 0x1000, scoped, tag = 'packed  for operand 1']
    loop: start=0, step=1, limit=4
    $region2: #{custom-call.27} parent=1 // loop_pre_header
      _
    $region3: #{custom-call.27} parent=1 // loop_header
      %s3 = sphi 0, %s7
      %p4 = scmp.ge.s32.totalorder %s3, 4
      %s10 = sphi 0, %s36
      %s11 = sphi 0, %s32
      %s12 = sphi 0, %s28
      %s13 = sphi 0, %s24
      %s14 = sphi 0, %s10
      %s15 = sphi 0, %s11
      %s16 = sphi 0, %s12
      %s17 = sphi 0, %s13
      %s18 = sphi 0, %s14
      %s19 = sphi 0, %s15
      %s20 = sphi 0, %s16
      %s21 = sphi 0, %s17
    $region4: #{custom-call.27} parent=1 // loop_header_branch
      %6 = sbr.rel (%p4) target = $region8
    $region5: #{custom-call.27} parent=1 // loop_body
      %s8 = ssub.s32 %s3, 1
      %s9 = ssub.s32 %s3, 2
      %s22 = sadd.s32 1, %s13
      %p23 = scmp.ge.s32.totalorder %s22, 1
      %s24 = scalar_select %p23, 0, %s22
      %s25 = sadd.s32 1, %s12
      %s26 = scalar_select %p23, %s25, %s12
      %p27 = scmp.ge.s32.totalorder %s26, 1
      %s28 = scalar_select %p27, 0, %s26
      %s29 = sadd.s32 1, %s11
      %s30 = scalar_select %p27, %s29, %s11
      %p31 = scmp.ge.s32.totalorder %s30, 1
      %s32 = scalar_select %p31, 0, %s30
      %s33 = sadd.s32 1, %s10
      %s34 = scalar_select %p31, %s33, %s10
      %p35 = scmp.ge.s32.totalorder %s34, 2
      %s36 = scalar_select %p35, 0, %s34
      %p37 = scmp.le.s32.totalorder 1, %s3
      %p38 = scmp.lt.s32.totalorder %s3, 3
      %p39 = pnand %p37, %p38
      %p40 = pneg %p39
      // Predicated region
      $region9: #{custom-call.27} parent=5 // pred_check
        _
      $region10: #{custom-call.27} parent=5 // pred_check_branch
        %42 = sbr.rel (%p39) target = $region12
      $region11: #{custom-call.27} parent=5 // pred_region
        %s43 = ssub.s32 %s3, 1
      $region12: #{custom-call.27} parent=5 // pred_fallthru
        _
      %p44 = scmp.lt.s32.totalorder %s3, 2
      // Predicated region
      $region13: #{custom-call.27} parent=5 // pred_check
        %p45 = pneg %p44
      $region14: #{custom-call.27} parent=5 // pred_check_branch
        %47 = sbr.rel (%p45) target = $region16
      $region15: #{custom-call.27} parent=5 // pred_region
        %s48 = sand.u32 %s3, 1
        %s49 = sand.u32 %s3, 1
        %s50 = smul.addr %s49, 4
        %s51 = scalar_lea.vmem [#allocation1], %s50
        %s52 = sadd.s32 %s13, %s12
        %s53 = sadd.s32 %s52, %s11
        %s54 = sadd.s32 %s53, %s10
        %s55 = smul.addr %s54, 4
        %s56 = scalar_lea.vmem %s0, %s55
        // Predicated region
        $region17: #{custom-call.27} parent=15 // pred_check
          _
        $region18: #{custom-call.27} parent=15 // pred_check_branch
          %58 = sbr.rel (0) target = $region20
        $region19: #{custom-call.27} parent=15 // pred_region
          // Predicated region
          $region21: #{custom-call.27} parent=19 // pred_check
            _
          $region22: #{custom-call.27} parent=19 // pred_check_branch
            %60 = sbr.rel target = $region24
          $region23: #{custom-call.27} parent=19 // pred_region
            // Predicated region
            $region36: #{custom-call.27} parent=23 // pred_check
              _
            $region37: #{custom-call.27} parent=23 // pred_check_branch
              %75 = sbr.rel (0) target = $region39
            $region38: #{custom-call.27} parent=23 // pred_region
              loop: start=0, step=1, limit=1
              $region40: #{custom-call.27} parent=38 // loop_pre_header
                _
              $region41: #{custom-call.27} parent=38 // loop_header
                %s78 = sphi 0, %s82
                %p79 = scmp.ge.s32.totalorder %s78, 1
                %s83 = sphi %s56, %s56
                %s84 = sphi %s51, %s51
              $region42: #{custom-call.27} parent=38 // loop_header_branch
                %81 = sbr.rel (%p79) target = $region46
              $region43: #{custom-call.27} parent=38 // loop_body
                %v85 = vld [vmem:[%s83] sm:$0xf]
                %86 = vst [vmem:[%s84] sm:$0xf] %v85
              $region44: #{custom-call.27} parent=38 // loop_footer
                %s82 = sadd.s32 1, %s78
              $region45: #{custom-call.27} parent=38 // loop_footer_branch
                %77 = sbr.rel target = $region41
              $region46: #{custom-call.27} parent=38 // loop_exit
                _
            $region39: #{custom-call.27} parent=23 // pred_fallthru
              _
          $region24: #{custom-call.27} parent=19 // pred_fallthru
            _
          // Predicated region
          $region25: #{custom-call.27} parent=19 // pred_check
            _
          $region26: #{custom-call.27} parent=19 // pred_check_branch
            %62 = sbr.rel (0) target = $region28
          $region27: #{custom-call.27} parent=19 // pred_region
            loop: start=0, step=1, limit=1
            $region29: #{custom-call.27} parent=27 // loop_pre_header
              _
            $region30: #{custom-call.27} parent=27 // loop_header
              %s65 = sphi 0, %s69
              %p66 = scmp.ge.s32.totalorder %s65, 1
              %s70 = sphi %s56, %s56
              %s71 = sphi %s51, %s51
            $region31: #{custom-call.27} parent=27 // loop_header_branch
              %68 = sbr.rel (%p66) target = $region35
            $region32: #{custom-call.27} parent=27 // loop_body
              %v72 = vld [vmem:[%s70] sm:$0xf]
              %73 = vst [vmem:[%s71] sm:$0xf] %v72
            $region33: #{custom-call.27} parent=27 // loop_footer
              %s69 = sadd.s32 1, %s65
            $region34: #{custom-call.27} parent=27 // loop_footer_branch
              %64 = sbr.rel target = $region30
            $region35: #{custom-call.27} parent=27 // loop_exit
              _
          $region28: #{custom-call.27} parent=19 // pred_fallthru
            _
        $region20: #{custom-call.27} parent=15 // pred_fallthru
          _
        %87 = vnop
      $region16: #{custom-call.27} parent=5 // pred_fallthru
        _
      %p88 = scmp.le.s32.totalorder 1, %s3
      %p89 = scmp.lt.s32.totalorder %s3, 3
      %p90 = pnand %p88, %p89
      %p91 = pneg %p90
      // Predicated region
      $region47: #{custom-call.27} parent=5 // pred_check
        _
      $region48: #{custom-call.27} parent=5 // pred_check_branch
        %93 = sbr.rel (%p90) target = $region50
      $region49: #{custom-call.27} parent=5 // pred_region
        #allocation4 [shape = 'f32[3,3]{1,0}', space=vmem, size = 0x1000, scoped, tag = 'rescaled input a']
        %s94 = ssub.s32 %s3, 1
        %s95 = sand.u32 %s8, 1
        %s96 = sand.u32 %s8, 1
        %s97 = smul.addr %s96, 4
        %s98 = scalar_lea.vmem [#allocation1], %s97
        %s99 = sand.u32 %s8, 1
        %s100 = sand.u32 %s8, 1
        %s101 = smul.addr %s100, 4
        %s102 = scalar_lea.vmem [#allocation1], %s101
        %s103 = sand.u32 %s8, 1
        %s104 = sand.u32 %s8, 1
        %s105 = smul.addr %s104, 4
        %s106 = scalar_lea.vmem [#allocation3], %s105
        %s108 = sshllo.u32 0, 4
        %v109 = vld [vmem:[%s102] sm:%s108]
        %110 = vst [vmem:[#allocation0] sm:%s108] %v109
        %v111 = vlaneseq
        %v112 = vand.u32 %v111, 127
        %vm113 = vcmp.lt.s32.totalorder %v112, 3
        %v114 = vlaneseq
        %v115 = vshrl.u32 %v114, 7
        %vm117 = vcmp.eq.s32.totalorder %v115, %v112
        %v118 = vld [vmem:[#allocation0] sm:$0xff]
        %v119 = vsel %vm117, %v118, 0.0
        %120 = vadd.xlane.f32.xlu0 %v119
        %v121 = vpop.xlane.xlu0 %120
        %vm122 = vcmp.ge.s32.totalorder %v115, %v112
        %vm123 = vmand %vm122, %vm113
        %v124 = vsel %vm123, %v118, 0.0
        %v125 = vrcp.pop %v121
        %v126 = vmul.f32 %v124, %v125
        %127 = vst [vmem:[#allocation4] sm:$0xff] %v126
        %v128 = vlaneseq
        %v129 = vand.u32 %v128, 127
        %v130 = vlaneseq
        %v131 = vshrl.u32 %v130, 7
        %vm133 = vcmp.eq.s32.totalorder %v129, %v131
        %v134 = vlaneseq
        %v135 = vand.u32 %v134, 127
        %vm136 = vcmp.eq.s32.totalorder %v135, 0
        %v137 = vsel %vm136, 1.0, -1.0
        %v138 = vsel %vm133, %v137, 0.0
        %s139 = scalar_lea.vmem [#allocation4], 1
        %v140 = vld [vmem:[%s139] ss:$0 sm:$0xff]
        %v141 = vxor.u32 %v140, 2147483648
        %v142 = vlaneseq
        %v143 = vand.u32 %v142, 127
        %vm144 = vcmp.eq.s32.totalorder %v143, 1
        %v145 = vmul.f32 %v141, %v138
        %146 = vadd.xlane.f32.xlu0 %v145
        %v147 = vpop.xlane.xlu0 %146
        %v148 = vsel %vm144, %v147, %v138
        %s149 = scalar_lea.vmem [#allocation4], 2
        %v150 = vld [vmem:[%s149] ss:$0 sm:$0xff]
        %v151 = vxor.u32 %v150, 2147483648
        %v152 = vlaneseq
        %v153 = vand.u32 %v152, 127
        %vm154 = vcmp.eq.s32.totalorder %v153, 2
        %v155 = vmul.f32 %v151, %v148
        %156 = vadd.xlane.f32.xlu0 %v155
        %v157 = vpop.xlane.xlu0 %156
        %v158 = vsel %vm154, %v157, %v148
        %v159 = vrcp.pop %v121
        %v160 = vmul.f32 %v158, %v159
        %vm161 = vweird.f32 %v121
        %v162 = vsel %vm161, %v158, %v160
        %163 = vst [vmem:[#allocation2] sm:$0xff] %v162
        %s165 = sshllo.u32 0, 4
        %v167 = vld [vmem:[#allocation2] sm:%s165]
        %s168 = sshllo.u32 0, 4
        %169 = vst [vmem:[%s106] sm:%s168] %v167
        %s170 = sand.u32 %s8, 1
        %s171 = sand.u32 %s8, 1
        %s172 = smul.addr %s171, 4
        %s173 = scalar_lea.vmem [#allocation3], %s172
        %s174 = sadd.s32 %s17, %s16
        %s175 = sadd.s32 %s174, %s15
        %s176 = sadd.s32 %s175, %s14
        %s177 = smul.addr %s176, 4
        %s178 = scalar_lea.vmem %s1, %s177
        // Predicated region
        $region51: #{custom-call.27} parent=49 // pred_check
          _
        $region52: #{custom-call.27} parent=49 // pred_check_branch
          %180 = sbr.rel (0) target = $region54
        $region53: #{custom-call.27} parent=49 // pred_region
          // Predicated region
          $region55: #{custom-call.27} parent=53 // pred_check
            _
          $region56: #{custom-call.27} parent=53 // pred_check_branch
            %182 = sbr.rel target = $region58
          $region57: #{custom-call.27} parent=53 // pred_region
            // Predicated region
            $region70: #{custom-call.27} parent=57 // pred_check
              _
            $region71: #{custom-call.27} parent=57 // pred_check_branch
              %197 = sbr.rel (0) target = $region73
            $region72: #{custom-call.27} parent=57 // pred_region
              loop: start=0, step=1, limit=1
              $region74: #{custom-call.27} parent=72 // loop_pre_header
                _
              $region75: #{custom-call.27} parent=72 // loop_header
                %s200 = sphi 0, %s204
                %p201 = scmp.ge.s32.totalorder %s200, 1
                %s205 = sphi %s173, %s173
                %s206 = sphi %s178, %s178
              $region76: #{custom-call.27} parent=72 // loop_header_branch
                %203 = sbr.rel (%p201) target = $region80
              $region77: #{custom-call.27} parent=72 // loop_body
                %v207 = vld [vmem:[%s205] sm:$0xf]
                %208 = vst [vmem:[%s206] sm:$0xf] %v207
              $region78: #{custom-call.27} parent=72 // loop_footer
                %s204 = sadd.s32 1, %s200
              $region79: #{custom-call.27} parent=72 // loop_footer_branch
                %199 = sbr.rel target = $region75
              $region80: #{custom-call.27} parent=72 // loop_exit
                _
            $region73: #{custom-call.27} parent=57 // pred_fallthru
              _
          $region58: #{custom-call.27} parent=53 // pred_fallthru
            _
          // Predicated region
          $region59: #{custom-call.27} parent=53 // pred_check
            _
          $region60: #{custom-call.27} parent=53 // pred_check_branch
            %184 = sbr.rel (0) target = $region62
          $region61: #{custom-call.27} parent=53 // pred_region
            loop: start=0, step=1, limit=1
            $region63: #{custom-call.27} parent=61 // loop_pre_header
              _
            $region64: #{custom-call.27} parent=61 // loop_header
              %s187 = sphi 0, %s191
              %p188 = scmp.ge.s32.totalorder %s187, 1
              %s192 = sphi %s173, %s173
              %s193 = sphi %s178, %s178
            $region65: #{custom-call.27} parent=61 // loop_header_branch
              %190 = sbr.rel (%p188) target = $region69
            $region66: #{custom-call.27} parent=61 // loop_body
              %v194 = vld [vmem:[%s192] sm:$0xf]
              %195 = vst [vmem:[%s193] sm:$0xf] %v194
            $region67: #{custom-call.27} parent=61 // loop_footer
              %s191 = sadd.s32 1, %s187
            $region68: #{custom-call.27} parent=61 // loop_footer_branch
              %186 = sbr.rel target = $region64
            $region69: #{custom-call.27} parent=61 // loop_exit
              _
          $region62: #{custom-call.27} parent=53 // pred_fallthru
            _
        $region54: #{custom-call.27} parent=49 // pred_fallthru
          _
        %209 = vnop
      $region50: #{custom-call.27} parent=5 // pred_fallthru
        _
      %p210 = scmp.le.s32.totalorder 2, %s3
      // Predicated region
      $region81: #{custom-call.27} parent=5 // pred_check
        %p211 = pneg %p210
      $region82: #{custom-call.27} parent=5 // pred_check_branch
        %213 = sbr.rel (%p211) target = $region84
      $region83: #{custom-call.27} parent=5 // pred_region
        %s214 = ssub.s32 %s3, 2
        %s215 = sand.u32 %s9, 1
        %s216 = sand.u32 %s9, 1
        %s217 = smul.addr %s216, 4
        %s218 = scalar_lea.vmem [#allocation3], %s217
      $region84: #{custom-call.27} parent=5 // pred_fallthru
        _
    $region6: #{custom-call.27} parent=1 // loop_footer
      %s7 = sadd.s32 1, %s3
    $region7: #{custom-call.27} parent=1 // loop_footer_branch
      %2 = sbr.rel target = $region3
    $region8: #{custom-call.27} parent=1 // loop_exit
      _

// kernel: custom-call.26
$region0: #{custom-call.26}
  %s0 = inlined_call_operand.vmem [shape: f32[2,1,3,3], index: 0, kind: input, shape index: {}]
  %s1 = inlined_call_operand.vmem [shape: f32[2,1,3,3], index: 1, kind: output, shape index: {}]
  $region1: #{custom-call.26} parent=0
    #allocation0 [shape = 'u8[4096]{0}', space=vmem, size = 0x1000, scoped, tag = 'operand span for operand 0']
    #allocation1 [shape = 'u8[4096]{0}', space=vmem, size = 0x1000, scoped, tag = 'packed  for operand 0']
    #allocation2 [shape = 'u8[4096]{0}', space=vmem, size = 0x1000, scoped, tag = 'operand span for operand 1']
    #allocation3 [shape = 'u8[4096]{0}', space=vmem, size = 0x1000, scoped, tag = 'packed  for operand 1']
    loop: start=0, step=1, limit=4
    $region2: #{custom-call.26} parent=1 // loop_pre_header
      _
    $region3: #{custom-call.26} parent=1 // loop_header
      %s3 = sphi 0, %s7
      %p4 = scmp.ge.s32.totalorder %s3, 4
      %s10 = sphi 0, %s36
      %s11 = sphi 0, %s32
      %s12 = sphi 0, %s28
      %s13 = sphi 0, %s24
      %s14 = sphi 0, %s10
      %s15 = sphi 0, %s11
      %s16 = sphi 0, %s12
      %s17 = sphi 0, %s13
      %s18 = sphi 0, %s14
      %s19 = sphi 0, %s15
      %s20 = sphi 0, %s16
      %s21 = sphi 0, %s17
    $region4: #{custom-call.26} parent=1 // loop_header_branch
      %6 = sbr.rel (%p4) target = $region8
    $region5: #{custom-call.26} parent=1 // loop_body
      %s8 = ssub.s32 %s3, 1
      %s9 = ssub.s32 %s3, 2
      %s22 = sadd.s32 1, %s13
      %p23 = scmp.ge.s32.totalorder %s22, 1
      %s24 = scalar_select %p23, 0, %s22
      %s25 = sadd.s32 1, %s12
      %s26 = scalar_select %p23, %s25, %s12
      %p27 = scmp.ge.s32.totalorder %s26, 1
      %s28 = scalar_select %p27, 0, %s26
      %s29 = sadd.s32 1, %s11
      %s30 = scalar_select %p27, %s29, %s11
      %p31 = scmp.ge.s32.totalorder %s30, 1
      %s32 = scalar_select %p31, 0, %s30
      %s33 = sadd.s32 1, %s10
      %s34 = scalar_select %p31, %s33, %s10
      %p35 = scmp.ge.s32.totalorder %s34, 2
      %s36 = scalar_select %p35, 0, %s34
      %p37 = scmp.le.s32.totalorder 1, %s3
      %p38 = scmp.lt.s32.totalorder %s3, 3
      %p39 = pnand %p37, %p38
      %p40 = pneg %p39
      // Predicated region
      $region9: #{custom-call.26} parent=5 // pred_check
        _
      $region10: #{custom-call.26} parent=5 // pred_check_branch
        %42 = sbr.rel (%p39) target = $region12
      $region11: #{custom-call.26} parent=5 // pred_region
        %s43 = ssub.s32 %s3, 1
      $region12: #{custom-call.26} parent=5 // pred_fallthru
        _
      %p44 = scmp.lt.s32.totalorder %s3, 2
      // Predicated region
      $region13: #{custom-call.26} parent=5 // pred_check
        %p45 = pneg %p44
      $region14: #{custom-call.26} parent=5 // pred_check_branch
        %47 = sbr.rel (%p45) target = $region16
      $region15: #{custom-call.26} parent=5 // pred_region
        %s48 = sand.u32 %s3, 1
        %s49 = sand.u32 %s3, 1
        %s50 = smul.addr %s49, 4
        %s51 = scalar_lea.vmem [#allocation1], %s50
        %s52 = sadd.s32 %s13, %s12
        %s53 = sadd.s32 %s52, %s11
        %s54 = sadd.s32 %s53, %s10
        %s55 = smul.addr %s54, 4
        %s56 = scalar_lea.vmem %s0, %s55
        // Predicated region
        $region17: #{custom-call.26} parent=15 // pred_check
          _
        $region18: #{custom-call.26} parent=15 // pred_check_branch
          %58 = sbr.rel (0) target = $region20
        $region19: #{custom-call.26} parent=15 // pred_region
          // Predicated region
          $region21: #{custom-call.26} parent=19 // pred_check
            _
          $region22: #{custom-call.26} parent=19 // pred_check_branch
            %60 = sbr.rel target = $region24
          $region23: #{custom-call.26} parent=19 // pred_region
            // Predicated region
            $region36: #{custom-call.26} parent=23 // pred_check
              _
            $region37: #{custom-call.26} parent=23 // pred_check_branch
              %75 = sbr.rel (0) target = $region39
            $region38: #{custom-call.26} parent=23 // pred_region
              loop: start=0, step=1, limit=1
              $region40: #{custom-call.26} parent=38 // loop_pre_header
                _
              $region41: #{custom-call.26} parent=38 // loop_header
                %s78 = sphi 0, %s82
                %p79 = scmp.ge.s32.totalorder %s78, 1
                %s83 = sphi %s56, %s56
                %s84 = sphi %s51, %s51
              $region42: #{custom-call.26} parent=38 // loop_header_branch
                %81 = sbr.rel (%p79) target = $region46
              $region43: #{custom-call.26} parent=38 // loop_body
                %v85 = vld [vmem:[%s83] sm:$0xf]
                %86 = vst [vmem:[%s84] sm:$0xf] %v85
              $region44: #{custom-call.26} parent=38 // loop_footer
                %s82 = sadd.s32 1, %s78
              $region45: #{custom-call.26} parent=38 // loop_footer_branch
                %77 = sbr.rel target = $region41
              $region46: #{custom-call.26} parent=38 // loop_exit
                _
            $region39: #{custom-call.26} parent=23 // pred_fallthru
              _
          $region24: #{custom-call.26} parent=19 // pred_fallthru
            _
          // Predicated region
          $region25: #{custom-call.26} parent=19 // pred_check
            _
          $region26: #{custom-call.26} parent=19 // pred_check_branch
            %62 = sbr.rel (0) target = $region28
          $region27: #{custom-call.26} parent=19 // pred_region
            loop: start=0, step=1, limit=1
            $region29: #{custom-call.26} parent=27 // loop_pre_header
              _
            $region30: #{custom-call.26} parent=27 // loop_header
              %s65 = sphi 0, %s69
              %p66 = scmp.ge.s32.totalorder %s65, 1
              %s70 = sphi %s56, %s56
              %s71 = sphi %s51, %s51
            $region31: #{custom-call.26} parent=27 // loop_header_branch
              %68 = sbr.rel (%p66) target = $region35
            $region32: #{custom-call.26} parent=27 // loop_body
              %v72 = vld [vmem:[%s70] sm:$0xf]
              %73 = vst [vmem:[%s71] sm:$0xf] %v72
            $region33: #{custom-call.26} parent=27 // loop_footer
              %s69 = sadd.s32 1, %s65
            $region34: #{custom-call.26} parent=27 // loop_footer_branch
              %64 = sbr.rel target = $region30
            $region35: #{custom-call.26} parent=27 // loop_exit
              _
          $region28: #{custom-call.26} parent=19 // pred_fallthru
            _
        $region20: #{custom-call.26} parent=15 // pred_fallthru
          _
        %87 = vnop
      $region16: #{custom-call.26} parent=5 // pred_fallthru
        _
      %p88 = scmp.le.s32.totalorder 1, %s3
      %p89 = scmp.lt.s32.totalorder %s3, 3
      %p90 = pnand %p88, %p89
      %p91 = pneg %p90
      // Predicated region
      $region47: #{custom-call.26} parent=5 // pred_check
        _
      $region48: #{custom-call.26} parent=5 // pred_check_branch
        %93 = sbr.rel (%p90) target = $region50
      $region49: #{custom-call.26} parent=5 // pred_region
        #allocation4 [shape = 'f32[3,3]{1,0}', space=vmem, size = 0x1000, scoped, tag = 'rescaled input a']
        %s94 = ssub.s32 %s3, 1
        %s95 = sand.u32 %s8, 1
        %s96 = sand.u32 %s8, 1
        %s97 = smul.addr %s96, 4
        %s98 = scalar_lea.vmem [#allocation1], %s97
        %s99 = sand.u32 %s8, 1
        %s100 = sand.u32 %s8, 1
        %s101 = smul.addr %s100, 4
        %s102 = scalar_lea.vmem [#allocation1], %s101
        %s103 = sand.u32 %s8, 1
        %s104 = sand.u32 %s8, 1
        %s105 = smul.addr %s104, 4
        %s106 = scalar_lea.vmem [#allocation3], %s105
        %s108 = sshllo.u32 0, 4
        %v109 = vld [vmem:[%s102] sm:%s108]
        %110 = vst [vmem:[#allocation0] sm:%s108] %v109
        %v111 = vlaneseq
        %v112 = vand.u32 %v111, 127
        %vm113 = vcmp.lt.s32.totalorder %v112, 3
        %v114 = vlaneseq
        %v115 = vshrl.u32 %v114, 7
        %vm117 = vcmp.eq.s32.totalorder %v115, %v112
        %v118 = vld [vmem:[#allocation0] sm:$0xff]
        %v119 = vsel %vm117, %v118, 0.0
        %120 = vadd.xlane.f32.xlu0 %v119
        %v121 = vpop.xlane.xlu0 %120
        %vm122 = vcmp.le.s32.totalorder %v115, %v112
        %vm123 = vmand %vm122, %vm113
        %v124 = vsel %vm123, %v118, 0.0
        %v125 = vrcp.pop %v121
        %v126 = vmul.f32 %v124, %v125
        %127 = vst [vmem:[#allocation4] sm:$0xff] %v126
        %v128 = vlaneseq
        %v129 = vand.u32 %v128, 127
        %v130 = vlaneseq
        %v131 = vshrl.u32 %v130, 7
        %vm133 = vcmp.eq.s32.totalorder %v129, %v131
        %v134 = vlaneseq
        %v135 = vand.u32 %v134, 127
        %vm136 = vcmp.eq.s32.totalorder %v135, 2
        %v137 = vsel %vm136, 1.0, -1.0
        %v138 = vsel %vm133, %v137, 0.0
        %s139 = scalar_lea.vmem [#allocation4], 1
        %v140 = vld [vmem:[%s139] ss:$0 sm:$0xff]
        %v141 = vxor.u32 %v140, 2147483648
        %v142 = vlaneseq
        %v143 = vand.u32 %v142, 127
        %vm144 = vcmp.eq.s32.totalorder %v143, 1
        %v145 = vmul.f32 %v141, %v138
        %146 = vadd.xlane.f32.xlu0 %v145
        %v147 = vpop.xlane.xlu0 %146
        %v148 = vsel %vm144, %v147, %v138
        %v149 = vld [vmem:[#allocation4] ss:$0 sm:$0xff]
        %v150 = vxor.u32 %v149, 2147483648
        %v151 = vlaneseq
        %v152 = vand.u32 %v151, 127
        %vm153 = vcmp.eq.s32.totalorder %v152, 0
        %v154 = vmul.f32 %v150, %v148
        %155 = vadd.xlane.f32.xlu0 %v154
        %v156 = vpop.xlane.xlu0 %155
        %v157 = vsel %vm153, %v156, %v148
        %v158 = vrcp.pop %v121
        %v159 = vmul.f32 %v157, %v158
        %vm160 = vweird.f32 %v121
        %v161 = vsel %vm160, %v157, %v159
        %162 = vst [vmem:[#allocation2] sm:$0xff] %v161
        %s164 = sshllo.u32 0, 4
        %v166 = vld [vmem:[#allocation2] sm:%s164]
        %s167 = sshllo.u32 0, 4
        %168 = vst [vmem:[%s106] sm:%s167] %v166
        %s169 = sand.u32 %s8, 1
        %s170 = sand.u32 %s8, 1
        %s171 = smul.addr %s170, 4
        %s172 = scalar_lea.vmem [#allocation3], %s171
        %s173 = sadd.s32 %s17, %s16
        %s174 = sadd.s32 %s173, %s15
        %s175 = sadd.s32 %s174, %s14
        %s176 = smul.addr %s175, 4
        %s177 = scalar_lea.vmem %s1, %s176
        // Predicated region
        $region51: #{custom-call.26} parent=49 // pred_check
          _
        $region52: #{custom-call.26} parent=49 // pred_check_branch
          %179 = sbr.rel (0) target = $region54
        $region53: #{custom-call.26} parent=49 // pred_region
          // Predicated region
          $region55: #{custom-call.26} parent=53 // pred_check
            _
          $region56: #{custom-call.26} parent=53 // pred_check_branch
            %181 = sbr.rel target = $region58
          $region57: #{custom-call.26} parent=53 // pred_region
            // Predicated region
            $region70: #{custom-call.26} parent=57 // pred_check
              _
            $region71: #{custom-call.26} parent=57 // pred_check_branch
              %196 = sbr.rel (0) target = $region73
            $region72: #{custom-call.26} parent=57 // pred_region
              loop: start=0, step=1, limit=1
              $region74: #{custom-call.26} parent=72 // loop_pre_header
                _
              $region75: #{custom-call.26} parent=72 // loop_header
                %s199 = sphi 0, %s203
                %p200 = scmp.ge.s32.totalorder %s199, 1
                %s204 = sphi %s172, %s172
                %s205 = sphi %s177, %s177
              $region76: #{custom-call.26} parent=72 // loop_header_branch
                %202 = sbr.rel (%p200) target = $region80
              $region77: #{custom-call.26} parent=72 // loop_body
                %v206 = vld [vmem:[%s204] sm:$0xf]
                %207 = vst [vmem:[%s205] sm:$0xf] %v206
              $region78: #{custom-call.26} parent=72 // loop_footer
                %s203 = sadd.s32 1, %s199
              $region79: #{custom-call.26} parent=72 // loop_footer_branch
                %198 = sbr.rel target = $region75
              $region80: #{custom-call.26} parent=72 // loop_exit
                _
            $region73: #{custom-call.26} parent=57 // pred_fallthru
              _
          $region58: #{custom-call.26} parent=53 // pred_fallthru
            _
          // Predicated region
          $region59: #{custom-call.26} parent=53 // pred_check
            _
          $region60: #{custom-call.26} parent=53 // pred_check_branch
            %183 = sbr.rel (0) target = $region62
          $region61: #{custom-call.26} parent=53 // pred_region
            loop: start=0, step=1, limit=1
            $region63: #{custom-call.26} parent=61 // loop_pre_header
              _
            $region64: #{custom-call.26} parent=61 // loop_header
              %s186 = sphi 0, %s190
              %p187 = scmp.ge.s32.totalorder %s186, 1
              %s191 = sphi %s172, %s172
              %s192 = sphi %s177, %s177
            $region65: #{custom-call.26} parent=61 // loop_header_branch
              %189 = sbr.rel (%p187) target = $region69
            $region66: #{custom-call.26} parent=61 // loop_body
              %v193 = vld [vmem:[%s191] sm:$0xf]
              %194 = vst [vmem:[%s192] sm:$0xf] %v193
            $region67: #{custom-call.26} parent=61 // loop_footer
              %s190 = sadd.s32 1, %s186
            $region68: #{custom-call.26} parent=61 // loop_footer_branch
              %185 = sbr.rel target = $region64
            $region69: #{custom-call.26} parent=61 // loop_exit
              _
          $region62: #{custom-call.26} parent=53 // pred_fallthru
            _
        $region54: #{custom-call.26} parent=49 // pred_fallthru
          _
        %208 = vnop
      $region50: #{custom-call.26} parent=5 // pred_fallthru
        _
      %p209 = scmp.le.s32.totalorder 2, %s3
      // Predicated region
      $region81: #{custom-call.26} parent=5 // pred_check
        %p210 = pneg %p209
      $region82: #{custom-call.26} parent=5 // pred_check_branch
        %212 = sbr.rel (%p210) target = $region84
      $region83: #{custom-call.26} parent=5 // pred_region
        %s213 = ssub.s32 %s3, 2
        %s214 = sand.u32 %s9, 1
        %s215 = sand.u32 %s9, 1
        %s216 = smul.addr %s215, 4
        %s217 = scalar_lea.vmem [#allocation3], %s216
      $region84: #{custom-call.26} parent=5 // pred_fallthru
        _
    $region6: #{custom-call.26} parent=1 // loop_footer
      %s7 = sadd.s32 1, %s3
    $region7: #{custom-call.26} parent=1 // loop_footer_branch
      %2 = sbr.rel target = $region3
    $region8: #{custom-call.26} parent=1 // loop_exit
      _

</llo_original>
